<compile_context>
chip_gen: v5e
topology: v5e:2x2
jax: 0.10.0
libtpu: 0.0.40
codegen_flags: <defaults>
</compile_context>

<pallas_src>
import jax
import jax.numpy as jnp
import numpy as np
from jax.experimental import pallas as pl
from jax.experimental.pallas import tpu as pltpu

EPS = 1e-5


# --------------------------------------------------------------------------
# In-kernel helpers (traced inline)
# --------------------------------------------------------------------------
def _zero_pad_border(pad_scr):
    """Zero only the 1-pixel border of the padded scratch (not the interior).

    Done every grid step (cheap, border is tiny) so it stays correct when the
    batch grid is split across cores, each with its own scratch instance.
    """
    _, Hp, Wp, C = pad_scr.shape
    zrow = jnp.zeros((1, 1, Wp, C), jnp.float32)
    zcol = jnp.zeros((1, Hp, 1, C), jnp.float32)
    pad_scr[:, 0:1, :, :] = zrow
    pad_scr[:, Hp - 1:Hp, :, :] = zrow
    pad_scr[:, :, 0:1, :] = zcol
    pad_scr[:, :, Wp - 1:Wp, :] = zcol


def _im2col_matmul(pad_scr, w_ref, cb_ref, H, W, C):
    """3x3 / stride-1 conv of the padded image in `pad_scr` as ONE MXU matmul.

    Tap order (kh, kw, cin) matches the wrapper's weight reshape to (9*Cin, Cout).
    """
    taps = [pad_scr[:, kh:kh + H, kw:kw + W, :]
            for kh in range(3) for kw in range(3)]
    patches = jnp.concatenate(taps, axis=-1).reshape(H * W, 9 * C)
    return jnp.dot(patches, w_ref[...],
                   preferred_element_type=jnp.float32) + cb_ref[...]


def _write_stats(st_ref, y):
    """One-pass per-image partial BN stats, one dense (1, 2, C) store.

    Row 0 = sum over H*W, row 1 = sum of squares over H*W.
    """
    C = y.shape[-1]
    s = jnp.sum(y, axis=0).reshape(1, 1, C)
    ss = jnp.sum(y * y, axis=0).reshape(1, 1, C)
    st_ref[...] = jnp.concatenate([s, ss], axis=1)


# --------------------------------------------------------------------------
# Kernels (each invoked per batch element via grid=(N,))
# --------------------------------------------------------------------------
def _conv1_kernel(x_ref, w1_ref, cb1_ref, y1_ref, st1_ref, pad_scr):
    _, H, W, C = x_ref.shape
    _zero_pad_border(pad_scr)
    pad_scr[:, 1:H + 1, 1:W + 1, :] = x_ref[...]
    y1 = _im2col_matmul(pad_scr, w1_ref, cb1_ref, H, W, C)
    y1_ref[...] = y1.reshape(1, H, W, C)
    _write_stats(st1_ref, y1)


def _bnrelu_conv2_kernel(y1_ref, a1_ref, c1_ref, w2_ref, cb2_ref,
                         y2_ref, st2_ref, pad_scr):
    _, H, W, C = y1_ref.shape
    _zero_pad_border(pad_scr)
    a1 = a1_ref[...].reshape(1, 1, 1, C)
    c1 = c1_ref[...].reshape(1, 1, 1, C)
    # bn1 (folded to scale/shift) + relu, written straight into the padded
    # interior used by conv2's im2col.
    pad_scr[:, 1:H + 1, 1:W + 1, :] = jnp.maximum(y1_ref[...] * a1 + c1, 0.0)
    y2 = _im2col_matmul(pad_scr, w2_ref, cb2_ref, H, W, C)
    y2_ref[...] = y2.reshape(1, H, W, C)
    _write_stats(st2_ref, y2)


def _bn2_residual_kernel(y2_ref, x_ref, a2_ref, c2_ref, o_ref):
    _, H, W, C = x_ref.shape
    a2 = a2_ref[...].reshape(1, 1, 1, C)
    c2 = c2_ref[...].reshape(1, 1, 1, C)
    o_ref[...] = jnp.maximum(y2_ref[...] * a2 + c2 + x_ref[...],
                             0.0).astype(o_ref.dtype)


# --------------------------------------------------------------------------
# Wrapper
# --------------------------------------------------------------------------
def residual_block_forward(x_nchw, params):
    """x_nchw: (N, C, H, W) float32. Returns (N, C, H, W). downsample=None.

    Conv weights are expected in HWIO; convert from PyTorch OIHW with
    w_hwio = w_oihw.transpose(2, 3, 1, 0).
    """
    w1, cb1, w2, cb2, g1, b1, g2, b2 = params
    N, C, H, W = x_nchw.shape
    assert w1.shape[-1] == C, "downsample=None requires in_channels == out_channels"
    K = 9 * C
    M = N * H * W

    # Single layout change (NCHW -> NHWC). Padding is done inside the kernels.
    x = jnp.transpose(x_nchw, (0, 2, 3, 1)).astype(jnp.float32)
    # HWIO -> (9*Cin, Cout); (kh, kw, cin) ordering matches the im2col taps.
    w1m = w1.reshape(K, C).astype(jnp.float32)
    w2m = w2.reshape(K, C).astype(jnp.float32)

    img_spec = pl.BlockSpec((1, H, W, C), lambda n: (n, 0, 0, 0))
    w_spec = pl.BlockSpec((K, C), lambda n: (0, 0))      # constant index -> loaded once
    vec_spec = pl.BlockSpec((1, C), lambda n: (0, 0))
    st_spec = pl.BlockSpec((1, 2, C), lambda n: (n, 0, 0))

    cparams = pltpu.CompilerParams(
        dimension_semantics=("parallel",),        # split batch across cores
        vmem_limit_bytes=48 * 1024 * 1024,
    )
    pad_scratch = [pltpu.VMEM((1, H + 2, W + 2, C), jnp.float32)]

    # ---- pass 1: conv1 + bias, per-image bn1 partial stats ----
    y1, st1 = pl.pallas_call(
        _conv1_kernel,
        grid=(N,),
        in_specs=[img_spec, w_spec, vec_spec],
        out_specs=[img_spec, st_spec],
        out_shape=[jax.ShapeDtypeStruct((N, H, W, C), jnp.float32),
                   jax.ShapeDtypeStruct((N, 2, C), jnp.float32)],
        scratch_shapes=pad_scratch,
        compiler_params=cparams,
    )(x, w1m, cb1)

    def fold_bn(st, gamma, beta):
        s = jnp.sum(st[:, 0, :], axis=0)
        ss = jnp.sum(st[:, 1, :], axis=0)
        mean = s / M
        var = jnp.maximum(ss / M - mean * mean, 0.0)   # biased batch variance
        a = gamma.reshape(-1) * jax.lax.rsqrt(var + EPS)
        c = beta.reshape(-1) - mean * a
        return a.reshape(1, C), c.reshape(1, C)

    a1, c1 = fold_bn(st1, g1, b1)

    # ---- pass 2: bn1 (folded) + relu + conv2 + bias, bn2 partial stats ----
    # y2 is written over y1's HBM buffer (y1 is dead after this pass).
    y2, st2 = pl.pallas_call(
        _bnrelu_conv2_kernel,
        grid=(N,),
        in_specs=[img_spec, vec_spec, vec_spec, w_spec, vec_spec],
        out_specs=[img_spec, st_spec],
        out_shape=[jax.ShapeDtypeStruct((N, H, W, C), jnp.float32),
                   jax.ShapeDtypeStruct((N, 2, C), jnp.float32)],
        scratch_shapes=pad_scratch,
        input_output_aliases={0: 0},
        compiler_params=cparams,
    )(y1, a1, c1, w2m, cb2)

    a2, c2 = fold_bn(st2, g2, b2)

    # ---- pass 3: bn2 (folded) + residual add + relu ----
    # Output is written over y2's HBM buffer (y2 is dead after this pass).
    out = pl.pallas_call(
        _bn2_residual_kernel,
        grid=(N,),
        in_specs=[img_spec, img_spec, vec_spec, vec_spec],
        out_specs=img_spec,
        out_shape=jax.ShapeDtypeStruct((N, H, W, C), jnp.float32),
        input_output_aliases={0: 0},
        compiler_params=cparams,
    )(y2, x, a2, c2)

    return jnp.transpose(out, (0, 3, 1, 2))


# --------------------------------------------------------------------------
# Pure-JAX reference (same math) for a sanity check
# --------------------------------------------------------------------------
def _reference_forward(x_nchw, params):
    w1, cb1, w2, cb2, g1, b1, g2, b2 = params
    x = jnp.transpose(x_nchw, (0, 2, 3, 1)).astype(jnp.float32)

    def conv(inp, w, cb):
        y = jax.lax.conv_general_dilated(
            inp, w, window_strides=(1, 1), padding="SAME",
            dimension_numbers=("NHWC", "HWIO", "NHWC"),
            precision=jax.lax.Precision.HIGHEST)
        return y + cb.reshape(1, 1, 1, -1)

    def bn(y, g, b):
        m = jnp.mean(y, axis=(0, 1, 2), keepdims=True)
        v = jnp.mean((y - m) ** 2, axis=(0, 1, 2), keepdims=True)
        return (y - m) * jax.lax.rsqrt(v + EPS) * g.reshape(1, 1, 1, -1) \
            + b.reshape(1, 1, 1, -1)

    y = jax.nn.relu(bn(conv(x, w1, cb1), g1, b1))
    y = bn(conv(y, w2, cb2), g2, b2)
    y = jax.nn.relu(y + x)
    return jnp.transpose(y, (0, 3, 1, 2))


def _init_params(key, c_in, c_out):
    ks = jax.random.split(key, 6)
    fan1 = 9 * c_in
    fan2 = 9 * c_out
    w1 = jax.random.normal(ks[0], (3, 3, c_in, c_out), jnp.float32) / np.sqrt(fan1)
    cb1 = 0.05 * jax.random.normal(ks[1], (1, c_out), jnp.float32)
    w2 = jax.random.normal(ks[2], (3, 3, c_out, c_out), jnp.float32) / np.sqrt(fan2)
    cb2 = 0.05 * jax.random.normal(ks[3], (1, c_out), jnp.float32)
    g1 = 1.0 + 0.1 * jax.random.normal(ks[4], (1, c_out), jnp.float32)
    b1 = jnp.zeros((1, c_out), jnp.float32)
    g2 = 1.0 + 0.1 * jax.random.normal(ks[5], (1, c_out), jnp.float32)
    b2 = jnp.zeros((1, c_out), jnp.float32)
    return (w1, cb1, w2, cb2, g1, b1, g2, b2)


if __name__ == "__main__":
    key = jax.random.PRNGKey(0)
    k_x, k_p = jax.random.split(key)

    N, C, H, W = 2, 8, 16, 16          # in_channels == out_channels == 8
    x = jax.random.normal(k_x, (N, C, H, W), jnp.float32)
    params = _init_params(k_p, C, C)

    fwd = jax.jit(residual_block_forward)
    out = jax.block_until_ready(fwd(x, params))

    ref = jax.block_until_ready(_reference_forward(x, params))
    np.testing.assert_allclose(np.asarray(out), np.asarray(ref),
                               rtol=1e-2, atol=1e-2)

    print("KERNEL_OK")
</pallas_src>

<mosaic_0001>
module attributes {stable_mosaic.version = 11 : i64} {
  func.func @_conv1_kernel(%arg0: i32, %arg1: memref<1x16x16x8xf32, #tpu.memory_space<vmem>>, %arg2: memref<72x8xf32, #tpu.memory_space<vmem>>, %arg3: memref<1x8xf32, #tpu.memory_space<vmem>>, %arg4: memref<1x16x16x8xf32, #tpu.memory_space<vmem>>, %arg5: memref<1x2x8xf32, #tpu.memory_space<vmem>>, %arg6: memref<1x18x18x8xf32, #tpu.memory_space<vmem>>) attributes {dimension_semantics = [#tpu.dimension_semantics<parallel>], iteration_bounds = array<i64: 2>, scalar_prefetch = 0 : i64, scratch_operands = 1 : i64, tpu.core_type = #tpu.core_type<tc>, window_params = [{transform_indices = @transform_0, window_bounds = array<i64: 1, 16, 16, 8>}, {pipeline_mode = #tpu.pipeline_mode<synchronous>, transform_indices = @transform_1, window_bounds = array<i64: 72, 8>}, {pipeline_mode = #tpu.pipeline_mode<synchronous>, transform_indices = @transform_2, window_bounds = array<i64: 1, 8>}, {transform_indices = @transform_3, window_bounds = array<i64: 1, 16, 16, 8>}, {transform_indices = @transform_4, window_bounds = array<i64: 1, 2, 8>}]} {
    %cst = arith.constant 0.000000e+00 : f32
    %0 = vector.broadcast %cst : f32 to vector<1x1x18x8xf32>
    %cst_0 = arith.constant 0.000000e+00 : f32
    %1 = vector.broadcast %cst_0 : f32 to vector<1x18x1x8xf32>
    %c0 = arith.constant 0 : index
    %c0_1 = arith.constant 0 : index
    %c0_2 = arith.constant 0 : index
    %c0_3 = arith.constant 0 : index
    %2 = vector.load %arg6[%c0, %c0_1, %c0_2, %c0_3] : memref<1x18x18x8xf32, #tpu.memory_space<vmem>>, vector<1x1x18x8xf32>
    tpu.vector_store %arg6[%c0, %c0_1, %c0_2, %c0_3], %0 {strides = array<i32>} : memref<1x18x18x8xf32, #tpu.memory_space<vmem>>, vector<1x1x18x8xf32>,
    %c0_4 = arith.constant 0 : index
    %c17 = arith.constant 17 : index
    %c0_5 = arith.constant 0 : index
    %c0_6 = arith.constant 0 : index
    %3 = vector.load %arg6[%c0_4, %c17, %c0_5, %c0_6] : memref<1x18x18x8xf32, #tpu.memory_space<vmem>>, vector<1x1x18x8xf32>
    tpu.vector_store %arg6[%c0_4, %c17, %c0_5, %c0_6], %0 {strides = array<i32>} : memref<1x18x18x8xf32, #tpu.memory_space<vmem>>, vector<1x1x18x8xf32>,
    %c0_7 = arith.constant 0 : index
    %c0_8 = arith.constant 0 : index
    %c0_9 = arith.constant 0 : index
    %c0_10 = arith.constant 0 : index
    %4 = vector.load %arg6[%c0_7, %c0_8, %c0_9, %c0_10] : memref<1x18x18x8xf32, #tpu.memory_space<vmem>>, vector<1x18x1x8xf32>
    tpu.vector_store %arg6[%c0_7, %c0_8, %c0_9, %c0_10], %1 {strides = array<i32>} : memref<1x18x18x8xf32, #tpu.memory_space<vmem>>, vector<1x18x1x8xf32>,
    %c0_11 = arith.constant 0 : index
    %c0_12 = arith.constant 0 : index
    %c17_13 = arith.constant 17 : index
    %c0_14 = arith.constant 0 : index
    %5 = vector.load %arg6[%c0_11, %c0_12, %c17_13, %c0_14] : memref<1x18x18x8xf32, #tpu.memory_space<vmem>>, vector<1x18x1x8xf32>
    tpu.vector_store %arg6[%c0_11, %c0_12, %c17_13, %c0_14], %1 {strides = array<i32>} : memref<1x18x18x8xf32, #tpu.memory_space<vmem>>, vector<1x18x1x8xf32>,
    %c0_15 = arith.constant 0 : index
    %c0_16 = arith.constant 0 : index
    %c0_17 = arith.constant 0 : index
    %c0_18 = arith.constant 0 : index
    %6 = vector.load %arg1[%c0_15, %c0_16, %c0_17, %c0_18] : memref<1x16x16x8xf32, #tpu.memory_space<vmem>>, vector<1x16x16x8xf32>
    %c0_19 = arith.constant 0 : index
    %c1 = arith.constant 1 : index
    %c1_20 = arith.constant 1 : index
    %c0_21 = arith.constant 0 : index
    %7 = vector.load %arg6[%c0_19, %c1, %c1_20, %c0_21] : memref<1x18x18x8xf32, #tpu.memory_space<vmem>>, vector<1x16x16x8xf32>
    tpu.vector_store %arg6[%c0_19, %c1, %c1_20, %c0_21], %6 {strides = array<i32>} : memref<1x18x18x8xf32, #tpu.memory_space<vmem>>, vector<1x16x16x8xf32>,
    %c0_22 = arith.constant 0 : index
    %c0_23 = arith.constant 0 : index
    %c0_24 = arith.constant 0 : index
    %c0_25 = arith.constant 0 : index
    %8 = vector.load %arg6[%c0_22, %c0_23, %c0_24, %c0_25] : memref<1x18x18x8xf32, #tpu.memory_space<vmem>>, vector<1x16x16x8xf32>
    %c0_26 = arith.constant 0 : index
    %c0_27 = arith.constant 0 : index
    %c1_28 = arith.constant 1 : index
    %c0_29 = arith.constant 0 : index
    %9 = vector.load %arg6[%c0_26, %c0_27, %c1_28, %c0_29] : memref<1x18x18x8xf32, #tpu.memory_space<vmem>>, vector<1x16x16x8xf32>
    %c0_30 = arith.constant 0 : index
    %c0_31 = arith.constant 0 : index
    %c2 = arith.constant 2 : index
    %c0_32 = arith.constant 0 : index
    %10 = vector.load %arg6[%c0_30, %c0_31, %c2, %c0_32] : memref<1x18x18x8xf32, #tpu.memory_space<vmem>>, vector<1x16x16x8xf32>
    %c0_33 = arith.constant 0 : index
    %c1_34 = arith.constant 1 : index
    %c0_35 = arith.constant 0 : index
    %c0_36 = arith.constant 0 : index
    %11 = vector.load %arg6[%c0_33, %c1_34, %c0_35, %c0_36] : memref<1x18x18x8xf32, #tpu.memory_space<vmem>>, vector<1x16x16x8xf32>
    %c0_37 = arith.constant 0 : index
    %c1_38 = arith.constant 1 : index
    %c1_39 = arith.constant 1 : index
    %c0_40 = arith.constant 0 : index
    %12 = vector.load %arg6[%c0_37, %c1_38, %c1_39, %c0_40] : memref<1x18x18x8xf32, #tpu.memory_space<vmem>>, vector<1x16x16x8xf32>
    %c0_41 = arith.constant 0 : index
    %c1_42 = arith.constant 1 : index
    %c2_43 = arith.constant 2 : index
    %c0_44 = arith.constant 0 : index
    %13 = vector.load %arg6[%c0_41, %c1_42, %c2_43, %c0_44] : memref<1x18x18x8xf32, #tpu.memory_space<vmem>>, vector<1x16x16x8xf32>
    %c0_45 = arith.constant 0 : index
    %c2_46 = arith.constant 2 : index
    %c0_47 = arith.constant 0 : index
    %c0_48 = arith.constant 0 : index
    %14 = vector.load %arg6[%c0_45, %c2_46, %c0_47, %c0_48] : memref<1x18x18x8xf32, #tpu.memory_space<vmem>>, vector<1x16x16x8xf32>
    %c0_49 = arith.constant 0 : index
    %c2_50 = arith.constant 2 : index
    %c1_51 = arith.constant 1 : index
    %c0_52 = arith.constant 0 : index
    %15 = vector.load %arg6[%c0_49, %c2_50, %c1_51, %c0_52] : memref<1x18x18x8xf32, #tpu.memory_space<vmem>>, vector<1x16x16x8xf32>
    %c0_53 = arith.constant 0 : index
    %c2_54 = arith.constant 2 : index
    %c2_55 = arith.constant 2 : index
    %c0_56 = arith.constant 0 : index
    %16 = vector.load %arg6[%c0_53, %c2_54, %c2_55, %c0_56] : memref<1x18x18x8xf32, #tpu.memory_space<vmem>>, vector<1x16x16x8xf32>
    %17 = tpu.concatenate %8, %9, %10, %11, %12, %13, %14, %15, %16 in 3 : vector<1x16x16x8xf32>, vector<1x16x16x8xf32>, vector<1x16x16x8xf32>, vector<1x16x16x8xf32>, vector<1x16x16x8xf32>, vector<1x16x16x8xf32>, vector<1x16x16x8xf32>, vector<1x16x16x8xf32>, vector<1x16x16x8xf32> -> vector<1x16x16x72xf32>
    %18 = vector.shape_cast %17 : vector<1x16x16x72xf32> to vector<256x72xf32>
    %c0_57 = arith.constant 0 : index
    %c0_58 = arith.constant 0 : index
    %19 = vector.load %arg2[%c0_57, %c0_58] : memref<72x8xf32, #tpu.memory_space<vmem>>, vector<72x8xf32>
    %cst_59 = arith.constant dense<0.000000e+00> : vector<256x8xf32>
    %20 = tpu.matmul %18, %19, %cst_59 {dimension_numbers = #tpu.dot_dimension_numbers<[1], [0], [0], [1], [0, 0, 1, 1], [], []>} : vector<256x72xf32>, vector<72x8xf32>, vector<256x8xf32> -> vector<256x8xf32>
    %c0_60 = arith.constant 0 : index
    %c0_61 = arith.constant 0 : index
    %21 = vector.load %arg3[%c0_60, %c0_61] : memref<1x8xf32, #tpu.memory_space<vmem>>, vector<1x8xf32>
    %22 = vector.broadcast %21 : vector<1x8xf32> to vector<256x8xf32>
    %23 = arith.addf %20, %22 : vector<256x8xf32>
    %24 = vector.shape_cast %23 : vector<256x8xf32> to vector<1x16x16x8xf32>
    %c0_62 = arith.constant 0 : index
    %c0_63 = arith.constant 0 : index
    %c0_64 = arith.constant 0 : index
    %c0_65 = arith.constant 0 : index
    %25 = vector.load %arg4[%c0_62, %c0_63, %c0_64, %c0_65] : memref<1x16x16x8xf32, #tpu.memory_space<vmem>>, vector<1x16x16x8xf32>
    tpu.vector_store %arg4[%c0_62, %c0_63, %c0_64, %c0_65], %24 {strides = array<i32>} : memref<1x16x16x8xf32, #tpu.memory_space<vmem>>, vector<1x16x16x8xf32>,
    %cst_66 = arith.constant dense<0.000000e+00> : vector<8xf32>
    %26 = vector.multi_reduction <add>, %23, %cst_66 [0] : vector<256x8xf32> to vector<8xf32>
    %27 = vector.shape_cast %26 : vector<8xf32> to vector<1x1x8xf32>
    %28 = arith.mulf %23, %23 : vector<256x8xf32>
    %cst_67 = arith.constant dense<0.000000e+00> : vector<8xf32>
    %29 = vector.multi_reduction <add>, %28, %cst_67 [0] : vector<256x8xf32> to vector<8xf32>
    %30 = vector.shape_cast %29 : vector<8xf32> to vector<1x1x8xf32>
    %31 = tpu.concatenate %27, %30 in 1 : vector<1x1x8xf32>, vector<1x1x8xf32> -> vector<1x2x8xf32>
    %c0_68 = arith.constant 0 : index
    %c0_69 = arith.constant 0 : index
    %c0_70 = arith.constant 0 : index
    %32 = vector.load %arg5[%c0_68, %c0_69, %c0_70] : memref<1x2x8xf32, #tpu.memory_space<vmem>>, vector<1x2x8xf32>
    tpu.vector_store %arg5[%c0_68, %c0_69, %c0_70], %31 {strides = array<i32>} : memref<1x2x8xf32, #tpu.memory_space<vmem>>, vector<1x2x8xf32>,
    return
  }
  func.func @transform_0(%arg0: i32) -> (i32, i32, i32, i32) {
    %c0_i32 = arith.constant 0 : i32
    %c0_i32_0 = arith.constant 0 : i32
    %c0_i32_1 = arith.constant 0 : i32
    %c0_i32_2 = arith.constant 0 : i32
    return %arg0, %c0_i32, %c0_i32_0, %c0_i32_1 : i32, i32, i32, i32
  }
  func.func @transform_1(%arg0: i32) -> (i32, i32) {
    %c0_i32 = arith.constant 0 : i32
    %c0_i32_0 = arith.constant 0 : i32
    %c0_i32_1 = arith.constant 0 : i32
    return %c0_i32, %c0_i32_0 : i32, i32
  }
  func.func @transform_2(%arg0: i32) -> (i32, i32) {
    %c0_i32 = arith.constant 0 : i32
    %c0_i32_0 = arith.constant 0 : i32
    %c0_i32_1 = arith.constant 0 : i32
    return %c0_i32, %c0_i32_0 : i32, i32
  }
  func.func @transform_3(%arg0: i32) -> (i32, i32, i32, i32) {
    %c0_i32 = arith.constant 0 : i32
    %c0_i32_0 = arith.constant 0 : i32
    %c0_i32_1 = arith.constant 0 : i32
    %c0_i32_2 = arith.constant 0 : i32
    return %arg0, %c0_i32, %c0_i32_0, %c0_i32_1 : i32, i32, i32, i32
  }
  func.func @transform_4(%arg0: i32) -> (i32, i32, i32) {
    %c0_i32 = arith.constant 0 : i32
    %c0_i32_0 = arith.constant 0 : i32
    %c0_i32_1 = arith.constant 0 : i32
    return %arg0, %c0_i32, %c0_i32_0 : i32, i32, i32
  }
}

module attributes {stable_mosaic.version = 11 : i64} {
  func.func @_bn2_residual_kernel(%arg0: i32, %arg1: memref<1x16x16x8xf32, #tpu.memory_space<vmem>>, %arg2: memref<1x16x16x8xf32, #tpu.memory_space<vmem>>, %arg3: memref<1x8xf32, #tpu.memory_space<vmem>>, %arg4: memref<1x8xf32, #tpu.memory_space<vmem>>, %arg5: memref<1x16x16x8xf32, #tpu.memory_space<vmem>>) attributes {dimension_semantics = [#tpu.dimension_semantics<parallel>], iteration_bounds = array<i64: 2>, scalar_prefetch = 0 : i64, scratch_operands = 0 : i64, tpu.core_type = #tpu.core_type<tc>, window_params = [{transform_indices = @transform_0, window_bounds = array<i64: 1, 16, 16, 8>}, {transform_indices = @transform_1, window_bounds = array<i64: 1, 16, 16, 8>}, {pipeline_mode = #tpu.pipeline_mode<synchronous>, transform_indices = @transform_2, window_bounds = array<i64: 1, 8>}, {pipeline_mode = #tpu.pipeline_mode<synchronous>, transform_indices = @transform_3, window_bounds = array<i64: 1, 8>}, {transform_indices = @transform_4, window_bounds = array<i64: 1, 16, 16, 8>}]} {
    %c0 = arith.constant 0 : index
    %c0_0 = arith.constant 0 : index
    %0 = vector.load %arg3[%c0, %c0_0] : memref<1x8xf32, #tpu.memory_space<vmem>>, vector<1x8xf32>
    %1 = vector.shape_cast %0 : vector<1x8xf32> to vector<1x1x1x8xf32>
    %c0_1 = arith.constant 0 : index
    %c0_2 = arith.constant 0 : index
    %2 = vector.load %arg4[%c0_1, %c0_2] : memref<1x8xf32, #tpu.memory_space<vmem>>, vector<1x8xf32>
    %3 = vector.shape_cast %2 : vector<1x8xf32> to vector<1x1x1x8xf32>
    %c0_3 = arith.constant 0 : index
    %c0_4 = arith.constant 0 : index
    %c0_5 = arith.constant 0 : index
    %c0_6 = arith.constant 0 : index
    %4 = vector.load %arg1[%c0_3, %c0_4, %c0_5, %c0_6] : memref<1x16x16x8xf32, #tpu.memory_space<vmem>>, vector<1x16x16x8xf32>
    %5 = vector.broadcast %1 : vector<1x1x1x8xf32> to vector<1x16x16x8xf32>
    %6 = arith.mulf %4, %5 : vector<1x16x16x8xf32>
    %7 = vector.broadcast %3 : vector<1x1x1x8xf32> to vector<1x16x16x8xf32>
    %8 = arith.addf %6, %7 : vector<1x16x16x8xf32>
    %c0_7 = arith.constant 0 : index
    %c0_8 = arith.constant 0 : index
    %c0_9 = arith.constant 0 : index
    %c0_10 = arith.constant 0 : index
    %9 = vector.load %arg2[%c0_7, %c0_8, %c0_9, %c0_10] : memref<1x16x16x8xf32, #tpu.memory_space<vmem>>, vector<1x16x16x8xf32>
    %10 = arith.addf %8, %9 : vector<1x16x16x8xf32>
    %cst = arith.constant 0.000000e+00 : f32
    %11 = vector.broadcast %cst : f32 to vector<1x16x16x8xf32>
    %12 = arith.maximumf %10, %11 : vector<1x16x16x8xf32>
    %c0_11 = arith.constant 0 : index
    %c0_12 = arith.constant 0 : index
    %c0_13 = arith.constant 0 : index
    %c0_14 = arith.constant 0 : index
    %13 = vector.load %arg5[%c0_11, %c0_12, %c0_13, %c0_14] : memref<1x16x16x8xf32, #tpu.memory_space<vmem>>, vector<1x16x16x8xf32>
    tpu.vector_store %arg5[%c0_11, %c0_12, %c0_13, %c0_14], %12 {strides = array<i32>} : memref<1x16x16x8xf32, #tpu.memory_space<vmem>>, vector<1x16x16x8xf32>,
    return
  }
  func.func @transform_0(%arg0: i32) -> (i32, i32, i32, i32) {
    %c0_i32 = arith.constant 0 : i32
    %c0_i32_0 = arith.constant 0 : i32
    %c0_i32_1 = arith.constant 0 : i32
    %c0_i32_2 = arith.constant 0 : i32
    return %arg0, %c0_i32, %c0_i32_0, %c0_i32_1 : i32, i32, i32, i32
  }
  func.func @transform_1(%arg0: i32) -> (i32, i32, i32, i32) {
    %c0_i32 = arith.constant 0 : i32
    %c0_i32_0 = arith.constant 0 : i32
    %c0_i32_1 = arith.constant 0 : i32
    %c0_i32_2 = arith.constant 0 : i32
    return %arg0, %c0_i32, %c0_i32_0, %c0_i32_1 : i32, i32, i32, i32
  }
  func.func @transform_2(%arg0: i32) -> (i32, i32) {
    %c0_i32 = arith.constant 0 : i32
    %c0_i32_0 = arith.constant 0 : i32
    %c0_i32_1 = arith.constant 0 : i32
    return %c0_i32, %c0_i32_0 : i32, i32
  }
  func.func @transform_3(%arg0: i32) -> (i32, i32) {
    %c0_i32 = arith.constant 0 : i32
    %c0_i32_0 = arith.constant 0 : i32
    %c0_i32_1 = arith.constant 0 : i32
    return %c0_i32, %c0_i32_0 : i32, i32
  }
  func.func @transform_4(%arg0: i32) -> (i32, i32, i32, i32) {
    %c0_i32 = arith.constant 0 : i32
    %c0_i32_0 = arith.constant 0 : i32
    %c0_i32_1 = arith.constant 0 : i32
    %c0_i32_2 = arith.constant 0 : i32
    return %arg0, %c0_i32, %c0_i32_0, %c0_i32_1 : i32, i32, i32, i32
  }
}

module attributes {stable_mosaic.version = 11 : i64} {
  func.func @_bnrelu_conv2_kernel(%arg0: i32, %arg1: memref<1x16x16x8xf32, #tpu.memory_space<vmem>>, %arg2: memref<1x8xf32, #tpu.memory_space<vmem>>, %arg3: memref<1x8xf32, #tpu.memory_space<vmem>>, %arg4: memref<72x8xf32, #tpu.memory_space<vmem>>, %arg5: memref<1x8xf32, #tpu.memory_space<vmem>>, %arg6: memref<1x16x16x8xf32, #tpu.memory_space<vmem>>, %arg7: memref<1x2x8xf32, #tpu.memory_space<vmem>>, %arg8: memref<1x18x18x8xf32, #tpu.memory_space<vmem>>) attributes {dimension_semantics = [#tpu.dimension_semantics<parallel>], iteration_bounds = array<i64: 2>, scalar_prefetch = 0 : i64, scratch_operands = 1 : i64, tpu.core_type = #tpu.core_type<tc>, window_params = [{transform_indices = @transform_0, window_bounds = array<i64: 1, 16, 16, 8>}, {pipeline_mode = #tpu.pipeline_mode<synchronous>, transform_indices = @transform_1, window_bounds = array<i64: 1, 8>}, {pipeline_mode = #tpu.pipeline_mode<synchronous>, transform_indices = @transform_2, window_bounds = array<i64: 1, 8>}, {pipeline_mode = #tpu.pipeline_mode<synchronous>, transform_indices = @transform_3, window_bounds = array<i64: 72, 8>}, {pipeline_mode = #tpu.pipeline_mode<synchronous>, transform_indices = @transform_4, window_bounds = array<i64: 1, 8>}, {transform_indices = @transform_5, window_bounds = array<i64: 1, 16, 16, 8>}, {transform_indices = @transform_6, window_bounds = array<i64: 1, 2, 8>}]} {
    %cst = arith.constant 0.000000e+00 : f32
    %0 = vector.broadcast %cst : f32 to vector<1x1x18x8xf32>
    %cst_0 = arith.constant 0.000000e+00 : f32
    %1 = vector.broadcast %cst_0 : f32 to vector<1x18x1x8xf32>
    %c0 = arith.constant 0 : index
    %c0_1 = arith.constant 0 : index
    %c0_2 = arith.constant 0 : index
    %c0_3 = arith.constant 0 : index
    %2 = vector.load %arg8[%c0, %c0_1, %c0_2, %c0_3] : memref<1x18x18x8xf32, #tpu.memory_space<vmem>>, vector<1x1x18x8xf32>
    tpu.vector_store %arg8[%c0, %c0_1, %c0_2, %c0_3], %0 {strides = array<i32>} : memref<1x18x18x8xf32, #tpu.memory_space<vmem>>, vector<1x1x18x8xf32>,
    %c0_4 = arith.constant 0 : index
    %c17 = arith.constant 17 : index
    %c0_5 = arith.constant 0 : index
    %c0_6 = arith.constant 0 : index
    %3 = vector.load %arg8[%c0_4, %c17, %c0_5, %c0_6] : memref<1x18x18x8xf32, #tpu.memory_space<vmem>>, vector<1x1x18x8xf32>
    tpu.vector_store %arg8[%c0_4, %c17, %c0_5, %c0_6], %0 {strides = array<i32>} : memref<1x18x18x8xf32, #tpu.memory_space<vmem>>, vector<1x1x18x8xf32>,
    %c0_7 = arith.constant 0 : index
    %c0_8 = arith.constant 0 : index
    %c0_9 = arith.constant 0 : index
    %c0_10 = arith.constant 0 : index
    %4 = vector.load %arg8[%c0_7, %c0_8, %c0_9, %c0_10] : memref<1x18x18x8xf32, #tpu.memory_space<vmem>>, vector<1x18x1x8xf32>
    tpu.vector_store %arg8[%c0_7, %c0_8, %c0_9, %c0_10], %1 {strides = array<i32>} : memref<1x18x18x8xf32, #tpu.memory_space<vmem>>, vector<1x18x1x8xf32>,
    %c0_11 = arith.constant 0 : index
    %c0_12 = arith.constant 0 : index
    %c17_13 = arith.constant 17 : index
    %c0_14 = arith.constant 0 : index
    %5 = vector.load %arg8[%c0_11, %c0_12, %c17_13, %c0_14] : memref<1x18x18x8xf32, #tpu.memory_space<vmem>>, vector<1x18x1x8xf32>
    tpu.vector_store %arg8[%c0_11, %c0_12, %c17_13, %c0_14], %1 {strides = array<i32>} : memref<1x18x18x8xf32, #tpu.memory_space<vmem>>, vector<1x18x1x8xf32>,
    %c0_15 = arith.constant 0 : index
    %c0_16 = arith.constant 0 : index
    %6 = vector.load %arg2[%c0_15, %c0_16] : memref<1x8xf32, #tpu.memory_space<vmem>>, vector<1x8xf32>
    %7 = vector.shape_cast %6 : vector<1x8xf32> to vector<1x1x1x8xf32>
    %c0_17 = arith.constant 0 : index
    %c0_18 = arith.constant 0 : index
    %8 = vector.load %arg3[%c0_17, %c0_18] : memref<1x8xf32, #tpu.memory_space<vmem>>, vector<1x8xf32>
    %9 = vector.shape_cast %8 : vector<1x8xf32> to vector<1x1x1x8xf32>
    %c0_19 = arith.constant 0 : index
    %c0_20 = arith.constant 0 : index
    %c0_21 = arith.constant 0 : index
    %c0_22 = arith.constant 0 : index
    %10 = vector.load %arg1[%c0_19, %c0_20, %c0_21, %c0_22] : memref<1x16x16x8xf32, #tpu.memory_space<vmem>>, vector<1x16x16x8xf32>
    %11 = vector.broadcast %7 : vector<1x1x1x8xf32> to vector<1x16x16x8xf32>
    %12 = arith.mulf %10, %11 : vector<1x16x16x8xf32>
    %13 = vector.broadcast %9 : vector<1x1x1x8xf32> to vector<1x16x16x8xf32>
    %14 = arith.addf %12, %13 : vector<1x16x16x8xf32>
    %cst_23 = arith.constant 0.000000e+00 : f32
    %15 = vector.broadcast %cst_23 : f32 to vector<1x16x16x8xf32>
    %16 = arith.maximumf %14, %15 : vector<1x16x16x8xf32>
    %c0_24 = arith.constant 0 : index
    %c1 = arith.constant 1 : index
    %c1_25 = arith.constant 1 : index
    %c0_26 = arith.constant 0 : index
    %17 = vector.load %arg8[%c0_24, %c1, %c1_25, %c0_26] : memref<1x18x18x8xf32, #tpu.memory_space<vmem>>, vector<1x16x16x8xf32>
    tpu.vector_store %arg8[%c0_24, %c1, %c1_25, %c0_26], %16 {strides = array<i32>} : memref<1x18x18x8xf32, #tpu.memory_space<vmem>>, vector<1x16x16x8xf32>,
    %c0_27 = arith.constant 0 : index
    %c0_28 = arith.constant 0 : index
    %c0_29 = arith.constant 0 : index
    %c0_30 = arith.constant 0 : index
    %18 = vector.load %arg8[%c0_27, %c0_28, %c0_29, %c0_30] : memref<1x18x18x8xf32, #tpu.memory_space<vmem>>, vector<1x16x16x8xf32>
    %c0_31 = arith.constant 0 : index
    %c0_32 = arith.constant 0 : index
    %c1_33 = arith.constant 1 : index
    %c0_34 = arith.constant 0 : index
    %19 = vector.load %arg8[%c0_31, %c0_32, %c1_33, %c0_34] : memref<1x18x18x8xf32, #tpu.memory_space<vmem>>, vector<1x16x16x8xf32>
    %c0_35 = arith.constant 0 : index
    %c0_36 = arith.constant 0 : index
    %c2 = arith.constant 2 : index
    %c0_37 = arith.constant 0 : index
    %20 = vector.load %arg8[%c0_35, %c0_36, %c2, %c0_37] : memref<1x18x18x8xf32, #tpu.memory_space<vmem>>, vector<1x16x16x8xf32>
    %c0_38 = arith.constant 0 : index
    %c1_39 = arith.constant 1 : index
    %c0_40 = arith.constant 0 : index
    %c0_41 = arith.constant 0 : index
    %21 = vector.load %arg8[%c0_38, %c1_39, %c0_40, %c0_41] : memref<1x18x18x8xf32, #tpu.memory_space<vmem>>, vector<1x16x16x8xf32>
    %c0_42 = arith.constant 0 : index
    %c1_43 = arith.constant 1 : index
    %c1_44 = arith.constant 1 : index
    %c0_45 = arith.constant 0 : index
    %22 = vector.load %arg8[%c0_42, %c1_43, %c1_44, %c0_45] : memref<1x18x18x8xf32, #tpu.memory_space<vmem>>, vector<1x16x16x8xf32>
    %c0_46 = arith.constant 0 : index
    %c1_47 = arith.constant 1 : index
    %c2_48 = arith.constant 2 : index
    %c0_49 = arith.constant 0 : index
    %23 = vector.load %arg8[%c0_46, %c1_47, %c2_48, %c0_49] : memref<1x18x18x8xf32, #tpu.memory_space<vmem>>, vector<1x16x16x8xf32>
    %c0_50 = arith.constant 0 : index
    %c2_51 = arith.constant 2 : index
    %c0_52 = arith.constant 0 : index
    %c0_53 = arith.constant 0 : index
    %24 = vector.load %arg8[%c0_50, %c2_51, %c0_52, %c0_53] : memref<1x18x18x8xf32, #tpu.memory_space<vmem>>, vector<1x16x16x8xf32>
    %c0_54 = arith.constant 0 : index
    %c2_55 = arith.constant 2 : index
    %c1_56 = arith.constant 1 : index
    %c0_57 = arith.constant 0 : index
    %25 = vector.load %arg8[%c0_54, %c2_55, %c1_56, %c0_57] : memref<1x18x18x8xf32, #tpu.memory_space<vmem>>, vector<1x16x16x8xf32>
    %c0_58 = arith.constant 0 : index
    %c2_59 = arith.constant 2 : index
    %c2_60 = arith.constant 2 : index
    %c0_61 = arith.constant 0 : index
    %26 = vector.load %arg8[%c0_58, %c2_59, %c2_60, %c0_61] : memref<1x18x18x8xf32, #tpu.memory_space<vmem>>, vector<1x16x16x8xf32>
    %27 = tpu.concatenate %18, %19, %20, %21, %22, %23, %24, %25, %26 in 3 : vector<1x16x16x8xf32>, vector<1x16x16x8xf32>, vector<1x16x16x8xf32>, vector<1x16x16x8xf32>, vector<1x16x16x8xf32>, vector<1x16x16x8xf32>, vector<1x16x16x8xf32>, vector<1x16x16x8xf32>, vector<1x16x16x8xf32> -> vector<1x16x16x72xf32>
    %28 = vector.shape_cast %27 : vector<1x16x16x72xf32> to vector<256x72xf32>
    %c0_62 = arith.constant 0 : index
    %c0_63 = arith.constant 0 : index
    %29 = vector.load %arg4[%c0_62, %c0_63] : memref<72x8xf32, #tpu.memory_space<vmem>>, vector<72x8xf32>
    %cst_64 = arith.constant dense<0.000000e+00> : vector<256x8xf32>
    %30 = tpu.matmul %28, %29, %cst_64 {dimension_numbers = #tpu.dot_dimension_numbers<[1], [0], [0], [1], [0, 0, 1, 1], [], []>} : vector<256x72xf32>, vector<72x8xf32>, vector<256x8xf32> -> vector<256x8xf32>
    %c0_65 = arith.constant 0 : index
    %c0_66 = arith.constant 0 : index
    %31 = vector.load %arg5[%c0_65, %c0_66] : memref<1x8xf32, #tpu.memory_space<vmem>>, vector<1x8xf32>
    %32 = vector.broadcast %31 : vector<1x8xf32> to vector<256x8xf32>
    %33 = arith.addf %30, %32 : vector<256x8xf32>
    %34 = vector.shape_cast %33 : vector<256x8xf32> to vector<1x16x16x8xf32>
    %c0_67 = arith.constant 0 : index
    %c0_68 = arith.constant 0 : index
    %c0_69 = arith.constant 0 : index
    %c0_70 = arith.constant 0 : index
    %35 = vector.load %arg6[%c0_67, %c0_68, %c0_69, %c0_70] : memref<1x16x16x8xf32, #tpu.memory_space<vmem>>, vector<1x16x16x8xf32>
    tpu.vector_store %arg6[%c0_67, %c0_68, %c0_69, %c0_70], %34 {strides = array<i32>} : memref<1x16x16x8xf32, #tpu.memory_space<vmem>>, vector<1x16x16x8xf32>,
    %cst_71 = arith.constant dense<0.000000e+00> : vector<8xf32>
    %36 = vector.multi_reduction <add>, %33, %cst_71 [0] : vector<256x8xf32> to vector<8xf32>
    %37 = vector.shape_cast %36 : vector<8xf32> to vector<1x1x8xf32>
    %38 = arith.mulf %33, %33 : vector<256x8xf32>
    %cst_72 = arith.constant dense<0.000000e+00> : vector<8xf32>
    %39 = vector.multi_reduction <add>, %38, %cst_72 [0] : vector<256x8xf32> to vector<8xf32>
    %40 = vector.shape_cast %39 : vector<8xf32> to vector<1x1x8xf32>
    %41 = tpu.concatenate %37, %40 in 1 : vector<1x1x8xf32>, vector<1x1x8xf32> -> vector<1x2x8xf32>
    %c0_73 = arith.constant 0 : index
    %c0_74 = arith.constant 0 : index
    %c0_75 = arith.constant 0 : index
    %42 = vector.load %arg7[%c0_73, %c0_74, %c0_75] : memref<1x2x8xf32, #tpu.memory_space<vmem>>, vector<1x2x8xf32>
    tpu.vector_store %arg7[%c0_73, %c0_74, %c0_75], %41 {strides = array<i32>} : memref<1x2x8xf32, #tpu.memory_space<vmem>>, vector<1x2x8xf32>,
    return
  }
  func.func @transform_0(%arg0: i32) -> (i32, i32, i32, i32) {
    %c0_i32 = arith.constant 0 : i32
    %c0_i32_0 = arith.constant 0 : i32
    %c0_i32_1 = arith.constant 0 : i32
    %c0_i32_2 = arith.constant 0 : i32
    return %arg0, %c0_i32, %c0_i32_0, %c0_i32_1 : i32, i32, i32, i32
  }
  func.func @transform_1(%arg0: i32) -> (i32, i32) {
    %c0_i32 = arith.constant 0 : i32
    %c0_i32_0 = arith.constant 0 : i32
    %c0_i32_1 = arith.constant 0 : i32
    return %c0_i32, %c0_i32_0 : i32, i32
  }
  func.func @transform_2(%arg0: i32) -> (i32, i32) {
    %c0_i32 = arith.constant 0 : i32
    %c0_i32_0 = arith.constant 0 : i32
    %c0_i32_1 = arith.constant 0 : i32
    return %c0_i32, %c0_i32_0 : i32, i32
  }
  func.func @transform_3(%arg0: i32) -> (i32, i32) {
    %c0_i32 = arith.constant 0 : i32
    %c0_i32_0 = arith.constant 0 : i32
    %c0_i32_1 = arith.constant 0 : i32
    return %c0_i32, %c0_i32_0 : i32, i32
  }
  func.func @transform_4(%arg0: i32) -> (i32, i32) {
    %c0_i32 = arith.constant 0 : i32
    %c0_i32_0 = arith.constant 0 : i32
    %c0_i32_1 = arith.constant 0 : i32
    return %c0_i32, %c0_i32_0 : i32, i32
  }
  func.func @transform_5(%arg0: i32) -> (i32, i32, i32, i32) {
    %c0_i32 = arith.constant 0 : i32
    %c0_i32_0 = arith.constant 0 : i32
    %c0_i32_1 = arith.constant 0 : i32
    %c0_i32_2 = arith.constant 0 : i32
    return %arg0, %c0_i32, %c0_i32_0, %c0_i32_1 : i32, i32, i32, i32
  }
  func.func @transform_6(%arg0: i32) -> (i32, i32, i32) {
    %c0_i32 = arith.constant 0 : i32
    %c0_i32_0 = arith.constant 0 : i32
    %c0_i32_1 = arith.constant 0 : i32
    return %arg0, %c0_i32, %c0_i32_0 : i32, i32, i32
  }
}

</mosaic_0001>

<llo_original>
// kernel: residual_block_forward.5
$region0: #{residual_block_forward.5}
  #allocation0 [shape = 'u32[]', space=smem, size = 0x4, offset = 0x4, fixed_abs, tag = 'smem constant byte address 0x4 - core index']
  #allocation1 [shape = 'u32[72,128]{1,0:T(1,128)}', space=vmem, size = 0x9000, scoped, tag = 'internal scratch']
  %s0 = inlined_call_operand.vmem [shape: f32[2,16,16,8], index: 0, kind: input, shape index: {}, may-alias: {0,4}]
  %s1 = inlined_call_operand.vmem [shape: f32[2,16,16,8], index: 1, kind: input, shape index: {}]
  %s2 = inlined_call_operand.vmem [shape: f32[1,8], index: 2, kind: input, shape index: {}]
  %s3 = inlined_call_operand.vmem [shape: f32[1,8], index: 3, kind: input, shape index: {}]
  %s4 = inlined_call_operand.vmem [shape: f32[2,16,16,8], index: 4, kind: output, shape index: {}, may-alias: {0,4}]
  %s5 = sld [smem:[#allocation0]]
  $region49: #{residual_block_forward.5} parent=0
    _
  %s7 = ssub.s32 1, %s5
  %s8 = scalar_select 0, %s7, %s5
  loop: start=0, step=1, limit=4
  $region2: #{residual_block_forward.5} parent=0 // loop_pre_header
    _
  $region3: #{residual_block_forward.5} parent=0 // loop_header
    %s10 = sphi 0, %s14
    %p11 = scmp.ge.s32.totalorder %s10, 4
    %s20 = sphi 0, %s22
    %s23 = sphi 0, %s20
    %s24 = sphi 0, %s23
    %s40 = sphi 0, %s24
    %s46 = sphi 0, %s48
    %s49 = sphi 0, %s46
    %s50 = sphi 0, %s49
    %s66 = sphi 0, %s50
    %s70 = sphi 0, %s70
    %s72 = sphi 0, %s70
    %s73 = sphi 0, %s72
    %s87 = sphi 0, %s73
    %s91 = sphi 0, %s91
    %s93 = sphi 0, %s91
    %s94 = sphi 0, %s93
    %s108 = sphi 0, %s94
    %s114 = sphi 0, %s116
    %s117 = sphi 0, %s114
    %s118 = sphi 0, %s117
    %s134 = sphi 0, %s118
  $region4: #{residual_block_forward.5} parent=0 // loop_header_branch
    %13 = sbr.rel (%p11) target = $region8
  $region5: #{residual_block_forward.5} parent=0 // loop_body
    %s15 = ssub.s32 %s10, 1
    %s16 = ssub.s32 %s10, 2
    %s17 = sadd.s32 %s10, 1
    %s18 = ssub.s32 %s10, %s17
    %p19 = scmp.eq.s32.totalorder %s18, 0
    %s21 = sadd.s32 %s20, 1
    %s22 = scalar_select %p19, %s20, %s21
    %p25 = pneg %p19
    %p26 = scmp.eq.s32.totalorder %s10, 1
    %p27 = por %p25, %p26
    %p28 = scmp.ne.s32.totalorder %s20, %s23
    %p29 = scmp.eq.s32.totalorder %s10, 0
    %p30 = por %p28, %p29
    %p31 = scmp.ne.s32.totalorder %s20, %s23
    %p32 = scmp.eq.s32.totalorder %s15, 1
    %p33 = por %p31, %p32
    %p34 = scmp.ne.s32.totalorder %s23, %s24
    %p35 = scmp.eq.s32.totalorder %s15, 0
    %p36 = por %p34, %p35
    %p37 = scmp.ne.s32.totalorder %s23, %s24
    %p38 = scmp.eq.s32.totalorder %s16, 1
    %p39 = por %p37, %p38
    %p41 = scmp.ne.s32.totalorder %s24, %s40
    %p42 = scmp.eq.s32.totalorder %s16, 0
    %p43 = por %p41, %p42
    %s44 = ssub.s32 %s10, %s17
    %p45 = scmp.eq.s32.totalorder %s44, 0
    %s47 = sadd.s32 %s46, 1
    %s48 = scalar_select %p45, %s46, %s47
    %p51 = pneg %p45
    %p52 = scmp.eq.s32.totalorder %s10, 1
    %p53 = por %p51, %p52
    %p54 = scmp.ne.s32.totalorder %s46, %s49
    %p55 = scmp.eq.s32.totalorder %s10, 0
    %p56 = por %p54, %p55
    %p57 = scmp.ne.s32.totalorder %s46, %s49
    %p58 = scmp.eq.s32.totalorder %s15, 1
    %p59 = por %p57, %p58
    %p60 = scmp.ne.s32.totalorder %s49, %s50
    %p61 = scmp.eq.s32.totalorder %s15, 0
    %p62 = por %p60, %p61
    %p63 = scmp.ne.s32.totalorder %s49, %s50
    %p64 = scmp.eq.s32.totalorder %s16, 1
    %p65 = por %p63, %p64
    %p67 = scmp.ne.s32.totalorder %s50, %s66
    %p68 = scmp.eq.s32.totalorder %s16, 0
    %p69 = por %p67, %p68
    %s71 = sadd.s32 %s70, 1
    %p74 = scmp.eq.s32.totalorder %s10, 1
    %p75 = scmp.ne.s32.totalorder %s70, %s72
    %p76 = scmp.eq.s32.totalorder %s10, 0
    %p77 = por %p75, %p76
    %p78 = scmp.ne.s32.totalorder %s70, %s72
    %p79 = scmp.eq.s32.totalorder %s15, 1
    %p80 = por %p78, %p79
    %p81 = scmp.ne.s32.totalorder %s72, %s73
    %p82 = scmp.eq.s32.totalorder %s15, 0
    %p83 = por %p81, %p82
    %p84 = scmp.ne.s32.totalorder %s72, %s73
    %p85 = scmp.eq.s32.totalorder %s16, 1
    %p86 = por %p84, %p85
    %p88 = scmp.ne.s32.totalorder %s73, %s87
    %p89 = scmp.eq.s32.totalorder %s16, 0
    %p90 = por %p88, %p89
    %s92 = sadd.s32 %s91, 1
    %p95 = scmp.eq.s32.totalorder %s10, 1
    %p96 = scmp.ne.s32.totalorder %s91, %s93
    %p97 = scmp.eq.s32.totalorder %s10, 0
    %p98 = por %p96, %p97
    %p99 = scmp.ne.s32.totalorder %s91, %s93
    %p100 = scmp.eq.s32.totalorder %s15, 1
    %p101 = por %p99, %p100
    %p102 = scmp.ne.s32.totalorder %s93, %s94
    %p103 = scmp.eq.s32.totalorder %s15, 0
    %p104 = por %p102, %p103
    %p105 = scmp.ne.s32.totalorder %s93, %s94
    %p106 = scmp.eq.s32.totalorder %s16, 1
    %p107 = por %p105, %p106
    %p109 = scmp.ne.s32.totalorder %s94, %s108
    %p110 = scmp.eq.s32.totalorder %s16, 0
    %p111 = por %p109, %p110
    %s112 = ssub.s32 %s10, %s17
    %p113 = scmp.eq.s32.totalorder %s112, 0
    %s115 = sadd.s32 %s114, 1
    %s116 = scalar_select %p113, %s114, %s115
    %p119 = pneg %p113
    %p120 = scmp.eq.s32.totalorder %s10, 1
    %p121 = por %p119, %p120
    %p122 = scmp.ne.s32.totalorder %s114, %s117
    %p123 = scmp.eq.s32.totalorder %s10, 0
    %p124 = por %p122, %p123
    %p125 = scmp.ne.s32.totalorder %s114, %s117
    %p126 = scmp.eq.s32.totalorder %s15, 1
    %p127 = por %p125, %p126
    %p128 = scmp.ne.s32.totalorder %s117, %s118
    %p129 = scmp.eq.s32.totalorder %s15, 0
    %p130 = por %p128, %p129
    %p131 = scmp.ne.s32.totalorder %s117, %s118
    %p132 = scmp.eq.s32.totalorder %s16, 1
    %p133 = por %p131, %p132
    %p135 = scmp.ne.s32.totalorder %s118, %s134
    %p136 = scmp.eq.s32.totalorder %s16, 0
    %p137 = por %p135, %p136
    %p138 = scmp.le.s32.totalorder 1, %s10
    %p139 = scmp.lt.s32.totalorder %s10, 3
    %p140 = pnand %p138, %p139
    %p141 = pneg %p140
    // Predicated region
    $region9: #{residual_block_forward.5} parent=5 // pred_check
      _
    $region10: #{residual_block_forward.5} parent=5 // pred_check_branch
      %143 = sbr.rel (%p140) target = $region12
    $region11: #{residual_block_forward.5} parent=5 // pred_region
      %s144 = ssub.s32 %s10, 1
      // Predicated region
      $region13: #{residual_block_forward.5} parent=11 // pred_check
        %p145 = pneg %p83
      $region14: #{residual_block_forward.5} parent=11 // pred_check_branch
        %147 = sbr.rel (%p145) target = $region16
      $region15: #{residual_block_forward.5} parent=11 // pred_region
        _
      $region16: #{residual_block_forward.5} parent=11 // pred_fallthru
        _
      // Predicated region
      $region17: #{residual_block_forward.5} parent=11 // pred_check
        %p148 = pneg %p104
      $region18: #{residual_block_forward.5} parent=11 // pred_check_branch
        %150 = sbr.rel (%p148) target = $region20
      $region19: #{residual_block_forward.5} parent=11 // pred_region
        _
      $region20: #{residual_block_forward.5} parent=11 // pred_fallthru
        _
    $region12: #{residual_block_forward.5} parent=5 // pred_fallthru
      _
    %p151 = scmp.lt.s32.totalorder %s10, 2
    // Predicated region
    $region21: #{residual_block_forward.5} parent=5 // pred_check
      %p152 = pneg %p151
    $region22: #{residual_block_forward.5} parent=5 // pred_check_branch
      %154 = sbr.rel (%p152) target = $region24
    $region23: #{residual_block_forward.5} parent=5 // pred_region
      // Predicated region
      $region25: #{residual_block_forward.5} parent=23 // pred_check
        %p155 = pneg %p30
      $region26: #{residual_block_forward.5} parent=23 // pred_check_branch
        %157 = sbr.rel (%p155) target = $region28
      $region27: #{residual_block_forward.5} parent=23 // pred_region
        %p158 = scmp.lt.s32.totalorder %s10, 1
        %s159 = scalar_select %p158, %s10, 1
        %s160 = smul.addr %s159, 32
        %s161 = smul.addr %s160, 8
        %s162 = scalar_lea.vmem %s0, %s161
      $region28: #{residual_block_forward.5} parent=23 // pred_fallthru
        _
      // Predicated region
      $region29: #{residual_block_forward.5} parent=23 // pred_check
        %p163 = pneg %p56
      $region30: #{residual_block_forward.5} parent=23 // pred_check_branch
        %165 = sbr.rel (%p163) target = $region32
      $region31: #{residual_block_forward.5} parent=23 // pred_region
        %p166 = scmp.lt.s32.totalorder %s10, 1
        %s167 = scalar_select %p166, %s10, 1
        %s168 = smul.addr %s167, 32
        %s169 = smul.addr %s168, 8
        %s170 = scalar_lea.vmem %s1, %s169
      $region32: #{residual_block_forward.5} parent=23 // pred_fallthru
        _
    $region24: #{residual_block_forward.5} parent=5 // pred_fallthru
      _
    %p171 = scmp.le.s32.totalorder 1, %s10
    %p172 = scmp.lt.s32.totalorder %s10, 3
    %p173 = pnand %p171, %p172
    %p174 = pneg %p173
    // Predicated region
    $region33: #{residual_block_forward.5} parent=5 // pred_check
      _
    $region34: #{residual_block_forward.5} parent=5 // pred_check_branch
      %176 = sbr.rel (%p173) target = $region36
    $region35: #{residual_block_forward.5} parent=5 // pred_region
      %s177 = ssub.s32 %s10, 1
      %p178 = scmp.lt.s32.totalorder %s15, 1
      %s179 = scalar_select %p178, %s15, 1
      %s180 = smul.addr %s179, 32
      %s181 = smul.addr %s180, 8
      %s182 = scalar_lea.vmem %s0, %s181
      %p183 = pneg %p36
      %p184 = pneg %p33
      %p185 = scmp.lt.s32.totalorder %s15, 1
      %s186 = scalar_select %p185, %s15, 1
      %s187 = smul.addr %s186, 32
      %s188 = smul.addr %s187, 8
      %s189 = scalar_lea.vmem %s1, %s188
      %p190 = pneg %p62
      %p191 = pneg %p59
      %p192 = pneg %p83
      %p193 = pneg %p80
      %p194 = pneg %p104
      %p195 = pneg %p101
      %p196 = pneg %p130
      %p197 = pneg %p127
      %p198 = scmp.lt.s32.totalorder %s15, 1
      %s199 = scalar_select %p198, %s15, 1
      %s200 = smul.addr %s199, 32
      %s201 = smul.addr %s200, 8
      %s202 = scalar_lea.vmem %s4, %s201
      %p203 = scmp.lt.s32.totalorder %s15, 1
      %s204 = scalar_select %p203, %s15, 1
      %s205 = smul.addr %s204, 32
      %s206 = smul.addr %s205, 8
      %s207 = scalar_lea.vmem %s0, %s206
      %p208 = scmp.lt.s32.totalorder %s15, 1
      %s209 = scalar_select %p208, %s15, 1
      %s210 = smul.addr %s209, 32
      %s211 = smul.addr %s210, 8
      %s212 = scalar_lea.vmem %s1, %s211
      %p213 = scmp.lt.s32.totalorder %s15, 1
      %s214 = scalar_select %p213, %s15, 1
      %s215 = smul.addr %s214, 32
      %s216 = smul.addr %s215, 8
      %s217 = scalar_lea.vmem %s4, %s216
      %v218 = vld [vmem:[%s2] sm:$0x1]
      %v219 = vld [vmem:[%s3] sm:$0x1]
      %v220 = vld [vmem:[%s207] sm:$0xff]
      %v221 = vld [vmem:[%s207 + $0x8] sm:$0xff]
      %v222 = vld [vmem:[%s207 + $0x10] sm:$0xff]
      %v223 = vld [vmem:[%s207 + $0x18] sm:$0xff]
      %v224 = vld [vmem:[%s207 + $0x20] sm:$0xff]
      %v225 = vld [vmem:[%s207 + $0x28] sm:$0xff]
      %v226 = vld [vmem:[%s207 + $0x30] sm:$0xff]
      %v227 = vld [vmem:[%s207 + $0x38] sm:$0xff]
      %v228 = vld [vmem:[%s207 + $0x40] sm:$0xff]
      %v229 = vld [vmem:[%s207 + $0x48] sm:$0xff]
      %v230 = vld [vmem:[%s207 + $0x50] sm:$0xff]
      %v231 = vld [vmem:[%s207 + $0x58] sm:$0xff]
      %v232 = vld [vmem:[%s207 + $0x60] sm:$0xff]
      %v233 = vld [vmem:[%s207 + $0x68] sm:$0xff]
      %v234 = vld [vmem:[%s207 + $0x70] sm:$0xff]
      %v235 = vld [vmem:[%s207 + $0x78] sm:$0xff]
      %v236 = vld [vmem:[%s207 + $0x80] sm:$0xff]
      %v237 = vld [vmem:[%s207 + $0x88] sm:$0xff]
      %v238 = vld [vmem:[%s207 + $0x90] sm:$0xff]
      %v239 = vld [vmem:[%s207 + $0x98] sm:$0xff]
      %v240 = vld [vmem:[%s207 + $0xa0] sm:$0xff]
      %v241 = vld [vmem:[%s207 + $0xa8] sm:$0xff]
      %v242 = vld [vmem:[%s207 + $0xb0] sm:$0xff]
      %v243 = vld [vmem:[%s207 + $0xb8] sm:$0xff]
      %v244 = vld [vmem:[%s207 + $0xc0] sm:$0xff]
      %v245 = vld [vmem:[%s207 + $0xc8] sm:$0xff]
      %v246 = vld [vmem:[%s207 + $0xd0] sm:$0xff]
      %v247 = vld [vmem:[%s207 + $0xd8] sm:$0xff]
      %v248 = vld [vmem:[%s207 + $0xe0] sm:$0xff]
      %v249 = vld [vmem:[%s207 + $0xe8] sm:$0xff]
      %v250 = vld [vmem:[%s207 + $0xf0] sm:$0xff]
      %v251 = vld [vmem:[%s207 + $0xf8] sm:$0xff]
      %v253 = vperm.slane %v218, 0
      %v255 = vmul.f32 %v220, %v253
      %v256 = vmul.f32 %v221, %v253
      %v257 = vmul.f32 %v222, %v253
      %v258 = vmul.f32 %v223, %v253
      %v259 = vmul.f32 %v224, %v253
      %v260 = vmul.f32 %v225, %v253
      %v261 = vmul.f32 %v226, %v253
      %v262 = vmul.f32 %v227, %v253
      %v263 = vmul.f32 %v228, %v253
      %v264 = vmul.f32 %v229, %v253
      %v265 = vmul.f32 %v230, %v253
      %v266 = vmul.f32 %v231, %v253
      %v267 = vmul.f32 %v232, %v253
      %v268 = vmul.f32 %v233, %v253
      %v269 = vmul.f32 %v234, %v253
      %v270 = vmul.f32 %v235, %v253
      %v271 = vmul.f32 %v236, %v253
      %v272 = vmul.f32 %v237, %v253
      %v273 = vmul.f32 %v238, %v253
      %v274 = vmul.f32 %v239, %v253
      %v275 = vmul.f32 %v240, %v253
      %v276 = vmul.f32 %v241, %v253
      %v277 = vmul.f32 %v242, %v253
      %v278 = vmul.f32 %v243, %v253
      %v279 = vmul.f32 %v244, %v253
      %v280 = vmul.f32 %v245, %v253
      %v281 = vmul.f32 %v246, %v253
      %v282 = vmul.f32 %v247, %v253
      %v283 = vmul.f32 %v248, %v253
      %v284 = vmul.f32 %v249, %v253
      %v285 = vmul.f32 %v250, %v253
      %v286 = vmul.f32 %v251, %v253
      %v288 = vperm.slane %v219, 0
      %v290 = vadd.f32 %v255, %v288
      %v291 = vadd.f32 %v256, %v288
      %v292 = vadd.f32 %v257, %v288
      %v293 = vadd.f32 %v258, %v288
      %v294 = vadd.f32 %v259, %v288
      %v295 = vadd.f32 %v260, %v288
      %v296 = vadd.f32 %v261, %v288
      %v297 = vadd.f32 %v262, %v288
      %v298 = vadd.f32 %v263, %v288
      %v299 = vadd.f32 %v264, %v288
      %v300 = vadd.f32 %v265, %v288
      %v301 = vadd.f32 %v266, %v288
      %v302 = vadd.f32 %v267, %v288
      %v303 = vadd.f32 %v268, %v288
      %v304 = vadd.f32 %v269, %v288
      %v305 = vadd.f32 %v270, %v288
      %v306 = vadd.f32 %v271, %v288
      %v307 = vadd.f32 %v272, %v288
      %v308 = vadd.f32 %v273, %v288
      %v309 = vadd.f32 %v274, %v288
      %v310 = vadd.f32 %v275, %v288
      %v311 = vadd.f32 %v276, %v288
      %v312 = vadd.f32 %v277, %v288
      %v313 = vadd.f32 %v278, %v288
      %v314 = vadd.f32 %v279, %v288
      %v315 = vadd.f32 %v280, %v288
      %v316 = vadd.f32 %v281, %v288
      %v317 = vadd.f32 %v282, %v288
      %v318 = vadd.f32 %v283, %v288
      %v319 = vadd.f32 %v284, %v288
      %v320 = vadd.f32 %v285, %v288
      %v321 = vadd.f32 %v286, %v288
      %v322 = vld [vmem:[%s212] sm:$0xff]
      %v323 = vld [vmem:[%s212 + $0x8] sm:$0xff]
      %v324 = vld [vmem:[%s212 + $0x10] sm:$0xff]
      %v325 = vld [vmem:[%s212 + $0x18] sm:$0xff]
      %v326 = vld [vmem:[%s212 + $0x20] sm:$0xff]
      %v327 = vld [vmem:[%s212 + $0x28] sm:$0xff]
      %v328 = vld [vmem:[%s212 + $0x30] sm:$0xff]
      %v329 = vld [vmem:[%s212 + $0x38] sm:$0xff]
      %v330 = vld [vmem:[%s212 + $0x40] sm:$0xff]
      %v331 = vld [vmem:[%s212 + $0x48] sm:$0xff]
      %v332 = vld [vmem:[%s212 + $0x50] sm:$0xff]
      %v333 = vld [vmem:[%s212 + $0x58] sm:$0xff]
      %v334 = vld [vmem:[%s212 + $0x60] sm:$0xff]
      %v335 = vld [vmem:[%s212 + $0x68] sm:$0xff]
      %v336 = vld [vmem:[%s212 + $0x70] sm:$0xff]
      %v337 = vld [vmem:[%s212 + $0x78] sm:$0xff]
      %v338 = vld [vmem:[%s212 + $0x80] sm:$0xff]
      %v339 = vld [vmem:[%s212 + $0x88] sm:$0xff]
      %v340 = vld [vmem:[%s212 + $0x90] sm:$0xff]
      %v341 = vld [vmem:[%s212 + $0x98] sm:$0xff]
      %v342 = vld [vmem:[%s212 + $0xa0] sm:$0xff]
      %v343 = vld [vmem:[%s212 + $0xa8] sm:$0xff]
      %v344 = vld [vmem:[%s212 + $0xb0] sm:$0xff]
      %v345 = vld [vmem:[%s212 + $0xb8] sm:$0xff]
      %v346 = vld [vmem:[%s212 + $0xc0] sm:$0xff]
      %v347 = vld [vmem:[%s212 + $0xc8] sm:$0xff]
      %v348 = vld [vmem:[%s212 + $0xd0] sm:$0xff]
      %v349 = vld [vmem:[%s212 + $0xd8] sm:$0xff]
      %v350 = vld [vmem:[%s212 + $0xe0] sm:$0xff]
      %v351 = vld [vmem:[%s212 + $0xe8] sm:$0xff]
      %v352 = vld [vmem:[%s212 + $0xf0] sm:$0xff]
      %v353 = vld [vmem:[%s212 + $0xf8] sm:$0xff]
      %v354 = vadd.f32 %v290, %v322
      %v355 = vadd.f32 %v291, %v323
      %v356 = vadd.f32 %v292, %v324
      %v357 = vadd.f32 %v293, %v325
      %v358 = vadd.f32 %v294, %v326
      %v359 = vadd.f32 %v295, %v327
      %v360 = vadd.f32 %v296, %v328
      %v361 = vadd.f32 %v297, %v329
      %v362 = vadd.f32 %v298, %v330
      %v363 = vadd.f32 %v299, %v331
      %v364 = vadd.f32 %v300, %v332
      %v365 = vadd.f32 %v301, %v333
      %v366 = vadd.f32 %v302, %v334
      %v367 = vadd.f32 %v303, %v335
      %v368 = vadd.f32 %v304, %v336
      %v369 = vadd.f32 %v305, %v337
      %v370 = vadd.f32 %v306, %v338
      %v371 = vadd.f32 %v307, %v339
      %v372 = vadd.f32 %v308, %v340
      %v373 = vadd.f32 %v309, %v341
      %v374 = vadd.f32 %v310, %v342
      %v375 = vadd.f32 %v311, %v343
      %v376 = vadd.f32 %v312, %v344
      %v377 = vadd.f32 %v313, %v345
      %v378 = vadd.f32 %v314, %v346
      %v379 = vadd.f32 %v315, %v347
      %v380 = vadd.f32 %v316, %v348
      %v381 = vadd.f32 %v317, %v349
      %v382 = vadd.f32 %v318, %v350
      %v383 = vadd.f32 %v319, %v351
      %v384 = vadd.f32 %v320, %v352
      %v385 = vadd.f32 %v321, %v353
      %v386 = vmax.f32 %v354, 0.0
      %v387 = vmax.f32 %v355, 0.0
      %v388 = vmax.f32 %v356, 0.0
      %v389 = vmax.f32 %v357, 0.0
      %v390 = vmax.f32 %v358, 0.0
      %v391 = vmax.f32 %v359, 0.0
      %v392 = vmax.f32 %v360, 0.0
      %v393 = vmax.f32 %v361, 0.0
      %v394 = vmax.f32 %v362, 0.0
      %v395 = vmax.f32 %v363, 0.0
      %v396 = vmax.f32 %v364, 0.0
      %v397 = vmax.f32 %v365, 0.0
      %v398 = vmax.f32 %v366, 0.0
      %v399 = vmax.f32 %v367, 0.0
      %v400 = vmax.f32 %v368, 0.0
      %v401 = vmax.f32 %v369, 0.0
      %v402 = vmax.f32 %v370, 0.0
      %v403 = vmax.f32 %v371, 0.0
      %v404 = vmax.f32 %v372, 0.0
      %v405 = vmax.f32 %v373, 0.0
      %v406 = vmax.f32 %v374, 0.0
      %v407 = vmax.f32 %v375, 0.0
      %v408 = vmax.f32 %v376, 0.0
      %v409 = vmax.f32 %v377, 0.0
      %v410 = vmax.f32 %v378, 0.0
      %v411 = vmax.f32 %v379, 0.0
      %v412 = vmax.f32 %v380, 0.0
      %v413 = vmax.f32 %v381, 0.0
      %v414 = vmax.f32 %v382, 0.0
      %v415 = vmax.f32 %v383, 0.0
      %v416 = vmax.f32 %v384, 0.0
      %v417 = vmax.f32 %v385, 0.0
      %vm418 = vcmask 64512
      %419 = vst.msk [vmem:[%s217] sm:$0xff] %vm418, %v386
      %420 = vst.msk [vmem:[%s217 + $0x8] sm:$0xff] %vm418, %v387
      %421 = vst.msk [vmem:[%s217 + $0x10] sm:$0xff] %vm418, %v388
      %422 = vst.msk [vmem:[%s217 + $0x18] sm:$0xff] %vm418, %v389
      %423 = vst.msk [vmem:[%s217 + $0x20] sm:$0xff] %vm418, %v390
      %424 = vst.msk [vmem:[%s217 + $0x28] sm:$0xff] %vm418, %v391
      %425 = vst.msk [vmem:[%s217 + $0x30] sm:$0xff] %vm418, %v392
      %426 = vst.msk [vmem:[%s217 + $0x38] sm:$0xff] %vm418, %v393
      %427 = vst.msk [vmem:[%s217 + $0x40] sm:$0xff] %vm418, %v394
      %428 = vst.msk [vmem:[%s217 + $0x48] sm:$0xff] %vm418, %v395
      %429 = vst.msk [vmem:[%s217 + $0x50] sm:$0xff] %vm418, %v396
      %430 = vst.msk [vmem:[%s217 + $0x58] sm:$0xff] %vm418, %v397
      %431 = vst.msk [vmem:[%s217 + $0x60] sm:$0xff] %vm418, %v398
      %432 = vst.msk [vmem:[%s217 + $0x68] sm:$0xff] %vm418, %v399
      %433 = vst.msk [vmem:[%s217 + $0x70] sm:$0xff] %vm418, %v400
      %434 = vst.msk [vmem:[%s217 + $0x78] sm:$0xff] %vm418, %v401
      %435 = vst.msk [vmem:[%s217 + $0x80] sm:$0xff] %vm418, %v402
      %436 = vst.msk [vmem:[%s217 + $0x88] sm:$0xff] %vm418, %v403
      %437 = vst.msk [vmem:[%s217 + $0x90] sm:$0xff] %vm418, %v404
      %438 = vst.msk [vmem:[%s217 + $0x98] sm:$0xff] %vm418, %v405
      %439 = vst.msk [vmem:[%s217 + $0xa0] sm:$0xff] %vm418, %v406
      %440 = vst.msk [vmem:[%s217 + $0xa8] sm:$0xff] %vm418, %v407
      %441 = vst.msk [vmem:[%s217 + $0xb0] sm:$0xff] %vm418, %v408
      %442 = vst.msk [vmem:[%s217 + $0xb8] sm:$0xff] %vm418, %v409
      %443 = vst.msk [vmem:[%s217 + $0xc0] sm:$0xff] %vm418, %v410
      %444 = vst.msk [vmem:[%s217 + $0xc8] sm:$0xff] %vm418, %v411
      %445 = vst.msk [vmem:[%s217 + $0xd0] sm:$0xff] %vm418, %v412
      %446 = vst.msk [vmem:[%s217 + $0xd8] sm:$0xff] %vm418, %v413
      %447 = vst.msk [vmem:[%s217 + $0xe0] sm:$0xff] %vm418, %v414
      %448 = vst.msk [vmem:[%s217 + $0xe8] sm:$0xff] %vm418, %v415
      %449 = vst.msk [vmem:[%s217 + $0xf0] sm:$0xff] %vm418, %v416
      %450 = vst.msk [vmem:[%s217 + $0xf8] sm:$0xff] %vm418, %v417
      %p451 = scmp.lt.s32.totalorder %s15, 1
      %s452 = scalar_select %p451, %s15, 1
      %s453 = smul.addr %s452, 32
      %s454 = smul.addr %s453, 8
      %s455 = scalar_lea.vmem %s4, %s454
      // Predicated region
      $region37: #{residual_block_forward.5} parent=35 // pred_check
        %p456 = pneg %p127
      $region38: #{residual_block_forward.5} parent=35 // pred_check_branch
        %458 = sbr.rel (%p456) target = $region40
      $region39: #{residual_block_forward.5} parent=35 // pred_region
        _
      $region40: #{residual_block_forward.5} parent=35 // pred_fallthru
        _
    $region36: #{residual_block_forward.5} parent=5 // pred_fallthru
      _
    %p459 = scmp.le.s32.totalorder 2, %s10
    // Predicated region
    $region41: #{residual_block_forward.5} parent=5 // pred_check
      %p460 = pneg %p459
    $region42: #{residual_block_forward.5} parent=5 // pred_check_branch
      %462 = sbr.rel (%p460) target = $region44
    $region43: #{residual_block_forward.5} parent=5 // pred_region
      %s463 = ssub.s32 %s10, 2
      // Predicated region
      $region45: #{residual_block_forward.5} parent=43 // pred_check
        %p464 = pneg %p133
      $region46: #{residual_block_forward.5} parent=43 // pred_check_branch
        %466 = sbr.rel (%p464) target = $region48
      $region47: #{residual_block_forward.5} parent=43 // pred_region
        %p467 = scmp.lt.s32.totalorder %s16, 1
        %s468 = scalar_select %p467, %s16, 1
        %s469 = smul.addr %s468, 32
        %s470 = smul.addr %s469, 8
        %s471 = scalar_lea.vmem %s4, %s470
      $region48: #{residual_block_forward.5} parent=43 // pred_fallthru
        _
    $region44: #{residual_block_forward.5} parent=5 // pred_fallthru
      _
  $region6: #{residual_block_forward.5} parent=0 // loop_footer
    %s14 = sadd.s32 1, %s10
  $region7: #{residual_block_forward.5} parent=0 // loop_footer_branch
    %9 = sbr.rel target = $region3
  $region8: #{residual_block_forward.5} parent=0 // loop_exit
    _

// kernel: residual_block_forward.3
$region0: #{residual_block_forward.3}
  #allocation0 [shape = 'u32[]', space=smem, size = 0x4, offset = 0x4, fixed_abs, tag = 'smem constant byte address 0x4 - core index']
  #allocation1 [shape = 'u32[72,128]{1,0:T(1,128)}', space=vmem, size = 0x9000, scoped, tag = 'internal scratch']
  #allocation2 [shape = 'f32[1,18,18,8]{3,2,1,0:T(8,128)}', space=vmem, size = 0x36000, scoped, tag = 'scratch operand']
  %s0 = inlined_call_operand.vmem [shape: f32[2,16,16,8], index: 0, kind: input, shape index: {}]
  %s1 = inlined_call_operand.vmem [shape: f32[72,8], index: 1, kind: input, shape index: {}]
  %s2 = inlined_call_operand.vmem [shape: f32[1,8], index: 2, kind: input, shape index: {}]
  %s3 = inlined_call_operand.vmem [shape: f32[2,16,16,8], index: 3, kind: output, shape index: {0}]
  %s4 = inlined_call_operand.vmem [shape: f32[2,2,8], index: 4, kind: output, shape index: {1}]
  %5 = xla_tuple %s3, %s4
  %s6 = sld [smem:[#allocation0]]
  $region53: #{residual_block_forward.3} parent=0
    _
  %s8 = ssub.s32 1, %s6
  %s9 = scalar_select 0, %s8, %s6
  loop: start=0, step=1, limit=4
  $region2: #{residual_block_forward.3} parent=0 // loop_pre_header
    _
  $region3: #{residual_block_forward.3} parent=0 // loop_header
    %s11 = sphi 0, %s15
    %p12 = scmp.ge.s32.totalorder %s11, 4
    %s21 = sphi 0, %s23
    %s24 = sphi 0, %s21
    %s25 = sphi 0, %s24
    %s41 = sphi 0, %s25
    %s45 = sphi 0, %s45
    %s47 = sphi 0, %s45
    %s48 = sphi 0, %s47
    %s62 = sphi 0, %s48
    %s66 = sphi 0, %s66
    %s68 = sphi 0, %s66
    %s69 = sphi 0, %s68
    %s83 = sphi 0, %s69
    %s89 = sphi 0, %s91
    %s92 = sphi 0, %s89
    %s93 = sphi 0, %s92
    %s109 = sphi 0, %s93
    %s115 = sphi 0, %s117
    %s118 = sphi 0, %s115
    %s119 = sphi 0, %s118
    %s135 = sphi 0, %s119
  $region4: #{residual_block_forward.3} parent=0 // loop_header_branch
    %14 = sbr.rel (%p12) target = $region8
  $region5: #{residual_block_forward.3} parent=0 // loop_body
    %s16 = ssub.s32 %s11, 1
    %s17 = ssub.s32 %s11, 2
    %s18 = sadd.s32 %s11, 1
    %s19 = ssub.s32 %s11, %s18
    %p20 = scmp.eq.s32.totalorder %s19, 0
    %s22 = sadd.s32 %s21, 1
    %s23 = scalar_select %p20, %s21, %s22
    %p26 = pneg %p20
    %p27 = scmp.eq.s32.totalorder %s11, 1
    %p28 = por %p26, %p27
    %p29 = scmp.ne.s32.totalorder %s21, %s24
    %p30 = scmp.eq.s32.totalorder %s11, 0
    %p31 = por %p29, %p30
    %p32 = scmp.ne.s32.totalorder %s21, %s24
    %p33 = scmp.eq.s32.totalorder %s16, 1
    %p34 = por %p32, %p33
    %p35 = scmp.ne.s32.totalorder %s24, %s25
    %p36 = scmp.eq.s32.totalorder %s16, 0
    %p37 = por %p35, %p36
    %p38 = scmp.ne.s32.totalorder %s24, %s25
    %p39 = scmp.eq.s32.totalorder %s17, 1
    %p40 = por %p38, %p39
    %p42 = scmp.ne.s32.totalorder %s25, %s41
    %p43 = scmp.eq.s32.totalorder %s17, 0
    %p44 = por %p42, %p43
    %s46 = sadd.s32 %s45, 1
    %p49 = scmp.eq.s32.totalorder %s11, 1
    %p50 = scmp.ne.s32.totalorder %s45, %s47
    %p51 = scmp.eq.s32.totalorder %s11, 0
    %p52 = por %p50, %p51
    %p53 = scmp.ne.s32.totalorder %s45, %s47
    %p54 = scmp.eq.s32.totalorder %s16, 1
    %p55 = por %p53, %p54
    %p56 = scmp.ne.s32.totalorder %s47, %s48
    %p57 = scmp.eq.s32.totalorder %s16, 0
    %p58 = por %p56, %p57
    %p59 = scmp.ne.s32.totalorder %s47, %s48
    %p60 = scmp.eq.s32.totalorder %s17, 1
    %p61 = por %p59, %p60
    %p63 = scmp.ne.s32.totalorder %s48, %s62
    %p64 = scmp.eq.s32.totalorder %s17, 0
    %p65 = por %p63, %p64
    %s67 = sadd.s32 %s66, 1
    %p70 = scmp.eq.s32.totalorder %s11, 1
    %p71 = scmp.ne.s32.totalorder %s66, %s68
    %p72 = scmp.eq.s32.totalorder %s11, 0
    %p73 = por %p71, %p72
    %p74 = scmp.ne.s32.totalorder %s66, %s68
    %p75 = scmp.eq.s32.totalorder %s16, 1
    %p76 = por %p74, %p75
    %p77 = scmp.ne.s32.totalorder %s68, %s69
    %p78 = scmp.eq.s32.totalorder %s16, 0
    %p79 = por %p77, %p78
    %p80 = scmp.ne.s32.totalorder %s68, %s69
    %p81 = scmp.eq.s32.totalorder %s17, 1
    %p82 = por %p80, %p81
    %p84 = scmp.ne.s32.totalorder %s69, %s83
    %p85 = scmp.eq.s32.totalorder %s17, 0
    %p86 = por %p84, %p85
    %s87 = ssub.s32 %s11, %s18
    %p88 = scmp.eq.s32.totalorder %s87, 0
    %s90 = sadd.s32 %s89, 1
    %s91 = scalar_select %p88, %s89, %s90
    %p94 = pneg %p88
    %p95 = scmp.eq.s32.totalorder %s11, 1
    %p96 = por %p94, %p95
    %p97 = scmp.ne.s32.totalorder %s89, %s92
    %p98 = scmp.eq.s32.totalorder %s11, 0
    %p99 = por %p97, %p98
    %p100 = scmp.ne.s32.totalorder %s89, %s92
    %p101 = scmp.eq.s32.totalorder %s16, 1
    %p102 = por %p100, %p101
    %p103 = scmp.ne.s32.totalorder %s92, %s93
    %p104 = scmp.eq.s32.totalorder %s16, 0
    %p105 = por %p103, %p104
    %p106 = scmp.ne.s32.totalorder %s92, %s93
    %p107 = scmp.eq.s32.totalorder %s17, 1
    %p108 = por %p106, %p107
    %p110 = scmp.ne.s32.totalorder %s93, %s109
    %p111 = scmp.eq.s32.totalorder %s17, 0
    %p112 = por %p110, %p111
    %s113 = ssub.s32 %s11, %s18
    %p114 = scmp.eq.s32.totalorder %s113, 0
    %s116 = sadd.s32 %s115, 1
    %s117 = scalar_select %p114, %s115, %s116
    %p120 = pneg %p114
    %p121 = scmp.eq.s32.totalorder %s11, 1
    %p122 = por %p120, %p121
    %p123 = scmp.ne.s32.totalorder %s115, %s118
    %p124 = scmp.eq.s32.totalorder %s11, 0
    %p125 = por %p123, %p124
    %p126 = scmp.ne.s32.totalorder %s115, %s118
    %p127 = scmp.eq.s32.totalorder %s16, 1
    %p128 = por %p126, %p127
    %p129 = scmp.ne.s32.totalorder %s118, %s119
    %p130 = scmp.eq.s32.totalorder %s16, 0
    %p131 = por %p129, %p130
    %p132 = scmp.ne.s32.totalorder %s118, %s119
    %p133 = scmp.eq.s32.totalorder %s17, 1
    %p134 = por %p132, %p133
    %p136 = scmp.ne.s32.totalorder %s119, %s135
    %p137 = scmp.eq.s32.totalorder %s17, 0
    %p138 = por %p136, %p137
    %p139 = scmp.le.s32.totalorder 1, %s11
    %p140 = scmp.lt.s32.totalorder %s11, 3
    %p141 = pnand %p139, %p140
    %p142 = pneg %p141
    // Predicated region
    $region9: #{residual_block_forward.3} parent=5 // pred_check
      _
    $region10: #{residual_block_forward.3} parent=5 // pred_check_branch
      %144 = sbr.rel (%p141) target = $region12
    $region11: #{residual_block_forward.3} parent=5 // pred_region
      %s145 = ssub.s32 %s11, 1
      // Predicated region
      $region13: #{residual_block_forward.3} parent=11 // pred_check
        %p146 = pneg %p58
      $region14: #{residual_block_forward.3} parent=11 // pred_check_branch
        %148 = sbr.rel (%p146) target = $region16
      $region15: #{residual_block_forward.3} parent=11 // pred_region
        _
      $region16: #{residual_block_forward.3} parent=11 // pred_fallthru
        _
      // Predicated region
      $region17: #{residual_block_forward.3} parent=11 // pred_check
        %p149 = pneg %p79
      $region18: #{residual_block_forward.3} parent=11 // pred_check_branch
        %151 = sbr.rel (%p149) target = $region20
      $region19: #{residual_block_forward.3} parent=11 // pred_region
        _
      $region20: #{residual_block_forward.3} parent=11 // pred_fallthru
        _
    $region12: #{residual_block_forward.3} parent=5 // pred_fallthru
      _
    %p152 = scmp.lt.s32.totalorder %s11, 2
    // Predicated region
    $region21: #{residual_block_forward.3} parent=5 // pred_check
      %p153 = pneg %p152
    $region22: #{residual_block_forward.3} parent=5 // pred_check_branch
      %155 = sbr.rel (%p153) target = $region24
    $region23: #{residual_block_forward.3} parent=5 // pred_region
      // Predicated region
      $region25: #{residual_block_forward.3} parent=23 // pred_check
        %p156 = pneg %p31
      $region26: #{residual_block_forward.3} parent=23 // pred_check_branch
        %158 = sbr.rel (%p156) target = $region28
      $region27: #{residual_block_forward.3} parent=23 // pred_region
        %p159 = scmp.lt.s32.totalorder %s11, 1
        %s160 = scalar_select %p159, %s11, 1
        %s161 = smul.addr %s160, 32
        %s162 = smul.addr %s161, 8
        %s163 = scalar_lea.vmem %s0, %s162
      $region28: #{residual_block_forward.3} parent=23 // pred_fallthru
        _
    $region24: #{residual_block_forward.3} parent=5 // pred_fallthru
      _
    %p164 = scmp.le.s32.totalorder 1, %s11
    %p165 = scmp.lt.s32.totalorder %s11, 3
    %p166 = pnand %p164, %p165
    %p167 = pneg %p166
    // Predicated region
    $region29: #{residual_block_forward.3} parent=5 // pred_check
      _
    $region30: #{residual_block_forward.3} parent=5 // pred_check_branch
      %169 = sbr.rel (%p166) target = $region32
    $region31: #{residual_block_forward.3} parent=5 // pred_region
      %s170 = ssub.s32 %s11, 1
      %p171 = scmp.lt.s32.totalorder %s16, 1
      %s172 = scalar_select %p171, %s16, 1
      %s173 = smul.addr %s172, 32
      %s174 = smul.addr %s173, 8
      %s175 = scalar_lea.vmem %s0, %s174
      %p176 = pneg %p37
      %p177 = pneg %p34
      %p178 = pneg %p58
      %p179 = pneg %p55
      %p180 = pneg %p79
      %p181 = pneg %p76
      %p182 = pneg %p105
      %p183 = pneg %p102
      %p184 = scmp.lt.s32.totalorder %s16, 1
      %s185 = scalar_select %p184, %s16, 1
      %s186 = smul.addr %s185, 32
      %s187 = smul.addr %s186, 8
      %s188 = scalar_lea.vmem %s3, %s187
      %p189 = pneg %p131
      %p190 = pneg %p128
      %p191 = scmp.lt.s32.totalorder %s16, 1
      %s192 = scalar_select %p191, %s16, 1
      %s193 = smul.addr %s192, 2
      %s194 = scalar_lea.vmem %s4, %s193
      %p195 = scmp.lt.s32.totalorder %s16, 1
      %s196 = scalar_select %p195, %s16, 1
      %s197 = smul.addr %s196, 32
      %s198 = smul.addr %s197, 8
      %s199 = scalar_lea.vmem %s0, %s198
      %p200 = scmp.lt.s32.totalorder %s16, 1
      %s201 = scalar_select %p200, %s16, 1
      %s202 = smul.addr %s201, 32
      %s203 = smul.addr %s202, 8
      %s204 = scalar_lea.vmem %s3, %s203
      %p205 = scmp.lt.s32.totalorder %s16, 1
      %s206 = scalar_select %p205, %s16, 1
      %s207 = smul.addr %s206, 2
      %s208 = scalar_lea.vmem %s4, %s207
      %vm209 = vcmask 64512
      %210 = vst.msk [vmem:[#allocation2] sm:$0xff] %vm209, 0.0
      %211 = vst.msk [vmem:[#allocation2 + $0x8] sm:$0xff] %vm209, 0.0
      %vm212 = vcmask 58368
      %213 = vst.msk [vmem:[#allocation2 + $0x10] sm:$0x3] %vm212, 0.0
      %s214 = scalar_lea.vmem [#allocation2], 408
      %215 = vst.msk [vmem:[%s214] sm:$0xff] %vm209, 0.0
      %216 = vst.msk [vmem:[%s214 + $0x8] sm:$0xff] %vm209, 0.0
      %217 = vst.msk [vmem:[%s214 + $0x10] sm:$0x3] %vm212, 0.0
      %vm218 = vcmask 57344
      %219 = vst.msk [vmem:[#allocation2] sm:$0x1] %vm218, 0.0
      %220 = vst.msk [vmem:[#allocation2 + $0x18] sm:$0x1] %vm218, 0.0
      %221 = vst.msk [vmem:[#allocation2 + $0x30] sm:$0x1] %vm218, 0.0
      %222 = vst.msk [vmem:[#allocation2 + $0x48] sm:$0x1] %vm218, 0.0
      %223 = vst.msk [vmem:[#allocation2 + $0x60] sm:$0x1] %vm218, 0.0
      %224 = vst.msk [vmem:[#allocation2 + $0x78] sm:$0x1] %vm218, 0.0
      %225 = vst.msk [vmem:[#allocation2 + $0x90] sm:$0x1] %vm218, 0.0
      %226 = vst.msk [vmem:[#allocation2 + $0xa8] sm:$0x1] %vm218, 0.0
      %227 = vst.msk [vmem:[#allocation2 + $0xc0] sm:$0x1] %vm218, 0.0
      %228 = vst.msk [vmem:[#allocation2 + $0xd8] sm:$0x1] %vm218, 0.0
      %229 = vst.msk [vmem:[#allocation2 + $0xf0] sm:$0x1] %vm218, 0.0
      %230 = vst.msk [vmem:[#allocation2 + $0x108] sm:$0x1] %vm218, 0.0
      %231 = vst.msk [vmem:[#allocation2 + $0x120] sm:$0x1] %vm218, 0.0
      %232 = vst.msk [vmem:[#allocation2 + $0x138] sm:$0x1] %vm218, 0.0
      %233 = vst.msk [vmem:[#allocation2 + $0x150] sm:$0x1] %vm218, 0.0
      %234 = vst.msk [vmem:[#allocation2 + $0x168] sm:$0x1] %vm218, 0.0
      %235 = vst.msk [vmem:[#allocation2 + $0x180] sm:$0x1] %vm218, 0.0
      %236 = vst.msk [vmem:[#allocation2 + $0x198] sm:$0x1] %vm218, 0.0
      %237 = vst.msk [vmem:[#allocation2 + $0x11] sm:$0x1] %vm218, 0.0
      %238 = vst.msk [vmem:[#allocation2 + $0x29] sm:$0x1] %vm218, 0.0
      %239 = vst.msk [vmem:[#allocation2 + $0x41] sm:$0x1] %vm218, 0.0
      %240 = vst.msk [vmem:[#allocation2 + $0x59] sm:$0x1] %vm218, 0.0
      %241 = vst.msk [vmem:[#allocation2 + $0x71] sm:$0x1] %vm218, 0.0
      %242 = vst.msk [vmem:[#allocation2 + $0x89] sm:$0x1] %vm218, 0.0
      %243 = vst.msk [vmem:[#allocation2 + $0xa1] sm:$0x1] %vm218, 0.0
      %244 = vst.msk [vmem:[#allocation2 + $0xb9] sm:$0x1] %vm218, 0.0
      %245 = vst.msk [vmem:[#allocation2 + $0xd1] sm:$0x1] %vm218, 0.0
      %246 = vst.msk [vmem:[#allocation2 + $0xe9] sm:$0x1] %vm218, 0.0
      %247 = vst.msk [vmem:[#allocation2 + $0x101] sm:$0x1] %vm218, 0.0
      %248 = vst.msk [vmem:[#allocation2 + $0x119] sm:$0x1] %vm218, 0.0
      %249 = vst.msk [vmem:[#allocation2 + $0x131] sm:$0x1] %vm218, 0.0
      %250 = vst.msk [vmem:[#allocation2 + $0x149] sm:$0x1] %vm218, 0.0
      %251 = vst.msk [vmem:[#allocation2 + $0x161] sm:$0x1] %vm218, 0.0
      %252 = vst.msk [vmem:[#allocation2 + $0x179] sm:$0x1] %vm218, 0.0
      %253 = vst.msk [vmem:[#allocation2 + $0x191] sm:$0x1] %vm218, 0.0
      %254 = vst.msk [vmem:[#allocation2 + $0x1a9] sm:$0x1] %vm218, 0.0
      %v255 = vld [vmem:[%s199] sm:$0xff]
      %v256 = vld [vmem:[%s199 + $0x8] sm:$0xff]
      %v257 = vld [vmem:[%s199 + $0x10] sm:$0xff]
      %v258 = vld [vmem:[%s199 + $0x18] sm:$0xff]
      %v259 = vld [vmem:[%s199 + $0x20] sm:$0xff]
      %v260 = vld [vmem:[%s199 + $0x28] sm:$0xff]
      %v261 = vld [vmem:[%s199 + $0x30] sm:$0xff]
      %v262 = vld [vmem:[%s199 + $0x38] sm:$0xff]
      %v263 = vld [vmem:[%s199 + $0x40] sm:$0xff]
      %v264 = vld [vmem:[%s199 + $0x48] sm:$0xff]
      %v265 = vld [vmem:[%s199 + $0x50] sm:$0xff]
      %v266 = vld [vmem:[%s199 + $0x58] sm:$0xff]
      %v267 = vld [vmem:[%s199 + $0x60] sm:$0xff]
      %v268 = vld [vmem:[%s199 + $0x68] sm:$0xff]
      %v269 = vld [vmem:[%s199 + $0x70] sm:$0xff]
      %v270 = vld [vmem:[%s199 + $0x78] sm:$0xff]
      %v271 = vld [vmem:[%s199 + $0x80] sm:$0xff]
      %v272 = vld [vmem:[%s199 + $0x88] sm:$0xff]
      %v273 = vld [vmem:[%s199 + $0x90] sm:$0xff]
      %v274 = vld [vmem:[%s199 + $0x98] sm:$0xff]
      %v275 = vld [vmem:[%s199 + $0xa0] sm:$0xff]
      %v276 = vld [vmem:[%s199 + $0xa8] sm:$0xff]
      %v277 = vld [vmem:[%s199 + $0xb0] sm:$0xff]
      %v278 = vld [vmem:[%s199 + $0xb8] sm:$0xff]
      %v279 = vld [vmem:[%s199 + $0xc0] sm:$0xff]
      %v280 = vld [vmem:[%s199 + $0xc8] sm:$0xff]
      %v281 = vld [vmem:[%s199 + $0xd0] sm:$0xff]
      %v282 = vld [vmem:[%s199 + $0xd8] sm:$0xff]
      %v283 = vld [vmem:[%s199 + $0xe0] sm:$0xff]
      %v284 = vld [vmem:[%s199 + $0xe8] sm:$0xff]
      %v285 = vld [vmem:[%s199 + $0xf0] sm:$0xff]
      %v286 = vld [vmem:[%s199 + $0xf8] sm:$0xff]
      %s287 = scalar_lea.vmem [#allocation2], 24
      %288 = vst.msk [vmem:[%s287 + $0x1] sm:$0xff] %vm209, %v255
      %289 = vst.msk [vmem:[%s287 + $0x9] sm:$0xff] %vm209, %v256
      %290 = vst.msk [vmem:[%s287 + $0x19] sm:$0xff] %vm209, %v257
      %291 = vst.msk [vmem:[%s287 + $0x21] sm:$0xff] %vm209, %v258
      %292 = vst.msk [vmem:[%s287 + $0x31] sm:$0xff] %vm209, %v259
      %293 = vst.msk [vmem:[%s287 + $0x39] sm:$0xff] %vm209, %v260
      %294 = vst.msk [vmem:[%s287 + $0x49] sm:$0xff] %vm209, %v261
      %295 = vst.msk [vmem:[%s287 + $0x51] sm:$0xff] %vm209, %v262
      %296 = vst.msk [vmem:[%s287 + $0x61] sm:$0xff] %vm209, %v263
      %297 = vst.msk [vmem:[%s287 + $0x69] sm:$0xff] %vm209, %v264
      %298 = vst.msk [vmem:[%s287 + $0x79] sm:$0xff] %vm209, %v265
      %299 = vst.msk [vmem:[%s287 + $0x81] sm:$0xff] %vm209, %v266
      %300 = vst.msk [vmem:[%s287 + $0x91] sm:$0xff] %vm209, %v267
      %301 = vst.msk [vmem:[%s287 + $0x99] sm:$0xff] %vm209, %v268
      %302 = vst.msk [vmem:[%s287 + $0xa9] sm:$0xff] %vm209, %v269
      %303 = vst.msk [vmem:[%s287 + $0xb1] sm:$0xff] %vm209, %v270
      %304 = vst.msk [vmem:[%s287 + $0xc1] sm:$0xff] %vm209, %v271
      %305 = vst.msk [vmem:[%s287 + $0xc9] sm:$0xff] %vm209, %v272
      %306 = vst.msk [vmem:[%s287 + $0xd9] sm:$0xff] %vm209, %v273
      %307 = vst.msk [vmem:[%s287 + $0xe1] sm:$0xff] %vm209, %v274
      %308 = vst.msk [vmem:[%s287 + $0xf1] sm:$0xff] %vm209, %v275
      %309 = vst.msk [vmem:[%s287 + $0xf9] sm:$0xff] %vm209, %v276
      %310 = vst.msk [vmem:[%s287 + $0x109] sm:$0xff] %vm209, %v277
      %311 = vst.msk [vmem:[%s287 + $0x111] sm:$0xff] %vm209, %v278
      %312 = vst.msk [vmem:[%s287 + $0x121] sm:$0xff] %vm209, %v279
      %313 = vst.msk [vmem:[%s287 + $0x129] sm:$0xff] %vm209, %v280
      %314 = vst.msk [vmem:[%s287 + $0x139] sm:$0xff] %vm209, %v281
      %315 = vst.msk [vmem:[%s287 + $0x141] sm:$0xff] %vm209, %v282
      %316 = vst.msk [vmem:[%s287 + $0x151] sm:$0xff] %vm209, %v283
      %317 = vst.msk [vmem:[%s287 + $0x159] sm:$0xff] %vm209, %v284
      %318 = vst.msk [vmem:[%s287 + $0x169] sm:$0xff] %vm209, %v285
      %319 = vst.msk [vmem:[%s287 + $0x171] sm:$0xff] %vm209, %v286
      %v320 = vld [vmem:[#allocation2] sm:$0xff]
      %v321 = vld [vmem:[#allocation2 + $0x8] sm:$0xff]
      %v322 = vld [vmem:[#allocation2 + $0x18] sm:$0xff]
      %v323 = vld [vmem:[#allocation2 + $0x20] sm:$0xff]
      %v324 = vld [vmem:[#allocation2 + $0x30] sm:$0xff]
      %v325 = vld [vmem:[#allocation2 + $0x38] sm:$0xff]
      %v326 = vld [vmem:[#allocation2 + $0x48] sm:$0xff]
      %v327 = vld [vmem:[#allocation2 + $0x50] sm:$0xff]
      %v328 = vld [vmem:[#allocation2 + $0x60] sm:$0xff]
      %v329 = vld [vmem:[#allocation2 + $0x68] sm:$0xff]
      %v330 = vld [vmem:[#allocation2 + $0x78] sm:$0xff]
      %v331 = vld [vmem:[#allocation2 + $0x80] sm:$0xff]
      %v332 = vld [vmem:[#allocation2 + $0x90] sm:$0xff]
      %v333 = vld [vmem:[#allocation2 + $0x98] sm:$0xff]
      %v334 = vld [vmem:[#allocation2 + $0xa8] sm:$0xff]
      %v335 = vld [vmem:[#allocation2 + $0xb0] sm:$0xff]
      %v336 = vld [vmem:[#allocation2 + $0xc0] sm:$0xff]
      %v337 = vld [vmem:[#allocation2 + $0xc8] sm:$0xff]
      %v338 = vld [vmem:[#allocation2 + $0xd8] sm:$0xff]
      %v339 = vld [vmem:[#allocation2 + $0xe0] sm:$0xff]
      %v340 = vld [vmem:[#allocation2 + $0xf0] sm:$0xff]
      %v341 = vld [vmem:[#allocation2 + $0xf8] sm:$0xff]
      %v342 = vld [vmem:[#allocation2 + $0x108] sm:$0xff]
      %v343 = vld [vmem:[#allocation2 + $0x110] sm:$0xff]
      %v344 = vld [vmem:[#allocation2 + $0x120] sm:$0xff]
      %v345 = vld [vmem:[#allocation2 + $0x128] sm:$0xff]
      %v346 = vld [vmem:[#allocation2 + $0x138] sm:$0xff]
      %v347 = vld [vmem:[#allocation2 + $0x140] sm:$0xff]
      %v348 = vld [vmem:[#allocation2 + $0x150] sm:$0xff]
      %v349 = vld [vmem:[#allocation2 + $0x158] sm:$0xff]
      %v350 = vld [vmem:[#allocation2 + $0x168] sm:$0xff]
      %v351 = vld [vmem:[#allocation2 + $0x170] sm:$0xff]
      %v352 = vld [vmem:[#allocation2 + $0x1] sm:$0xff]
      %v353 = vld [vmem:[#allocation2 + $0x9] sm:$0xff]
      %v354 = vld [vmem:[#allocation2 + $0x19] sm:$0xff]
      %v355 = vld [vmem:[#allocation2 + $0x21] sm:$0xff]
      %v356 = vld [vmem:[#allocation2 + $0x31] sm:$0xff]
      %v357 = vld [vmem:[#allocation2 + $0x39] sm:$0xff]
      %v358 = vld [vmem:[#allocation2 + $0x49] sm:$0xff]
      %v359 = vld [vmem:[#allocation2 + $0x51] sm:$0xff]
      %v360 = vld [vmem:[#allocation2 + $0x61] sm:$0xff]
      %v361 = vld [vmem:[#allocation2 + $0x69] sm:$0xff]
      %v362 = vld [vmem:[#allocation2 + $0x79] sm:$0xff]
      %v363 = vld [vmem:[#allocation2 + $0x81] sm:$0xff]
      %v364 = vld [vmem:[#allocation2 + $0x91] sm:$0xff]
      %v365 = vld [vmem:[#allocation2 + $0x99] sm:$0xff]
      %v366 = vld [vmem:[#allocation2 + $0xa9] sm:$0xff]
      %v367 = vld [vmem:[#allocation2 + $0xb1] sm:$0xff]
      %v368 = vld [vmem:[#allocation2 + $0xc1] sm:$0xff]
      %v369 = vld [vmem:[#allocation2 + $0xc9] sm:$0xff]
      %v370 = vld [vmem:[#allocation2 + $0xd9] sm:$0xff]
      %v371 = vld [vmem:[#allocation2 + $0xe1] sm:$0xff]
      %v372 = vld [vmem:[#allocation2 + $0xf1] sm:$0xff]
      %v373 = vld [vmem:[#allocation2 + $0xf9] sm:$0xff]
      %v374 = vld [vmem:[#allocation2 + $0x109] sm:$0xff]
      %v375 = vld [vmem:[#allocation2 + $0x111] sm:$0xff]
      %v376 = vld [vmem:[#allocation2 + $0x121] sm:$0xff]
      %v377 = vld [vmem:[#allocation2 + $0x129] sm:$0xff]
      %v378 = vld [vmem:[#allocation2 + $0x139] sm:$0xff]
      %v379 = vld [vmem:[#allocation2 + $0x141] sm:$0xff]
      %v380 = vld [vmem:[#allocation2 + $0x151] sm:$0xff]
      %v381 = vld [vmem:[#allocation2 + $0x159] sm:$0xff]
      %v382 = vld [vmem:[#allocation2 + $0x169] sm:$0xff]
      %v383 = vld [vmem:[#allocation2 + $0x171] sm:$0xff]
      %v384 = vld [vmem:[#allocation2 + $0x2] sm:$0xff]
      %v385 = vld [vmem:[#allocation2 + $0xa] sm:$0xff]
      %v386 = vld [vmem:[#allocation2 + $0x1a] sm:$0xff]
      %v387 = vld [vmem:[#allocation2 + $0x22] sm:$0xff]
      %v388 = vld [vmem:[#allocation2 + $0x32] sm:$0xff]
      %v389 = vld [vmem:[#allocation2 + $0x3a] sm:$0xff]
      %v390 = vld [vmem:[#allocation2 + $0x4a] sm:$0xff]
      %v391 = vld [vmem:[#allocation2 + $0x52] sm:$0xff]
      %v392 = vld [vmem:[#allocation2 + $0x62] sm:$0xff]
      %v393 = vld [vmem:[#allocation2 + $0x6a] sm:$0xff]
      %v394 = vld [vmem:[#allocation2 + $0x7a] sm:$0xff]
      %v395 = vld [vmem:[#allocation2 + $0x82] sm:$0xff]
      %v396 = vld [vmem:[#allocation2 + $0x92] sm:$0xff]
      %v397 = vld [vmem:[#allocation2 + $0x9a] sm:$0xff]
      %v398 = vld [vmem:[#allocation2 + $0xaa] sm:$0xff]
      %v399 = vld [vmem:[#allocation2 + $0xb2] sm:$0xff]
      %v400 = vld [vmem:[#allocation2 + $0xc2] sm:$0xff]
      %v401 = vld [vmem:[#allocation2 + $0xca] sm:$0xff]
      %v402 = vld [vmem:[#allocation2 + $0xda] sm:$0xff]
      %v403 = vld [vmem:[#allocation2 + $0xe2] sm:$0xff]
      %v404 = vld [vmem:[#allocation2 + $0xf2] sm:$0xff]
      %v405 = vld [vmem:[#allocation2 + $0xfa] sm:$0xff]
      %v406 = vld [vmem:[#allocation2 + $0x10a] sm:$0xff]
      %v407 = vld [vmem:[#allocation2 + $0x112] sm:$0xff]
      %v408 = vld [vmem:[#allocation2 + $0x122] sm:$0xff]
      %v409 = vld [vmem:[#allocation2 + $0x12a] sm:$0xff]
      %v410 = vld [vmem:[#allocation2 + $0x13a] sm:$0xff]
      %v411 = vld [vmem:[#allocation2 + $0x142] sm:$0xff]
      %v412 = vld [vmem:[#allocation2 + $0x152] sm:$0xff]
      %v413 = vld [vmem:[#allocation2 + $0x15a] sm:$0xff]
      %v414 = vld [vmem:[#allocation2 + $0x16a] sm:$0xff]
      %v415 = vld [vmem:[#allocation2 + $0x172] sm:$0xff]
      %v416 = vld [vmem:[%s287] sm:$0xff]
      %v417 = vld [vmem:[%s287 + $0x8] sm:$0xff]
      %v418 = vld [vmem:[%s287 + $0x18] sm:$0xff]
      %v419 = vld [vmem:[%s287 + $0x20] sm:$0xff]
      %v420 = vld [vmem:[%s287 + $0x30] sm:$0xff]
      %v421 = vld [vmem:[%s287 + $0x38] sm:$0xff]
      %v422 = vld [vmem:[%s287 + $0x48] sm:$0xff]
      %v423 = vld [vmem:[%s287 + $0x50] sm:$0xff]
      %v424 = vld [vmem:[%s287 + $0x60] sm:$0xff]
      %v425 = vld [vmem:[%s287 + $0x68] sm:$0xff]
      %v426 = vld [vmem:[%s287 + $0x78] sm:$0xff]
      %v427 = vld [vmem:[%s287 + $0x80] sm:$0xff]
      %v428 = vld [vmem:[%s287 + $0x90] sm:$0xff]
      %v429 = vld [vmem:[%s287 + $0x98] sm:$0xff]
      %v430 = vld [vmem:[%s287 + $0xa8] sm:$0xff]
      %v431 = vld [vmem:[%s287 + $0xb0] sm:$0xff]
      %v432 = vld [vmem:[%s287 + $0xc0] sm:$0xff]
      %v433 = vld [vmem:[%s287 + $0xc8] sm:$0xff]
      %v434 = vld [vmem:[%s287 + $0xd8] sm:$0xff]
      %v435 = vld [vmem:[%s287 + $0xe0] sm:$0xff]
      %v436 = vld [vmem:[%s287 + $0xf0] sm:$0xff]
      %v437 = vld [vmem:[%s287 + $0xf8] sm:$0xff]
      %v438 = vld [vmem:[%s287 + $0x108] sm:$0xff]
      %v439 = vld [vmem:[%s287 + $0x110] sm:$0xff]
      %v440 = vld [vmem:[%s287 + $0x120] sm:$0xff]
      %v441 = vld [vmem:[%s287 + $0x128] sm:$0xff]
      %v442 = vld [vmem:[%s287 + $0x138] sm:$0xff]
      %v443 = vld [vmem:[%s287 + $0x140] sm:$0xff]
      %v444 = vld [vmem:[%s287 + $0x150] sm:$0xff]
      %v445 = vld [vmem:[%s287 + $0x158] sm:$0xff]
      %v446 = vld [vmem:[%s287 + $0x168] sm:$0xff]
      %v447 = vld [vmem:[%s287 + $0x170] sm:$0xff]
      %v448 = vld [vmem:[%s287 + $0x1] sm:$0xff]
      %v449 = vld [vmem:[%s287 + $0x9] sm:$0xff]
      %v450 = vld [vmem:[%s287 + $0x19] sm:$0xff]
      %v451 = vld [vmem:[%s287 + $0x21] sm:$0xff]
      %v452 = vld [vmem:[%s287 + $0x31] sm:$0xff]
      %v453 = vld [vmem:[%s287 + $0x39] sm:$0xff]
      %v454 = vld [vmem:[%s287 + $0x49] sm:$0xff]
      %v455 = vld [vmem:[%s287 + $0x51] sm:$0xff]
      %v456 = vld [vmem:[%s287 + $0x61] sm:$0xff]
      %v457 = vld [vmem:[%s287 + $0x69] sm:$0xff]
      %v458 = vld [vmem:[%s287 + $0x79] sm:$0xff]
      %v459 = vld [vmem:[%s287 + $0x81] sm:$0xff]
      %v460 = vld [vmem:[%s287 + $0x91] sm:$0xff]
      %v461 = vld [vmem:[%s287 + $0x99] sm:$0xff]
      %v462 = vld [vmem:[%s287 + $0xa9] sm:$0xff]
      %v463 = vld [vmem:[%s287 + $0xb1] sm:$0xff]
      %v464 = vld [vmem:[%s287 + $0xc1] sm:$0xff]
      %v465 = vld [vmem:[%s287 + $0xc9] sm:$0xff]
      %v466 = vld [vmem:[%s287 + $0xd9] sm:$0xff]
      %v467 = vld [vmem:[%s287 + $0xe1] sm:$0xff]
      %v468 = vld [vmem:[%s287 + $0xf1] sm:$0xff]
      %v469 = vld [vmem:[%s287 + $0xf9] sm:$0xff]
      %v470 = vld [vmem:[%s287 + $0x109] sm:$0xff]
      %v471 = vld [vmem:[%s287 + $0x111] sm:$0xff]
      %v472 = vld [vmem:[%s287 + $0x121] sm:$0xff]
      %v473 = vld [vmem:[%s287 + $0x129] sm:$0xff]
      %v474 = vld [vmem:[%s287 + $0x139] sm:$0xff]
      %v475 = vld [vmem:[%s287 + $0x141] sm:$0xff]
      %v476 = vld [vmem:[%s287 + $0x151] sm:$0xff]
      %v477 = vld [vmem:[%s287 + $0x159] sm:$0xff]
      %v478 = vld [vmem:[%s287 + $0x169] sm:$0xff]
      %v479 = vld [vmem:[%s287 + $0x171] sm:$0xff]
      %v480 = vld [vmem:[%s287 + $0x2] sm:$0xff]
      %v481 = vld [vmem:[%s287 + $0xa] sm:$0xff]
      %v482 = vld [vmem:[%s287 + $0x1a] sm:$0xff]
      %v483 = vld [vmem:[%s287 + $0x22] sm:$0xff]
      %v484 = vld [vmem:[%s287 + $0x32] sm:$0xff]
      %v485 = vld [vmem:[%s287 + $0x3a] sm:$0xff]
      %v486 = vld [vmem:[%s287 + $0x4a] sm:$0xff]
      %v487 = vld [vmem:[%s287 + $0x52] sm:$0xff]
      %v488 = vld [vmem:[%s287 + $0x62] sm:$0xff]
      %v489 = vld [vmem:[%s287 + $0x6a] sm:$0xff]
      %v490 = vld [vmem:[%s287 + $0x7a] sm:$0xff]
      %v491 = vld [vmem:[%s287 + $0x82] sm:$0xff]
      %v492 = vld [vmem:[%s287 + $0x92] sm:$0xff]
      %v493 = vld [vmem:[%s287 + $0x9a] sm:$0xff]
      %v494 = vld [vmem:[%s287 + $0xaa] sm:$0xff]
      %v495 = vld [vmem:[%s287 + $0xb2] sm:$0xff]
      %v496 = vld [vmem:[%s287 + $0xc2] sm:$0xff]
      %v497 = vld [vmem:[%s287 + $0xca] sm:$0xff]
      %v498 = vld [vmem:[%s287 + $0xda] sm:$0xff]
      %v499 = vld [vmem:[%s287 + $0xe2] sm:$0xff]
      %v500 = vld [vmem:[%s287 + $0xf2] sm:$0xff]
      %v501 = vld [vmem:[%s287 + $0xfa] sm:$0xff]
      %v502 = vld [vmem:[%s287 + $0x10a] sm:$0xff]
      %v503 = vld [vmem:[%s287 + $0x112] sm:$0xff]
      %v504 = vld [vmem:[%s287 + $0x122] sm:$0xff]
      %v505 = vld [vmem:[%s287 + $0x12a] sm:$0xff]
      %v506 = vld [vmem:[%s287 + $0x13a] sm:$0xff]
      %v507 = vld [vmem:[%s287 + $0x142] sm:$0xff]
      %v508 = vld [vmem:[%s287 + $0x152] sm:$0xff]
      %v509 = vld [vmem:[%s287 + $0x15a] sm:$0xff]
      %v510 = vld [vmem:[%s287 + $0x16a] sm:$0xff]
      %v511 = vld [vmem:[%s287 + $0x172] sm:$0xff]
      %s512 = scalar_lea.vmem [#allocation2], 48
      %v513 = vld [vmem:[%s512] sm:$0xff]
      %v514 = vld [vmem:[%s512 + $0x8] sm:$0xff]
      %v515 = vld [vmem:[%s512 + $0x18] sm:$0xff]
      %v516 = vld [vmem:[%s512 + $0x20] sm:$0xff]
      %v517 = vld [vmem:[%s512 + $0x30] sm:$0xff]
      %v518 = vld [vmem:[%s512 + $0x38] sm:$0xff]
      %v519 = vld [vmem:[%s512 + $0x48] sm:$0xff]
      %v520 = vld [vmem:[%s512 + $0x50] sm:$0xff]
      %v521 = vld [vmem:[%s512 + $0x60] sm:$0xff]
      %v522 = vld [vmem:[%s512 + $0x68] sm:$0xff]
      %v523 = vld [vmem:[%s512 + $0x78] sm:$0xff]
      %v524 = vld [vmem:[%s512 + $0x80] sm:$0xff]
      %v525 = vld [vmem:[%s512 + $0x90] sm:$0xff]
      %v526 = vld [vmem:[%s512 + $0x98] sm:$0xff]
      %v527 = vld [vmem:[%s512 + $0xa8] sm:$0xff]
      %v528 = vld [vmem:[%s512 + $0xb0] sm:$0xff]
      %v529 = vld [vmem:[%s512 + $0xc0] sm:$0xff]
      %v530 = vld [vmem:[%s512 + $0xc8] sm:$0xff]
      %v531 = vld [vmem:[%s512 + $0xd8] sm:$0xff]
      %v532 = vld [vmem:[%s512 + $0xe0] sm:$0xff]
      %v533 = vld [vmem:[%s512 + $0xf0] sm:$0xff]
      %v534 = vld [vmem:[%s512 + $0xf8] sm:$0xff]
      %v535 = vld [vmem:[%s512 + $0x108] sm:$0xff]
      %v536 = vld [vmem:[%s512 + $0x110] sm:$0xff]
      %v537 = vld [vmem:[%s512 + $0x120] sm:$0xff]
      %v538 = vld [vmem:[%s512 + $0x128] sm:$0xff]
      %v539 = vld [vmem:[%s512 + $0x138] sm:$0xff]
      %v540 = vld [vmem:[%s512 + $0x140] sm:$0xff]
      %v541 = vld [vmem:[%s512 + $0x150] sm:$0xff]
      %v542 = vld [vmem:[%s512 + $0x158] sm:$0xff]
      %v543 = vld [vmem:[%s512 + $0x168] sm:$0xff]
      %v544 = vld [vmem:[%s512 + $0x170] sm:$0xff]
      %v545 = vld [vmem:[%s512 + $0x1] sm:$0xff]
      %v546 = vld [vmem:[%s512 + $0x9] sm:$0xff]
      %v547 = vld [vmem:[%s512 + $0x19] sm:$0xff]
      %v548 = vld [vmem:[%s512 + $0x21] sm:$0xff]
      %v549 = vld [vmem:[%s512 + $0x31] sm:$0xff]
      %v550 = vld [vmem:[%s512 + $0x39] sm:$0xff]
      %v551 = vld [vmem:[%s512 + $0x49] sm:$0xff]
      %v552 = vld [vmem:[%s512 + $0x51] sm:$0xff]
      %v553 = vld [vmem:[%s512 + $0x61] sm:$0xff]
      %v554 = vld [vmem:[%s512 + $0x69] sm:$0xff]
      %v555 = vld [vmem:[%s512 + $0x79] sm:$0xff]
      %v556 = vld [vmem:[%s512 + $0x81] sm:$0xff]
      %v557 = vld [vmem:[%s512 + $0x91] sm:$0xff]
      %v558 = vld [vmem:[%s512 + $0x99] sm:$0xff]
      %v559 = vld [vmem:[%s512 + $0xa9] sm:$0xff]
      %v560 = vld [vmem:[%s512 + $0xb1] sm:$0xff]
      %v561 = vld [vmem:[%s512 + $0xc1] sm:$0xff]
      %v562 = vld [vmem:[%s512 + $0xc9] sm:$0xff]
      %v563 = vld [vmem:[%s512 + $0xd9] sm:$0xff]
      %v564 = vld [vmem:[%s512 + $0xe1] sm:$0xff]
      %v565 = vld [vmem:[%s512 + $0xf1] sm:$0xff]
      %v566 = vld [vmem:[%s512 + $0xf9] sm:$0xff]
      %v567 = vld [vmem:[%s512 + $0x109] sm:$0xff]
      %v568 = vld [vmem:[%s512 + $0x111] sm:$0xff]
      %v569 = vld [vmem:[%s512 + $0x121] sm:$0xff]
      %v570 = vld [vmem:[%s512 + $0x129] sm:$0xff]
      %v571 = vld [vmem:[%s512 + $0x139] sm:$0xff]
      %v572 = vld [vmem:[%s512 + $0x141] sm:$0xff]
      %v573 = vld [vmem:[%s512 + $0x151] sm:$0xff]
      %v574 = vld [vmem:[%s512 + $0x159] sm:$0xff]
      %v575 = vld [vmem:[%s512 + $0x169] sm:$0xff]
      %v576 = vld [vmem:[%s512 + $0x171] sm:$0xff]
      %v577 = vld [vmem:[%s512 + $0x2] sm:$0xff]
      %v578 = vld [vmem:[%s512 + $0xa] sm:$0xff]
      %v579 = vld [vmem:[%s512 + $0x1a] sm:$0xff]
      %v580 = vld [vmem:[%s512 + $0x22] sm:$0xff]
      %v581 = vld [vmem:[%s512 + $0x32] sm:$0xff]
      %v582 = vld [vmem:[%s512 + $0x3a] sm:$0xff]
      %v583 = vld [vmem:[%s512 + $0x4a] sm:$0xff]
      %v584 = vld [vmem:[%s512 + $0x52] sm:$0xff]
      %v585 = vld [vmem:[%s512 + $0x62] sm:$0xff]
      %v586 = vld [vmem:[%s512 + $0x6a] sm:$0xff]
      %v587 = vld [vmem:[%s512 + $0x7a] sm:$0xff]
      %v588 = vld [vmem:[%s512 + $0x82] sm:$0xff]
      %v589 = vld [vmem:[%s512 + $0x92] sm:$0xff]
      %v590 = vld [vmem:[%s512 + $0x9a] sm:$0xff]
      %v591 = vld [vmem:[%s512 + $0xaa] sm:$0xff]
      %v592 = vld [vmem:[%s512 + $0xb2] sm:$0xff]
      %v593 = vld [vmem:[%s512 + $0xc2] sm:$0xff]
      %v594 = vld [vmem:[%s512 + $0xca] sm:$0xff]
      %v595 = vld [vmem:[%s512 + $0xda] sm:$0xff]
      %v596 = vld [vmem:[%s512 + $0xe2] sm:$0xff]
      %v597 = vld [vmem:[%s512 + $0xf2] sm:$0xff]
      %v598 = vld [vmem:[%s512 + $0xfa] sm:$0xff]
      %v599 = vld [vmem:[%s512 + $0x10a] sm:$0xff]
      %v600 = vld [vmem:[%s512 + $0x112] sm:$0xff]
      %v601 = vld [vmem:[%s512 + $0x122] sm:$0xff]
      %v602 = vld [vmem:[%s512 + $0x12a] sm:$0xff]
      %v603 = vld [vmem:[%s512 + $0x13a] sm:$0xff]
      %v604 = vld [vmem:[%s512 + $0x142] sm:$0xff]
      %v605 = vld [vmem:[%s512 + $0x152] sm:$0xff]
      %v606 = vld [vmem:[%s512 + $0x15a] sm:$0xff]
      %v607 = vld [vmem:[%s512 + $0x16a] sm:$0xff]
      %v608 = vld [vmem:[%s512 + $0x172] sm:$0xff]
      %641 = vrot.lane.b32.xlu0 %v352, 8
      %v642 = vpop.permute.xlu0 %641
      %643 = vrot.lane.b32.xlu0 %v353, 8
      %v644 = vpop.permute.xlu0 %643
      %645 = vrot.lane.b32.xlu0 %v354, 8
      %v646 = vpop.permute.xlu0 %645
      %647 = vrot.lane.b32.xlu0 %v355, 8
      %v648 = vpop.permute.xlu0 %647
      %649 = vrot.lane.b32.xlu0 %v356, 8
      %v650 = vpop.permute.xlu0 %649
      %651 = vrot.lane.b32.xlu0 %v357, 8
      %v652 = vpop.permute.xlu0 %651
      %653 = vrot.lane.b32.xlu0 %v358, 8
      %v654 = vpop.permute.xlu0 %653
      %655 = vrot.lane.b32.xlu0 %v359, 8
      %v656 = vpop.permute.xlu0 %655
      %657 = vrot.lane.b32.xlu0 %v360, 8
      %v658 = vpop.permute.xlu0 %657
      %659 = vrot.lane.b32.xlu0 %v361, 8
      %v660 = vpop.permute.xlu0 %659
      %661 = vrot.lane.b32.xlu0 %v362, 8
      %v662 = vpop.permute.xlu0 %661
      %663 = vrot.lane.b32.xlu0 %v363, 8
      %v664 = vpop.permute.xlu0 %663
      %665 = vrot.lane.b32.xlu0 %v364, 8
      %v666 = vpop.permute.xlu0 %665
      %667 = vrot.lane.b32.xlu0 %v365, 8
      %v668 = vpop.permute.xlu0 %667
      %669 = vrot.lane.b32.xlu0 %v366, 8
      %v670 = vpop.permute.xlu0 %669
      %671 = vrot.lane.b32.xlu0 %v367, 8
      %v672 = vpop.permute.xlu0 %671
      %673 = vrot.lane.b32.xlu0 %v368, 8
      %v674 = vpop.permute.xlu0 %673
      %675 = vrot.lane.b32.xlu0 %v369, 8
      %v676 = vpop.permute.xlu0 %675
      %677 = vrot.lane.b32.xlu0 %v370, 8
      %v678 = vpop.permute.xlu0 %677
      %679 = vrot.lane.b32.xlu0 %v371, 8
      %v680 = vpop.permute.xlu0 %679
      %681 = vrot.lane.b32.xlu0 %v372, 8
      %v682 = vpop.permute.xlu0 %681
      %683 = vrot.lane.b32.xlu0 %v373, 8
      %v684 = vpop.permute.xlu0 %683
      %685 = vrot.lane.b32.xlu0 %v374, 8
      %v686 = vpop.permute.xlu0 %685
      %687 = vrot.lane.b32.xlu0 %v375, 8
      %v688 = vpop.permute.xlu0 %687
      %689 = vrot.lane.b32.xlu0 %v376, 8
      %v690 = vpop.permute.xlu0 %689
      %691 = vrot.lane.b32.xlu0 %v377, 8
      %v692 = vpop.permute.xlu0 %691
      %693 = vrot.lane.b32.xlu0 %v378, 8
      %v694 = vpop.permute.xlu0 %693
      %695 = vrot.lane.b32.xlu0 %v379, 8
      %v696 = vpop.permute.xlu0 %695
      %697 = vrot.lane.b32.xlu0 %v380, 8
      %v698 = vpop.permute.xlu0 %697
      %699 = vrot.lane.b32.xlu0 %v381, 8
      %v700 = vpop.permute.xlu0 %699
      %701 = vrot.lane.b32.xlu0 %v382, 8
      %v702 = vpop.permute.xlu0 %701
      %703 = vrot.lane.b32.xlu0 %v383, 8
      %v704 = vpop.permute.xlu0 %703
      %769 = vrot.lane.b32.xlu0 %v384, 16
      %v770 = vpop.permute.xlu0 %769
      %771 = vrot.lane.b32.xlu0 %v385, 16
      %v772 = vpop.permute.xlu0 %771
      %773 = vrot.lane.b32.xlu0 %v386, 16
      %v774 = vpop.permute.xlu0 %773
      %775 = vrot.lane.b32.xlu0 %v387, 16
      %v776 = vpop.permute.xlu0 %775
      %777 = vrot.lane.b32.xlu0 %v388, 16
      %v778 = vpop.permute.xlu0 %777
      %779 = vrot.lane.b32.xlu0 %v389, 16
      %v780 = vpop.permute.xlu0 %779
      %781 = vrot.lane.b32.xlu0 %v390, 16
      %v782 = vpop.permute.xlu0 %781
      %783 = vrot.lane.b32.xlu0 %v391, 16
      %v784 = vpop.permute.xlu0 %783
      %785 = vrot.lane.b32.xlu0 %v392, 16
      %v786 = vpop.permute.xlu0 %785
      %787 = vrot.lane.b32.xlu0 %v393, 16
      %v788 = vpop.permute.xlu0 %787
      %789 = vrot.lane.b32.xlu0 %v394, 16
      %v790 = vpop.permute.xlu0 %789
      %791 = vrot.lane.b32.xlu0 %v395, 16
      %v792 = vpop.permute.xlu0 %791
      %793 = vrot.lane.b32.xlu0 %v396, 16
      %v794 = vpop.permute.xlu0 %793
      %795 = vrot.lane.b32.xlu0 %v397, 16
      %v796 = vpop.permute.xlu0 %795
      %797 = vrot.lane.b32.xlu0 %v398, 16
      %v798 = vpop.permute.xlu0 %797
      %799 = vrot.lane.b32.xlu0 %v399, 16
      %v800 = vpop.permute.xlu0 %799
      %801 = vrot.lane.b32.xlu0 %v400, 16
      %v802 = vpop.permute.xlu0 %801
      %803 = vrot.lane.b32.xlu0 %v401, 16
      %v804 = vpop.permute.xlu0 %803
      %805 = vrot.lane.b32.xlu0 %v402, 16
      %v806 = vpop.permute.xlu0 %805
      %807 = vrot.lane.b32.xlu0 %v403, 16
      %v808 = vpop.permute.xlu0 %807
      %809 = vrot.lane.b32.xlu0 %v404, 16
      %v810 = vpop.permute.xlu0 %809
      %811 = vrot.lane.b32.xlu0 %v405, 16
      %v812 = vpop.permute.xlu0 %811
      %813 = vrot.lane.b32.xlu0 %v406, 16
      %v814 = vpop.permute.xlu0 %813
      %815 = vrot.lane.b32.xlu0 %v407, 16
      %v816 = vpop.permute.xlu0 %815
      %817 = vrot.lane.b32.xlu0 %v408, 16
      %v818 = vpop.permute.xlu0 %817
      %819 = vrot.lane.b32.xlu0 %v409, 16
      %v820 = vpop.permute.xlu0 %819
      %821 = vrot.lane.b32.xlu0 %v410, 16
      %v822 = vpop.permute.xlu0 %821
      %823 = vrot.lane.b32.xlu0 %v411, 16
      %v824 = vpop.permute.xlu0 %823
      %825 = vrot.lane.b32.xlu0 %v412, 16
      %v826 = vpop.permute.xlu0 %825
      %827 = vrot.lane.b32.xlu0 %v413, 16
      %v828 = vpop.permute.xlu0 %827
      %829 = vrot.lane.b32.xlu0 %v414, 16
      %v830 = vpop.permute.xlu0 %829
      %831 = vrot.lane.b32.xlu0 %v415, 16
      %v832 = vpop.permute.xlu0 %831
      %897 = vrot.lane.b32.xlu0 %v416, 24
      %v898 = vpop.permute.xlu0 %897
      %899 = vrot.lane.b32.xlu0 %v417, 24
      %v900 = vpop.permute.xlu0 %899
      %901 = vrot.lane.b32.xlu0 %v418, 24
      %v902 = vpop.permute.xlu0 %901
      %903 = vrot.lane.b32.xlu0 %v419, 24
      %v904 = vpop.permute.xlu0 %903
      %905 = vrot.lane.b32.xlu0 %v420, 24
      %v906 = vpop.permute.xlu0 %905
      %907 = vrot.lane.b32.xlu0 %v421, 24
      %v908 = vpop.permute.xlu0 %907
      %909 = vrot.lane.b32.xlu0 %v422, 24
      %v910 = vpop.permute.xlu0 %909
      %911 = vrot.lane.b32.xlu0 %v423, 24
      %v912 = vpop.permute.xlu0 %911
      %913 = vrot.lane.b32.xlu0 %v424, 24
      %v914 = vpop.permute.xlu0 %913
      %915 = vrot.lane.b32.xlu0 %v425, 24
      %v916 = vpop.permute.xlu0 %915
      %917 = vrot.lane.b32.xlu0 %v426, 24
      %v918 = vpop.permute.xlu0 %917
      %919 = vrot.lane.b32.xlu0 %v427, 24
      %v920 = vpop.permute.xlu0 %919
      %921 = vrot.lane.b32.xlu0 %v428, 24
      %v922 = vpop.permute.xlu0 %921
      %923 = vrot.lane.b32.xlu0 %v429, 24
      %v924 = vpop.permute.xlu0 %923
      %925 = vrot.lane.b32.xlu0 %v430, 24
      %v926 = vpop.permute.xlu0 %925
      %927 = vrot.lane.b32.xlu0 %v431, 24
      %v928 = vpop.permute.xlu0 %927
      %929 = vrot.lane.b32.xlu0 %v432, 24
      %v930 = vpop.permute.xlu0 %929
      %931 = vrot.lane.b32.xlu0 %v433, 24
      %v932 = vpop.permute.xlu0 %931
      %933 = vrot.lane.b32.xlu0 %v434, 24
      %v934 = vpop.permute.xlu0 %933
      %935 = vrot.lane.b32.xlu0 %v435, 24
      %v936 = vpop.permute.xlu0 %935
      %937 = vrot.lane.b32.xlu0 %v436, 24
      %v938 = vpop.permute.xlu0 %937
      %939 = vrot.lane.b32.xlu0 %v437, 24
      %v940 = vpop.permute.xlu0 %939
      %941 = vrot.lane.b32.xlu0 %v438, 24
      %v942 = vpop.permute.xlu0 %941
      %943 = vrot.lane.b32.xlu0 %v439, 24
      %v944 = vpop.permute.xlu0 %943
      %945 = vrot.lane.b32.xlu0 %v440, 24
      %v946 = vpop.permute.xlu0 %945
      %947 = vrot.lane.b32.xlu0 %v441, 24
      %v948 = vpop.permute.xlu0 %947
      %949 = vrot.lane.b32.xlu0 %v442, 24
      %v950 = vpop.permute.xlu0 %949
      %951 = vrot.lane.b32.xlu0 %v443, 24
      %v952 = vpop.permute.xlu0 %951
      %953 = vrot.lane.b32.xlu0 %v444, 24
      %v954 = vpop.permute.xlu0 %953
      %955 = vrot.lane.b32.xlu0 %v445, 24
      %v956 = vpop.permute.xlu0 %955
      %957 = vrot.lane.b32.xlu0 %v446, 24
      %v958 = vpop.permute.xlu0 %957
      %959 = vrot.lane.b32.xlu0 %v447, 24
      %v960 = vpop.permute.xlu0 %959
      %1025 = vrot.lane.b32.xlu0 %v448, 32
      %v1026 = vpop.permute.xlu0 %1025
      %1027 = vrot.lane.b32.xlu0 %v449, 32
      %v1028 = vpop.permute.xlu0 %1027
      %1029 = vrot.lane.b32.xlu0 %v450, 32
      %v1030 = vpop.permute.xlu0 %1029
      %1031 = vrot.lane.b32.xlu0 %v451, 32
      %v1032 = vpop.permute.xlu0 %1031
      %1033 = vrot.lane.b32.xlu0 %v452, 32
      %v1034 = vpop.permute.xlu0 %1033
      %1035 = vrot.lane.b32.xlu0 %v453, 32
      %v1036 = vpop.permute.xlu0 %1035
      %1037 = vrot.lane.b32.xlu0 %v454, 32
      %v1038 = vpop.permute.xlu0 %1037
      %1039 = vrot.lane.b32.xlu0 %v455, 32
      %v1040 = vpop.permute.xlu0 %1039
      %1041 = vrot.lane.b32.xlu0 %v456, 32
      %v1042 = vpop.permute.xlu0 %1041
      %1043 = vrot.lane.b32.xlu0 %v457, 32
      %v1044 = vpop.permute.xlu0 %1043
      %1045 = vrot.lane.b32.xlu0 %v458, 32
      %v1046 = vpop.permute.xlu0 %1045
      %1047 = vrot.lane.b32.xlu0 %v459, 32
      %v1048 = vpop.permute.xlu0 %1047
      %1049 = vrot.lane.b32.xlu0 %v460, 32
      %v1050 = vpop.permute.xlu0 %1049
      %1051 = vrot.lane.b32.xlu0 %v461, 32
      %v1052 = vpop.permute.xlu0 %1051
      %1053 = vrot.lane.b32.xlu0 %v462, 32
      %v1054 = vpop.permute.xlu0 %1053
      %1055 = vrot.lane.b32.xlu0 %v463, 32
      %v1056 = vpop.permute.xlu0 %1055
      %1057 = vrot.lane.b32.xlu0 %v464, 32
      %v1058 = vpop.permute.xlu0 %1057
      %1059 = vrot.lane.b32.xlu0 %v465, 32
      %v1060 = vpop.permute.xlu0 %1059
      %1061 = vrot.lane.b32.xlu0 %v466, 32
      %v1062 = vpop.permute.xlu0 %1061
      %1063 = vrot.lane.b32.xlu0 %v467, 32
      %v1064 = vpop.permute.xlu0 %1063
      %1065 = vrot.lane.b32.xlu0 %v468, 32
      %v1066 = vpop.permute.xlu0 %1065
      %1067 = vrot.lane.b32.xlu0 %v469, 32
      %v1068 = vpop.permute.xlu0 %1067
      %1069 = vrot.lane.b32.xlu0 %v470, 32
      %v1070 = vpop.permute.xlu0 %1069
      %1071 = vrot.lane.b32.xlu0 %v471, 32
      %v1072 = vpop.permute.xlu0 %1071
      %1073 = vrot.lane.b32.xlu0 %v472, 32
      %v1074 = vpop.permute.xlu0 %1073
      %1075 = vrot.lane.b32.xlu0 %v473, 32
      %v1076 = vpop.permute.xlu0 %1075
      %1077 = vrot.lane.b32.xlu0 %v474, 32
      %v1078 = vpop.permute.xlu0 %1077
      %1079 = vrot.lane.b32.xlu0 %v475, 32
      %v1080 = vpop.permute.xlu0 %1079
      %1081 = vrot.lane.b32.xlu0 %v476, 32
      %v1082 = vpop.permute.xlu0 %1081
      %1083 = vrot.lane.b32.xlu0 %v477, 32
      %v1084 = vpop.permute.xlu0 %1083
      %1085 = vrot.lane.b32.xlu0 %v478, 32
      %v1086 = vpop.permute.xlu0 %1085
      %1087 = vrot.lane.b32.xlu0 %v479, 32
      %v1088 = vpop.permute.xlu0 %1087
      %1153 = vrot.lane.b32.xlu0 %v480, 40
      %v1154 = vpop.permute.xlu0 %1153
      %1155 = vrot.lane.b32.xlu0 %v481, 40
      %v1156 = vpop.permute.xlu0 %1155
      %1157 = vrot.lane.b32.xlu0 %v482, 40
      %v1158 = vpop.permute.xlu0 %1157
      %1159 = vrot.lane.b32.xlu0 %v483, 40
      %v1160 = vpop.permute.xlu0 %1159
      %1161 = vrot.lane.b32.xlu0 %v484, 40
      %v1162 = vpop.permute.xlu0 %1161
      %1163 = vrot.lane.b32.xlu0 %v485, 40
      %v1164 = vpop.permute.xlu0 %1163
      %1165 = vrot.lane.b32.xlu0 %v486, 40
      %v1166 = vpop.permute.xlu0 %1165
      %1167 = vrot.lane.b32.xlu0 %v487, 40
      %v1168 = vpop.permute.xlu0 %1167
      %1169 = vrot.lane.b32.xlu0 %v488, 40
      %v1170 = vpop.permute.xlu0 %1169
      %1171 = vrot.lane.b32.xlu0 %v489, 40
      %v1172 = vpop.permute.xlu0 %1171
      %1173 = vrot.lane.b32.xlu0 %v490, 40
      %v1174 = vpop.permute.xlu0 %1173
      %1175 = vrot.lane.b32.xlu0 %v491, 40
      %v1176 = vpop.permute.xlu0 %1175
      %1177 = vrot.lane.b32.xlu0 %v492, 40
      %v1178 = vpop.permute.xlu0 %1177
      %1179 = vrot.lane.b32.xlu0 %v493, 40
      %v1180 = vpop.permute.xlu0 %1179
      %1181 = vrot.lane.b32.xlu0 %v494, 40
      %v1182 = vpop.permute.xlu0 %1181
      %1183 = vrot.lane.b32.xlu0 %v495, 40
      %v1184 = vpop.permute.xlu0 %1183
      %1185 = vrot.lane.b32.xlu0 %v496, 40
      %v1186 = vpop.permute.xlu0 %1185
      %1187 = vrot.lane.b32.xlu0 %v497, 40
      %v1188 = vpop.permute.xlu0 %1187
      %1189 = vrot.lane.b32.xlu0 %v498, 40
      %v1190 = vpop.permute.xlu0 %1189
      %1191 = vrot.lane.b32.xlu0 %v499, 40
      %v1192 = vpop.permute.xlu0 %1191
      %1193 = vrot.lane.b32.xlu0 %v500, 40
      %v1194 = vpop.permute.xlu0 %1193
      %1195 = vrot.lane.b32.xlu0 %v501, 40
      %v1196 = vpop.permute.xlu0 %1195
      %1197 = vrot.lane.b32.xlu0 %v502, 40
      %v1198 = vpop.permute.xlu0 %1197
      %1199 = vrot.lane.b32.xlu0 %v503, 40
      %v1200 = vpop.permute.xlu0 %1199
      %1201 = vrot.lane.b32.xlu0 %v504, 40
      %v1202 = vpop.permute.xlu0 %1201
      %1203 = vrot.lane.b32.xlu0 %v505, 40
      %v1204 = vpop.permute.xlu0 %1203
      %1205 = vrot.lane.b32.xlu0 %v506, 40
      %v1206 = vpop.permute.xlu0 %1205
      %1207 = vrot.lane.b32.xlu0 %v507, 40
      %v1208 = vpop.permute.xlu0 %1207
      %1209 = vrot.lane.b32.xlu0 %v508, 40
      %v1210 = vpop.permute.xlu0 %1209
      %1211 = vrot.lane.b32.xlu0 %v509, 40
      %v1212 = vpop.permute.xlu0 %1211
      %1213 = vrot.lane.b32.xlu0 %v510, 40
      %v1214 = vpop.permute.xlu0 %1213
      %1215 = vrot.lane.b32.xlu0 %v511, 40
      %v1216 = vpop.permute.xlu0 %1215
      %1281 = vrot.lane.b32.xlu0 %v513, 48
      %v1282 = vpop.permute.xlu0 %1281
      %1283 = vrot.lane.b32.xlu0 %v514, 48
      %v1284 = vpop.permute.xlu0 %1283
      %1285 = vrot.lane.b32.xlu0 %v515, 48
      %v1286 = vpop.permute.xlu0 %1285
      %1287 = vrot.lane.b32.xlu0 %v516, 48
      %v1288 = vpop.permute.xlu0 %1287
      %1289 = vrot.lane.b32.xlu0 %v517, 48
      %v1290 = vpop.permute.xlu0 %1289
      %1291 = vrot.lane.b32.xlu0 %v518, 48
      %v1292 = vpop.permute.xlu0 %1291
      %1293 = vrot.lane.b32.xlu0 %v519, 48
      %v1294 = vpop.permute.xlu0 %1293
      %1295 = vrot.lane.b32.xlu0 %v520, 48
      %v1296 = vpop.permute.xlu0 %1295
      %1297 = vrot.lane.b32.xlu0 %v521, 48
      %v1298 = vpop.permute.xlu0 %1297
      %1299 = vrot.lane.b32.xlu0 %v522, 48
      %v1300 = vpop.permute.xlu0 %1299
      %1301 = vrot.lane.b32.xlu0 %v523, 48
      %v1302 = vpop.permute.xlu0 %1301
      %1303 = vrot.lane.b32.xlu0 %v524, 48
      %v1304 = vpop.permute.xlu0 %1303
      %1305 = vrot.lane.b32.xlu0 %v525, 48
      %v1306 = vpop.permute.xlu0 %1305
      %1307 = vrot.lane.b32.xlu0 %v526, 48
      %v1308 = vpop.permute.xlu0 %1307
      %1309 = vrot.lane.b32.xlu0 %v527, 48
      %v1310 = vpop.permute.xlu0 %1309
      %1311 = vrot.lane.b32.xlu0 %v528, 48
      %v1312 = vpop.permute.xlu0 %1311
      %1313 = vrot.lane.b32.xlu0 %v529, 48
      %v1314 = vpop.permute.xlu0 %1313
      %1315 = vrot.lane.b32.xlu0 %v530, 48
      %v1316 = vpop.permute.xlu0 %1315
      %1317 = vrot.lane.b32.xlu0 %v531, 48
      %v1318 = vpop.permute.xlu0 %1317
      %1319 = vrot.lane.b32.xlu0 %v532, 48
      %v1320 = vpop.permute.xlu0 %1319
      %1321 = vrot.lane.b32.xlu0 %v533, 48
      %v1322 = vpop.permute.xlu0 %1321
      %1323 = vrot.lane.b32.xlu0 %v534, 48
      %v1324 = vpop.permute.xlu0 %1323
      %1325 = vrot.lane.b32.xlu0 %v535, 48
      %v1326 = vpop.permute.xlu0 %1325
      %1327 = vrot.lane.b32.xlu0 %v536, 48
      %v1328 = vpop.permute.xlu0 %1327
      %1329 = vrot.lane.b32.xlu0 %v537, 48
      %v1330 = vpop.permute.xlu0 %1329
      %1331 = vrot.lane.b32.xlu0 %v538, 48
      %v1332 = vpop.permute.xlu0 %1331
      %1333 = vrot.lane.b32.xlu0 %v539, 48
      %v1334 = vpop.permute.xlu0 %1333
      %1335 = vrot.lane.b32.xlu0 %v540, 48
      %v1336 = vpop.permute.xlu0 %1335
      %1337 = vrot.lane.b32.xlu0 %v541, 48
      %v1338 = vpop.permute.xlu0 %1337
      %1339 = vrot.lane.b32.xlu0 %v542, 48
      %v1340 = vpop.permute.xlu0 %1339
      %1341 = vrot.lane.b32.xlu0 %v543, 48
      %v1342 = vpop.permute.xlu0 %1341
      %1343 = vrot.lane.b32.xlu0 %v544, 48
      %v1344 = vpop.permute.xlu0 %1343
      %1409 = vrot.lane.b32.xlu0 %v545, 56
      %v1410 = vpop.permute.xlu0 %1409
      %1411 = vrot.lane.b32.xlu0 %v546, 56
      %v1412 = vpop.permute.xlu0 %1411
      %1413 = vrot.lane.b32.xlu0 %v547, 56
      %v1414 = vpop.permute.xlu0 %1413
      %1415 = vrot.lane.b32.xlu0 %v548, 56
      %v1416 = vpop.permute.xlu0 %1415
      %1417 = vrot.lane.b32.xlu0 %v549, 56
      %v1418 = vpop.permute.xlu0 %1417
      %1419 = vrot.lane.b32.xlu0 %v550, 56
      %v1420 = vpop.permute.xlu0 %1419
      %1421 = vrot.lane.b32.xlu0 %v551, 56
      %v1422 = vpop.permute.xlu0 %1421
      %1423 = vrot.lane.b32.xlu0 %v552, 56
      %v1424 = vpop.permute.xlu0 %1423
      %1425 = vrot.lane.b32.xlu0 %v553, 56
      %v1426 = vpop.permute.xlu0 %1425
      %1427 = vrot.lane.b32.xlu0 %v554, 56
      %v1428 = vpop.permute.xlu0 %1427
      %1429 = vrot.lane.b32.xlu0 %v555, 56
      %v1430 = vpop.permute.xlu0 %1429
      %1431 = vrot.lane.b32.xlu0 %v556, 56
      %v1432 = vpop.permute.xlu0 %1431
      %1433 = vrot.lane.b32.xlu0 %v557, 56
      %v1434 = vpop.permute.xlu0 %1433
      %1435 = vrot.lane.b32.xlu0 %v558, 56
      %v1436 = vpop.permute.xlu0 %1435
      %1437 = vrot.lane.b32.xlu0 %v559, 56
      %v1438 = vpop.permute.xlu0 %1437
      %1439 = vrot.lane.b32.xlu0 %v560, 56
      %v1440 = vpop.permute.xlu0 %1439
      %1441 = vrot.lane.b32.xlu0 %v561, 56
      %v1442 = vpop.permute.xlu0 %1441
      %1443 = vrot.lane.b32.xlu0 %v562, 56
      %v1444 = vpop.permute.xlu0 %1443
      %1445 = vrot.lane.b32.xlu0 %v563, 56
      %v1446 = vpop.permute.xlu0 %1445
      %1447 = vrot.lane.b32.xlu0 %v564, 56
      %v1448 = vpop.permute.xlu0 %1447
      %1449 = vrot.lane.b32.xlu0 %v565, 56
      %v1450 = vpop.permute.xlu0 %1449
      %1451 = vrot.lane.b32.xlu0 %v566, 56
      %v1452 = vpop.permute.xlu0 %1451
      %1453 = vrot.lane.b32.xlu0 %v567, 56
      %v1454 = vpop.permute.xlu0 %1453
      %1455 = vrot.lane.b32.xlu0 %v568, 56
      %v1456 = vpop.permute.xlu0 %1455
      %1457 = vrot.lane.b32.xlu0 %v569, 56
      %v1458 = vpop.permute.xlu0 %1457
      %1459 = vrot.lane.b32.xlu0 %v570, 56
      %v1460 = vpop.permute.xlu0 %1459
      %1461 = vrot.lane.b32.xlu0 %v571, 56
      %v1462 = vpop.permute.xlu0 %1461
      %1463 = vrot.lane.b32.xlu0 %v572, 56
      %v1464 = vpop.permute.xlu0 %1463
      %1465 = vrot.lane.b32.xlu0 %v573, 56
      %v1466 = vpop.permute.xlu0 %1465
      %1467 = vrot.lane.b32.xlu0 %v574, 56
      %v1468 = vpop.permute.xlu0 %1467
      %1469 = vrot.lane.b32.xlu0 %v575, 56
      %v1470 = vpop.permute.xlu0 %1469
      %1471 = vrot.lane.b32.xlu0 %v576, 56
      %v1472 = vpop.permute.xlu0 %1471
      %1537 = vrot.lane.b32.xlu0 %v577, 64
      %v1538 = vpop.permute.xlu0 %1537
      %1539 = vrot.lane.b32.xlu0 %v578, 64
      %v1540 = vpop.permute.xlu0 %1539
      %1541 = vrot.lane.b32.xlu0 %v579, 64
      %v1542 = vpop.permute.xlu0 %1541
      %1543 = vrot.lane.b32.xlu0 %v580, 64
      %v1544 = vpop.permute.xlu0 %1543
      %1545 = vrot.lane.b32.xlu0 %v581, 64
      %v1546 = vpop.permute.xlu0 %1545
      %1547 = vrot.lane.b32.xlu0 %v582, 64
      %v1548 = vpop.permute.xlu0 %1547
      %1549 = vrot.lane.b32.xlu0 %v583, 64
      %v1550 = vpop.permute.xlu0 %1549
      %1551 = vrot.lane.b32.xlu0 %v584, 64
      %v1552 = vpop.permute.xlu0 %1551
      %1553 = vrot.lane.b32.xlu0 %v585, 64
      %v1554 = vpop.permute.xlu0 %1553
      %1555 = vrot.lane.b32.xlu0 %v586, 64
      %v1556 = vpop.permute.xlu0 %1555
      %1557 = vrot.lane.b32.xlu0 %v587, 64
      %v1558 = vpop.permute.xlu0 %1557
      %1559 = vrot.lane.b32.xlu0 %v588, 64
      %v1560 = vpop.permute.xlu0 %1559
      %1561 = vrot.lane.b32.xlu0 %v589, 64
      %v1562 = vpop.permute.xlu0 %1561
      %1563 = vrot.lane.b32.xlu0 %v590, 64
      %v1564 = vpop.permute.xlu0 %1563
      %1565 = vrot.lane.b32.xlu0 %v591, 64
      %v1566 = vpop.permute.xlu0 %1565
      %1567 = vrot.lane.b32.xlu0 %v592, 64
      %v1568 = vpop.permute.xlu0 %1567
      %1569 = vrot.lane.b32.xlu0 %v593, 64
      %v1570 = vpop.permute.xlu0 %1569
      %1571 = vrot.lane.b32.xlu0 %v594, 64
      %v1572 = vpop.permute.xlu0 %1571
      %1573 = vrot.lane.b32.xlu0 %v595, 64
      %v1574 = vpop.permute.xlu0 %1573
      %1575 = vrot.lane.b32.xlu0 %v596, 64
      %v1576 = vpop.permute.xlu0 %1575
      %1577 = vrot.lane.b32.xlu0 %v597, 64
      %v1578 = vpop.permute.xlu0 %1577
      %1579 = vrot.lane.b32.xlu0 %v598, 64
      %v1580 = vpop.permute.xlu0 %1579
      %1581 = vrot.lane.b32.xlu0 %v599, 64
      %v1582 = vpop.permute.xlu0 %1581
      %1583 = vrot.lane.b32.xlu0 %v600, 64
      %v1584 = vpop.permute.xlu0 %1583
      %1585 = vrot.lane.b32.xlu0 %v601, 64
      %v1586 = vpop.permute.xlu0 %1585
      %1587 = vrot.lane.b32.xlu0 %v602, 64
      %v1588 = vpop.permute.xlu0 %1587
      %1589 = vrot.lane.b32.xlu0 %v603, 64
      %v1590 = vpop.permute.xlu0 %1589
      %1591 = vrot.lane.b32.xlu0 %v604, 64
      %v1592 = vpop.permute.xlu0 %1591
      %1593 = vrot.lane.b32.xlu0 %v605, 64
      %v1594 = vpop.permute.xlu0 %1593
      %1595 = vrot.lane.b32.xlu0 %v606, 64
      %v1596 = vpop.permute.xlu0 %1595
      %1597 = vrot.lane.b32.xlu0 %v607, 64
      %v1598 = vpop.permute.xlu0 %1597
      %1599 = vrot.lane.b32.xlu0 %v608, 64
      %v1600 = vpop.permute.xlu0 %1599
      %v1633 = vsel %vm209, %v320, %v642
      %v1634 = vsel %vm209, %v321, %v644
      %v1635 = vsel %vm209, %v322, %v646
      %v1636 = vsel %vm209, %v323, %v648
      %v1637 = vsel %vm209, %v324, %v650
      %v1638 = vsel %vm209, %v325, %v652
      %v1639 = vsel %vm209, %v326, %v654
      %v1640 = vsel %vm209, %v327, %v656
      %v1641 = vsel %vm209, %v328, %v658
      %v1642 = vsel %vm209, %v329, %v660
      %v1643 = vsel %vm209, %v330, %v662
      %v1644 = vsel %vm209, %v331, %v664
      %v1645 = vsel %vm209, %v332, %v666
      %v1646 = vsel %vm209, %v333, %v668
      %v1647 = vsel %vm209, %v334, %v670
      %v1648 = vsel %vm209, %v335, %v672
      %v1649 = vsel %vm209, %v336, %v674
      %v1650 = vsel %vm209, %v337, %v676
      %v1651 = vsel %vm209, %v338, %v678
      %v1652 = vsel %vm209, %v339, %v680
      %v1653 = vsel %vm209, %v340, %v682
      %v1654 = vsel %vm209, %v341, %v684
      %v1655 = vsel %vm209, %v342, %v686
      %v1656 = vsel %vm209, %v343, %v688
      %v1657 = vsel %vm209, %v344, %v690
      %v1658 = vsel %vm209, %v345, %v692
      %v1659 = vsel %vm209, %v346, %v694
      %v1660 = vsel %vm209, %v347, %v696
      %v1661 = vsel %vm209, %v348, %v698
      %v1662 = vsel %vm209, %v349, %v700
      %v1663 = vsel %vm209, %v350, %v702
      %v1664 = vsel %vm209, %v351, %v704
      %vm1665 = vcmask 130048
      %v1666 = vsel %vm1665, %v1633, %v770
      %v1667 = vsel %vm1665, %v1634, %v772
      %v1668 = vsel %vm1665, %v1635, %v774
      %v1669 = vsel %vm1665, %v1636, %v776
      %v1670 = vsel %vm1665, %v1637, %v778
      %v1671 = vsel %vm1665, %v1638, %v780
      %v1672 = vsel %vm1665, %v1639, %v782
      %v1673 = vsel %vm1665, %v1640, %v784
      %v1674 = vsel %vm1665, %v1641, %v786
      %v1675 = vsel %vm1665, %v1642, %v788
      %v1676 = vsel %vm1665, %v1643, %v790
      %v1677 = vsel %vm1665, %v1644, %v792
      %v1678 = vsel %vm1665, %v1645, %v794
      %v1679 = vsel %vm1665, %v1646, %v796
      %v1680 = vsel %vm1665, %v1647, %v798
      %v1681 = vsel %vm1665, %v1648, %v800
      %v1682 = vsel %vm1665, %v1649, %v802
      %v1683 = vsel %vm1665, %v1650, %v804
      %v1684 = vsel %vm1665, %v1651, %v806
      %v1685 = vsel %vm1665, %v1652, %v808
      %v1686 = vsel %vm1665, %v1653, %v810
      %v1687 = vsel %vm1665, %v1654, %v812
      %v1688 = vsel %vm1665, %v1655, %v814
      %v1689 = vsel %vm1665, %v1656, %v816
      %v1690 = vsel %vm1665, %v1657, %v818
      %v1691 = vsel %vm1665, %v1658, %v820
      %v1692 = vsel %vm1665, %v1659, %v822
      %v1693 = vsel %vm1665, %v1660, %v824
      %v1694 = vsel %vm1665, %v1661, %v826
      %v1695 = vsel %vm1665, %v1662, %v828
      %v1696 = vsel %vm1665, %v1663, %v830
      %v1697 = vsel %vm1665, %v1664, %v832
      %vm1698 = vcmask 195584
      %v1699 = vsel %vm1698, %v1666, %v898
      %v1700 = vsel %vm1698, %v1667, %v900
      %v1701 = vsel %vm1698, %v1668, %v902
      %v1702 = vsel %vm1698, %v1669, %v904
      %v1703 = vsel %vm1698, %v1670, %v906
      %v1704 = vsel %vm1698, %v1671, %v908
      %v1705 = vsel %vm1698, %v1672, %v910
      %v1706 = vsel %vm1698, %v1673, %v912
      %v1707 = vsel %vm1698, %v1674, %v914
      %v1708 = vsel %vm1698, %v1675, %v916
      %v1709 = vsel %vm1698, %v1676, %v918
      %v1710 = vsel %vm1698, %v1677, %v920
      %v1711 = vsel %vm1698, %v1678, %v922
      %v1712 = vsel %vm1698, %v1679, %v924
      %v1713 = vsel %vm1698, %v1680, %v926
      %v1714 = vsel %vm1698, %v1681, %v928
      %v1715 = vsel %vm1698, %v1682, %v930
      %v1716 = vsel %vm1698, %v1683, %v932
      %v1717 = vsel %vm1698, %v1684, %v934
      %v1718 = vsel %vm1698, %v1685, %v936
      %v1719 = vsel %vm1698, %v1686, %v938
      %v1720 = vsel %vm1698, %v1687, %v940
      %v1721 = vsel %vm1698, %v1688, %v942
      %v1722 = vsel %vm1698, %v1689, %v944
      %v1723 = vsel %vm1698, %v1690, %v946
      %v1724 = vsel %vm1698, %v1691, %v948
      %v1725 = vsel %vm1698, %v1692, %v950
      %v1726 = vsel %vm1698, %v1693, %v952
      %v1727 = vsel %vm1698, %v1694, %v954
      %v1728 = vsel %vm1698, %v1695, %v956
      %v1729 = vsel %vm1698, %v1696, %v958
      %v1730 = vsel %vm1698, %v1697, %v960
      %vm1731 = vcmask 261120
      %v1732 = vsel %vm1731, %v1699, %v1026
      %v1733 = vsel %vm1731, %v1700, %v1028
      %v1734 = vsel %vm1731, %v1701, %v1030
      %v1735 = vsel %vm1731, %v1702, %v1032
      %v1736 = vsel %vm1731, %v1703, %v1034
      %v1737 = vsel %vm1731, %v1704, %v1036
      %v1738 = vsel %vm1731, %v1705, %v1038
      %v1739 = vsel %vm1731, %v1706, %v1040
      %v1740 = vsel %vm1731, %v1707, %v1042
      %v1741 = vsel %vm1731, %v1708, %v1044
      %v1742 = vsel %vm1731, %v1709, %v1046
      %v1743 = vsel %vm1731, %v1710, %v1048
      %v1744 = vsel %vm1731, %v1711, %v1050
      %v1745 = vsel %vm1731, %v1712, %v1052
      %v1746 = vsel %vm1731, %v1713, %v1054
      %v1747 = vsel %vm1731, %v1714, %v1056
      %v1748 = vsel %vm1731, %v1715, %v1058
      %v1749 = vsel %vm1731, %v1716, %v1060
      %v1750 = vsel %vm1731, %v1717, %v1062
      %v1751 = vsel %vm1731, %v1718, %v1064
      %v1752 = vsel %vm1731, %v1719, %v1066
      %v1753 = vsel %vm1731, %v1720, %v1068
      %v1754 = vsel %vm1731, %v1721, %v1070
      %v1755 = vsel %vm1731, %v1722, %v1072
      %v1756 = vsel %vm1731, %v1723, %v1074
      %v1757 = vsel %vm1731, %v1724, %v1076
      %v1758 = vsel %vm1731, %v1725, %v1078
      %v1759 = vsel %vm1731, %v1726, %v1080
      %v1760 = vsel %vm1731, %v1727, %v1082
      %v1761 = vsel %vm1731, %v1728, %v1084
      %v1762 = vsel %vm1731, %v1729, %v1086
      %v1763 = vsel %vm1731, %v1730, %v1088
      %vm1764 = vcmask 326656
      %v1765 = vsel %vm1764, %v1732, %v1154
      %v1766 = vsel %vm1764, %v1733, %v1156
      %v1767 = vsel %vm1764, %v1734, %v1158
      %v1768 = vsel %vm1764, %v1735, %v1160
      %v1769 = vsel %vm1764, %v1736, %v1162
      %v1770 = vsel %vm1764, %v1737, %v1164
      %v1771 = vsel %vm1764, %v1738, %v1166
      %v1772 = vsel %vm1764, %v1739, %v1168
      %v1773 = vsel %vm1764, %v1740, %v1170
      %v1774 = vsel %vm1764, %v1741, %v1172
      %v1775 = vsel %vm1764, %v1742, %v1174
      %v1776 = vsel %vm1764, %v1743, %v1176
      %v1777 = vsel %vm1764, %v1744, %v1178
      %v1778 = vsel %vm1764, %v1745, %v1180
      %v1779 = vsel %vm1764, %v1746, %v1182
      %v1780 = vsel %vm1764, %v1747, %v1184
      %v1781 = vsel %vm1764, %v1748, %v1186
      %v1782 = vsel %vm1764, %v1749, %v1188
      %v1783 = vsel %vm1764, %v1750, %v1190
      %v1784 = vsel %vm1764, %v1751, %v1192
      %v1785 = vsel %vm1764, %v1752, %v1194
      %v1786 = vsel %vm1764, %v1753, %v1196
      %v1787 = vsel %vm1764, %v1754, %v1198
      %v1788 = vsel %vm1764, %v1755, %v1200
      %v1789 = vsel %vm1764, %v1756, %v1202
      %v1790 = vsel %vm1764, %v1757, %v1204
      %v1791 = vsel %vm1764, %v1758, %v1206
      %v1792 = vsel %vm1764, %v1759, %v1208
      %v1793 = vsel %vm1764, %v1760, %v1210
      %v1794 = vsel %vm1764, %v1761, %v1212
      %v1795 = vsel %vm1764, %v1762, %v1214
      %v1796 = vsel %vm1764, %v1763, %v1216
      %vm1797 = vcmask 392192
      %v1798 = vsel %vm1797, %v1765, %v1282
      %v1799 = vsel %vm1797, %v1766, %v1284
      %v1800 = vsel %vm1797, %v1767, %v1286
      %v1801 = vsel %vm1797, %v1768, %v1288
      %v1802 = vsel %vm1797, %v1769, %v1290
      %v1803 = vsel %vm1797, %v1770, %v1292
      %v1804 = vsel %vm1797, %v1771, %v1294
      %v1805 = vsel %vm1797, %v1772, %v1296
      %v1806 = vsel %vm1797, %v1773, %v1298
      %v1807 = vsel %vm1797, %v1774, %v1300
      %v1808 = vsel %vm1797, %v1775, %v1302
      %v1809 = vsel %vm1797, %v1776, %v1304
      %v1810 = vsel %vm1797, %v1777, %v1306
      %v1811 = vsel %vm1797, %v1778, %v1308
      %v1812 = vsel %vm1797, %v1779, %v1310
      %v1813 = vsel %vm1797, %v1780, %v1312
      %v1814 = vsel %vm1797, %v1781, %v1314
      %v1815 = vsel %vm1797, %v1782, %v1316
      %v1816 = vsel %vm1797, %v1783, %v1318
      %v1817 = vsel %vm1797, %v1784, %v1320
      %v1818 = vsel %vm1797, %v1785, %v1322
      %v1819 = vsel %vm1797, %v1786, %v1324
      %v1820 = vsel %vm1797, %v1787, %v1326
      %v1821 = vsel %vm1797, %v1788, %v1328
      %v1822 = vsel %vm1797, %v1789, %v1330
      %v1823 = vsel %vm1797, %v1790, %v1332
      %v1824 = vsel %vm1797, %v1791, %v1334
      %v1825 = vsel %vm1797, %v1792, %v1336
      %v1826 = vsel %vm1797, %v1793, %v1338
      %v1827 = vsel %vm1797, %v1794, %v1340
      %v1828 = vsel %vm1797, %v1795, %v1342
      %v1829 = vsel %vm1797, %v1796, %v1344
      %vm1830 = vcmask 457728
      %v1831 = vsel %vm1830, %v1798, %v1410
      %v1832 = vsel %vm1830, %v1799, %v1412
      %v1833 = vsel %vm1830, %v1800, %v1414
      %v1834 = vsel %vm1830, %v1801, %v1416
      %v1835 = vsel %vm1830, %v1802, %v1418
      %v1836 = vsel %vm1830, %v1803, %v1420
      %v1837 = vsel %vm1830, %v1804, %v1422
      %v1838 = vsel %vm1830, %v1805, %v1424
      %v1839 = vsel %vm1830, %v1806, %v1426
      %v1840 = vsel %vm1830, %v1807, %v1428
      %v1841 = vsel %vm1830, %v1808, %v1430
      %v1842 = vsel %vm1830, %v1809, %v1432
      %v1843 = vsel %vm1830, %v1810, %v1434
      %v1844 = vsel %vm1830, %v1811, %v1436
      %v1845 = vsel %vm1830, %v1812, %v1438
      %v1846 = vsel %vm1830, %v1813, %v1440
      %v1847 = vsel %vm1830, %v1814, %v1442
      %v1848 = vsel %vm1830, %v1815, %v1444
      %v1849 = vsel %vm1830, %v1816, %v1446
      %v1850 = vsel %vm1830, %v1817, %v1448
      %v1851 = vsel %vm1830, %v1818, %v1450
      %v1852 = vsel %vm1830, %v1819, %v1452
      %v1853 = vsel %vm1830, %v1820, %v1454
      %v1854 = vsel %vm1830, %v1821, %v1456
      %v1855 = vsel %vm1830, %v1822, %v1458
      %v1856 = vsel %vm1830, %v1823, %v1460
      %v1857 = vsel %vm1830, %v1824, %v1462
      %v1858 = vsel %vm1830, %v1825, %v1464
      %v1859 = vsel %vm1830, %v1826, %v1466
      %v1860 = vsel %vm1830, %v1827, %v1468
      %v1861 = vsel %vm1830, %v1828, %v1470
      %v1862 = vsel %vm1830, %v1829, %v1472
      %vm1863 = vcmask 523264
      %v1864 = vsel %vm1863, %v1831, %v1538
      %v1865 = vsel %vm1863, %v1832, %v1540
      %v1866 = vsel %vm1863, %v1833, %v1542
      %v1867 = vsel %vm1863, %v1834, %v1544
      %v1868 = vsel %vm1863, %v1835, %v1546
      %v1869 = vsel %vm1863, %v1836, %v1548
      %v1870 = vsel %vm1863, %v1837, %v1550
      %v1871 = vsel %vm1863, %v1838, %v1552
      %v1872 = vsel %vm1863, %v1839, %v1554
      %v1873 = vsel %vm1863, %v1840, %v1556
      %v1874 = vsel %vm1863, %v1841, %v1558
      %v1875 = vsel %vm1863, %v1842, %v1560
      %v1876 = vsel %vm1863, %v1843, %v1562
      %v1877 = vsel %vm1863, %v1844, %v1564
      %v1878 = vsel %vm1863, %v1845, %v1566
      %v1879 = vsel %vm1863, %v1846, %v1568
      %v1880 = vsel %vm1863, %v1847, %v1570
      %v1881 = vsel %vm1863, %v1848, %v1572
      %v1882 = vsel %vm1863, %v1849, %v1574
      %v1883 = vsel %vm1863, %v1850, %v1576
      %v1884 = vsel %vm1863, %v1851, %v1578
      %v1885 = vsel %vm1863, %v1852, %v1580
      %v1886 = vsel %vm1863, %v1853, %v1582
      %v1887 = vsel %vm1863, %v1854, %v1584
      %v1888 = vsel %vm1863, %v1855, %v1586
      %v1889 = vsel %vm1863, %v1856, %v1588
      %v1890 = vsel %vm1863, %v1857, %v1590
      %v1891 = vsel %vm1863, %v1858, %v1592
      %v1892 = vsel %vm1863, %v1859, %v1594
      %v1893 = vsel %vm1863, %v1860, %v1596
      %v1894 = vsel %vm1863, %v1861, %v1598
      %v1895 = vsel %vm1863, %v1862, %v1600
      %v1896 = vld [vmem:[%s1] sm:$0xff]
      %v1897 = vld [vmem:[%s1 + $0x8] sm:$0xff]
      %v1898 = vld [vmem:[%s1 + $0x10] sm:$0xff]
      %v1899 = vld [vmem:[%s1 + $0x18] sm:$0xff]
      %v1900 = vld [vmem:[%s1 + $0x20] sm:$0xff]
      %v1901 = vld [vmem:[%s1 + $0x28] sm:$0xff]
      %v1902 = vld [vmem:[%s1 + $0x30] sm:$0xff]
      %v1903 = vld [vmem:[%s1 + $0x38] sm:$0xff]
      %v1904 = vld [vmem:[%s1 + $0x40] sm:$0xff]
      %v1905 = vld [vmem:[%s2] sm:$0x1]
      %v1907 = vperm.slane %v1905, 0
      %vm1909 = vcmask 588800
      %v1911 = vsel %vm1909, %v1864, 0
      %v1914 = vsel %vm1909, %v1865, 0
      %v1917 = vsel %vm1909, %v1866, 0
      %v1920 = vsel %vm1909, %v1867, 0
      %v1923 = vsel %vm1909, %v1868, 0
      %v1926 = vsel %vm1909, %v1869, 0
      %v1929 = vsel %vm1909, %v1870, 0
      %v1932 = vsel %vm1909, %v1871, 0
      %v1935 = vsel %vm1909, %v1872, 0
      %v1938 = vsel %vm1909, %v1873, 0
      %v1941 = vsel %vm1909, %v1874, 0
      %v1944 = vsel %vm1909, %v1875, 0
      %v1947 = vsel %vm1909, %v1876, 0
      %v1950 = vsel %vm1909, %v1877, 0
      %v1953 = vsel %vm1909, %v1878, 0
      %v1956 = vsel %vm1909, %v1879, 0
      %v1959 = vsel %vm1909, %v1880, 0
      %v1962 = vsel %vm1909, %v1881, 0
      %v1965 = vsel %vm1909, %v1882, 0
      %v1968 = vsel %vm1909, %v1883, 0
      %v1971 = vsel %vm1909, %v1884, 0
      %v1974 = vsel %vm1909, %v1885, 0
      %v1977 = vsel %vm1909, %v1886, 0
      %v1980 = vsel %vm1909, %v1887, 0
      %v1983 = vsel %vm1909, %v1888, 0
      %v1986 = vsel %vm1909, %v1889, 0
      %v1989 = vsel %vm1909, %v1890, 0
      %v1992 = vsel %vm1909, %v1891, 0
      %v1995 = vsel %vm1909, %v1892, 0
      %v1998 = vsel %vm1909, %v1893, 0
      %v2001 = vsel %vm1909, %v1894, 0
      %v2004 = vsel %vm1909, %v1895, 0
      %2006 = vmatpush.msra.mxu0 0.0
      %2007 = vmatpush.msra.mxu0 0.0
      %2008 = vmatpush.msra.mxu0 0.0
      %2009 = vmatpush.msra.mxu0 0.0
      %2010 = vmatpush.msra.mxu0 0.0
      %2011 = vmatpush.msra.mxu0 0.0
      %2012 = vmatpush.msra.mxu0 0.0
      %2013 = vmatpush.msra.mxu0 %v1904
      %2014 = vmatpush.msra.mxu0 %v1903
      %2015 = vmatpush.msra.mxu0 %v1902
      %2016 = vmatpush.msra.mxu0 %v1901
      %2017 = vmatpush.msra.mxu0 %v1900
      %2018 = vmatpush.msra.mxu0 %v1899
      %2019 = vmatpush.msra.mxu0 %v1898
      %2020 = vmatpush.msra.mxu0 %v1897
      %2021 = vmatpush.msra.mxu0 %v1896
      %2022 = vmatmul.f32.gmra.mxu0 %v1911
      %v2023 = vpop.f32.mrf.mxu0
      %v2024 = vadd.f32 %v1907, %v2023
      %2025 = vmatmul.f32.gmra.mxu0 %v1914
      %v2026 = vpop.f32.mrf.mxu0
      %v2027 = vadd.f32 %v1907, %v2026
      %2028 = vmatmul.f32.gmra.mxu0 %v1917
      %v2029 = vpop.f32.mrf.mxu0
      %v2030 = vadd.f32 %v1907, %v2029
      %2031 = vmatmul.f32.gmra.mxu0 %v1920
      %v2032 = vpop.f32.mrf.mxu0
      %v2033 = vadd.f32 %v1907, %v2032
      %2034 = vmatmul.f32.gmra.mxu0 %v1923
      %v2035 = vpop.f32.mrf.mxu0
      %v2036 = vadd.f32 %v1907, %v2035
      %2037 = vmatmul.f32.gmra.mxu0 %v1926
      %v2038 = vpop.f32.mrf.mxu0
      %v2039 = vadd.f32 %v1907, %v2038
      %2040 = vmatmul.f32.gmra.mxu0 %v1929
      %v2041 = vpop.f32.mrf.mxu0
      %v2042 = vadd.f32 %v1907, %v2041
      %2043 = vmatmul.f32.gmra.mxu0 %v1932
      %v2044 = vpop.f32.mrf.mxu0
      %v2045 = vadd.f32 %v1907, %v2044
      %2046 = vmatmul.f32.gmra.mxu0 %v1935
      %v2047 = vpop.f32.mrf.mxu0
      %v2048 = vadd.f32 %v1907, %v2047
      %2049 = vmatmul.f32.gmra.mxu0 %v1938
      %v2050 = vpop.f32.mrf.mxu0
      %v2051 = vadd.f32 %v1907, %v2050
      %2052 = vmatmul.f32.gmra.mxu0 %v1941
      %v2053 = vpop.f32.mrf.mxu0
      %v2054 = vadd.f32 %v1907, %v2053
      %2055 = vmatmul.f32.gmra.mxu0 %v1944
      %v2056 = vpop.f32.mrf.mxu0
      %v2057 = vadd.f32 %v1907, %v2056
      %2058 = vmatmul.f32.gmra.mxu0 %v1947
      %v2059 = vpop.f32.mrf.mxu0
      %v2060 = vadd.f32 %v1907, %v2059
      %2061 = vmatmul.f32.gmra.mxu0 %v1950
      %v2062 = vpop.f32.mrf.mxu0
      %v2063 = vadd.f32 %v1907, %v2062
      %2064 = vmatmul.f32.gmra.mxu0 %v1953
      %v2065 = vpop.f32.mrf.mxu0
      %v2066 = vadd.f32 %v1907, %v2065
      %2067 = vmatmul.f32.gmra.mxu0 %v1956
      %v2068 = vpop.f32.mrf.mxu0
      %v2069 = vadd.f32 %v1907, %v2068
      %2070 = vmatmul.f32.gmra.mxu0 %v1959
      %v2071 = vpop.f32.mrf.mxu0
      %v2072 = vadd.f32 %v1907, %v2071
      %2073 = vmatmul.f32.gmra.mxu0 %v1962
      %v2074 = vpop.f32.mrf.mxu0
      %v2075 = vadd.f32 %v1907, %v2074
      %2076 = vmatmul.f32.gmra.mxu0 %v1965
      %v2077 = vpop.f32.mrf.mxu0
      %v2078 = vadd.f32 %v1907, %v2077
      %2079 = vmatmul.f32.gmra.mxu0 %v1968
      %v2080 = vpop.f32.mrf.mxu0
      %v2081 = vadd.f32 %v1907, %v2080
      %2082 = vmatmul.f32.gmra.mxu0 %v1971
      %v2083 = vpop.f32.mrf.mxu0
      %v2084 = vadd.f32 %v1907, %v2083
      %2085 = vmatmul.f32.gmra.mxu0 %v1974
      %v2086 = vpop.f32.mrf.mxu0
      %v2087 = vadd.f32 %v1907, %v2086
      %2088 = vmatmul.f32.gmra.mxu0 %v1977
      %v2089 = vpop.f32.mrf.mxu0
      %v2090 = vadd.f32 %v1907, %v2089
      %2091 = vmatmul.f32.gmra.mxu0 %v1980
      %v2092 = vpop.f32.mrf.mxu0
      %v2093 = vadd.f32 %v1907, %v2092
      %2094 = vmatmul.f32.gmra.mxu0 %v1983
      %v2095 = vpop.f32.mrf.mxu0
      %v2096 = vadd.f32 %v1907, %v2095
      %2097 = vmatmul.f32.gmra.mxu0 %v1986
      %v2098 = vpop.f32.mrf.mxu0
      %v2099 = vadd.f32 %v1907, %v2098
      %2100 = vmatmul.f32.gmra.mxu0 %v1989
      %v2101 = vpop.f32.mrf.mxu0
      %v2102 = vadd.f32 %v1907, %v2101
      %2103 = vmatmul.f32.gmra.mxu0 %v1992
      %v2104 = vpop.f32.mrf.mxu0
      %v2105 = vadd.f32 %v1907, %v2104
      %2106 = vmatmul.f32.gmra.mxu0 %v1995
      %v2107 = vpop.f32.mrf.mxu0
      %v2108 = vadd.f32 %v1907, %v2107
      %2109 = vmatmul.f32.gmra.mxu0 %v1998
      %v2110 = vpop.f32.mrf.mxu0
      %v2111 = vadd.f32 %v1907, %v2110
      %2112 = vmatmul.f32.gmra.mxu0 %v2001
      %v2113 = vpop.f32.mrf.mxu0
      %v2114 = vadd.f32 %v1907, %v2113
      %2115 = vmatmul.f32.gmra.mxu0 %v2004
      %v2116 = vpop.f32.mrf.mxu0
      %v2117 = vadd.f32 %v1907, %v2116
      %2118 = vdwg.mxu0
      %2119 = vst.msk [vmem:[%s204] sm:$0xff] %vm209, %v2024
      %2120 = vst.msk [vmem:[%s204 + $0x8] sm:$0xff] %vm209, %v2027
      %2121 = vst.msk [vmem:[%s204 + $0x10] sm:$0xff] %vm209, %v2030
      %2122 = vst.msk [vmem:[%s204 + $0x18] sm:$0xff] %vm209, %v2033
      %2123 = vst.msk [vmem:[%s204 + $0x20] sm:$0xff] %vm209, %v2036
      %2124 = vst.msk [vmem:[%s204 + $0x28] sm:$0xff] %vm209, %v2039
      %2125 = vst.msk [vmem:[%s204 + $0x30] sm:$0xff] %vm209, %v2042
      %2126 = vst.msk [vmem:[%s204 + $0x38] sm:$0xff] %vm209, %v2045
      %2127 = vst.msk [vmem:[%s204 + $0x40] sm:$0xff] %vm209, %v2048
      %2128 = vst.msk [vmem:[%s204 + $0x48] sm:$0xff] %vm209, %v2051
      %2129 = vst.msk [vmem:[%s204 + $0x50] sm:$0xff] %vm209, %v2054
      %2130 = vst.msk [vmem:[%s204 + $0x58] sm:$0xff] %vm209, %v2057
      %2131 = vst.msk [vmem:[%s204 + $0x60] sm:$0xff] %vm209, %v2060
      %2132 = vst.msk [vmem:[%s204 + $0x68] sm:$0xff] %vm209, %v2063
      %2133 = vst.msk [vmem:[%s204 + $0x70] sm:$0xff] %vm209, %v2066
      %2134 = vst.msk [vmem:[%s204 + $0x78] sm:$0xff] %vm209, %v2069
      %2135 = vst.msk [vmem:[%s204 + $0x80] sm:$0xff] %vm209, %v2072
      %2136 = vst.msk [vmem:[%s204 + $0x88] sm:$0xff] %vm209, %v2075
      %2137 = vst.msk [vmem:[%s204 + $0x90] sm:$0xff] %vm209, %v2078
      %2138 = vst.msk [vmem:[%s204 + $0x98] sm:$0xff] %vm209, %v2081
      %2139 = vst.msk [vmem:[%s204 + $0xa0] sm:$0xff] %vm209, %v2084
      %2140 = vst.msk [vmem:[%s204 + $0xa8] sm:$0xff] %vm209, %v2087
      %2141 = vst.msk [vmem:[%s204 + $0xb0] sm:$0xff] %vm209, %v2090
      %2142 = vst.msk [vmem:[%s204 + $0xb8] sm:$0xff] %vm209, %v2093
      %2143 = vst.msk [vmem:[%s204 + $0xc0] sm:$0xff] %vm209, %v2096
      %2144 = vst.msk [vmem:[%s204 + $0xc8] sm:$0xff] %vm209, %v2099
      %2145 = vst.msk [vmem:[%s204 + $0xd0] sm:$0xff] %vm209, %v2102
      %2146 = vst.msk [vmem:[%s204 + $0xd8] sm:$0xff] %vm209, %v2105
      %2147 = vst.msk [vmem:[%s204 + $0xe0] sm:$0xff] %vm209, %v2108
      %2148 = vst.msk [vmem:[%s204 + $0xe8] sm:$0xff] %vm209, %v2111
      %2149 = vst.msk [vmem:[%s204 + $0xf0] sm:$0xff] %vm209, %v2114
      %2150 = vst.msk [vmem:[%s204 + $0xf8] sm:$0xff] %vm209, %v2117
      %v2151 = vsel %vm209, %v2024, 0.0
      %v2152 = vsel %vm209, %v2027, 0.0
      %v2153 = vadd.f32 %v2151, %v2152
      %v2154 = vsel %vm209, %v2030, 0.0
      %v2155 = vadd.f32 %v2153, %v2154
      %v2156 = vsel %vm209, %v2033, 0.0
      %v2157 = vadd.f32 %v2155, %v2156
      %v2158 = vsel %vm209, %v2036, 0.0
      %v2159 = vadd.f32 %v2157, %v2158
      %v2160 = vsel %vm209, %v2039, 0.0
      %v2161 = vadd.f32 %v2159, %v2160
      %v2162 = vsel %vm209, %v2042, 0.0
      %v2163 = vadd.f32 %v2161, %v2162
      %v2164 = vsel %vm209, %v2045, 0.0
      %v2165 = vadd.f32 %v2163, %v2164
      %v2166 = vsel %vm209, %v2048, 0.0
      %v2167 = vadd.f32 %v2165, %v2166
      %v2168 = vsel %vm209, %v2051, 0.0
      %v2169 = vadd.f32 %v2167, %v2168
      %v2170 = vsel %vm209, %v2054, 0.0
      %v2171 = vadd.f32 %v2169, %v2170
      %v2172 = vsel %vm209, %v2057, 0.0
      %v2173 = vadd.f32 %v2171, %v2172
      %v2174 = vsel %vm209, %v2060, 0.0
      %v2175 = vadd.f32 %v2173, %v2174
      %v2176 = vsel %vm209, %v2063, 0.0
      %v2177 = vadd.f32 %v2175, %v2176
      %v2178 = vsel %vm209, %v2066, 0.0
      %v2179 = vadd.f32 %v2177, %v2178
      %v2180 = vsel %vm209, %v2069, 0.0
      %v2181 = vadd.f32 %v2179, %v2180
      %v2182 = vsel %vm209, %v2072, 0.0
      %v2183 = vadd.f32 %v2181, %v2182
      %v2184 = vsel %vm209, %v2075, 0.0
      %v2185 = vadd.f32 %v2183, %v2184
      %v2186 = vsel %vm209, %v2078, 0.0
      %v2187 = vadd.f32 %v2185, %v2186
      %v2188 = vsel %vm209, %v2081, 0.0
      %v2189 = vadd.f32 %v2187, %v2188
      %v2190 = vsel %vm209, %v2084, 0.0
      %v2191 = vadd.f32 %v2189, %v2190
      %v2192 = vsel %vm209, %v2087, 0.0
      %v2193 = vadd.f32 %v2191, %v2192
      %v2194 = vsel %vm209, %v2090, 0.0
      %v2195 = vadd.f32 %v2193, %v2194
      %v2196 = vsel %vm209, %v2093, 0.0
      %v2197 = vadd.f32 %v2195, %v2196
      %v2198 = vsel %vm209, %v2096, 0.0
      %v2199 = vadd.f32 %v2197, %v2198
      %v2200 = vsel %vm209, %v2099, 0.0
      %v2201 = vadd.f32 %v2199, %v2200
      %v2202 = vsel %vm209, %v2102, 0.0
      %v2203 = vadd.f32 %v2201, %v2202
      %v2204 = vsel %vm209, %v2105, 0.0
      %v2205 = vadd.f32 %v2203, %v2204
      %v2206 = vsel %vm209, %v2108, 0.0
      %v2207 = vadd.f32 %v2205, %v2206
      %v2208 = vsel %vm209, %v2111, 0.0
      %v2209 = vadd.f32 %v2207, %v2208
      %v2210 = vsel %vm209, %v2114, 0.0
      %v2211 = vadd.f32 %v2209, %v2210
      %v2212 = vsel %vm209, %v2117, 0.0
      %v2213 = vadd.f32 %v2211, %v2212
      %v2214 = vrot.slane %v2213, 4
      %v2215 = vadd.f32 %v2213, %v2214
      %v2216 = vrot.slane %v2215, 2
      %v2217 = vadd.f32 %v2215, %v2216
      %v2218 = vrot.slane %v2217, 1
      %v2219 = vadd.f32 %v2217, %v2218
      %v2220 = vmul.f32 %v2024, %v2024
      %v2221 = vmul.f32 %v2027, %v2027
      %v2222 = vmul.f32 %v2030, %v2030
      %v2223 = vmul.f32 %v2033, %v2033
      %v2224 = vmul.f32 %v2036, %v2036
      %v2225 = vmul.f32 %v2039, %v2039
      %v2226 = vmul.f32 %v2042, %v2042
      %v2227 = vmul.f32 %v2045, %v2045
      %v2228 = vmul.f32 %v2048, %v2048
      %v2229 = vmul.f32 %v2051, %v2051
      %v2230 = vmul.f32 %v2054, %v2054
      %v2231 = vmul.f32 %v2057, %v2057
      %v2232 = vmul.f32 %v2060, %v2060
      %v2233 = vmul.f32 %v2063, %v2063
      %v2234 = vmul.f32 %v2066, %v2066
      %v2235 = vmul.f32 %v2069, %v2069
      %v2236 = vmul.f32 %v2072, %v2072
      %v2237 = vmul.f32 %v2075, %v2075
      %v2238 = vmul.f32 %v2078, %v2078
      %v2239 = vmul.f32 %v2081, %v2081
      %v2240 = vmul.f32 %v2084, %v2084
      %v2241 = vmul.f32 %v2087, %v2087
      %v2242 = vmul.f32 %v2090, %v2090
      %v2243 = vmul.f32 %v2093, %v2093
      %v2244 = vmul.f32 %v2096, %v2096
      %v2245 = vmul.f32 %v2099, %v2099
      %v2246 = vmul.f32 %v2102, %v2102
      %v2247 = vmul.f32 %v2105, %v2105
      %v2248 = vmul.f32 %v2108, %v2108
      %v2249 = vmul.f32 %v2111, %v2111
      %v2250 = vmul.f32 %v2114, %v2114
      %v2251 = vmul.f32 %v2117, %v2117
      %v2252 = vsel %vm209, %v2220, 0.0
      %v2253 = vsel %vm209, %v2221, 0.0
      %v2254 = vadd.f32 %v2252, %v2253
      %v2255 = vsel %vm209, %v2222, 0.0
      %v2256 = vadd.f32 %v2254, %v2255
      %v2257 = vsel %vm209, %v2223, 0.0
      %v2258 = vadd.f32 %v2256, %v2257
      %v2259 = vsel %vm209, %v2224, 0.0
      %v2260 = vadd.f32 %v2258, %v2259
      %v2261 = vsel %vm209, %v2225, 0.0
      %v2262 = vadd.f32 %v2260, %v2261
      %v2263 = vsel %vm209, %v2226, 0.0
      %v2264 = vadd.f32 %v2262, %v2263
      %v2265 = vsel %vm209, %v2227, 0.0
      %v2266 = vadd.f32 %v2264, %v2265
      %v2267 = vsel %vm209, %v2228, 0.0
      %v2268 = vadd.f32 %v2266, %v2267
      %v2269 = vsel %vm209, %v2229, 0.0
      %v2270 = vadd.f32 %v2268, %v2269
      %v2271 = vsel %vm209, %v2230, 0.0
      %v2272 = vadd.f32 %v2270, %v2271
      %v2273 = vsel %vm209, %v2231, 0.0
      %v2274 = vadd.f32 %v2272, %v2273
      %v2275 = vsel %vm209, %v2232, 0.0
      %v2276 = vadd.f32 %v2274, %v2275
      %v2277 = vsel %vm209, %v2233, 0.0
      %v2278 = vadd.f32 %v2276, %v2277
      %v2279 = vsel %vm209, %v2234, 0.0
      %v2280 = vadd.f32 %v2278, %v2279
      %v2281 = vsel %vm209, %v2235, 0.0
      %v2282 = vadd.f32 %v2280, %v2281
      %v2283 = vsel %vm209, %v2236, 0.0
      %v2284 = vadd.f32 %v2282, %v2283
      %v2285 = vsel %vm209, %v2237, 0.0
      %v2286 = vadd.f32 %v2284, %v2285
      %v2287 = vsel %vm209, %v2238, 0.0
      %v2288 = vadd.f32 %v2286, %v2287
      %v2289 = vsel %vm209, %v2239, 0.0
      %v2290 = vadd.f32 %v2288, %v2289
      %v2291 = vsel %vm209, %v2240, 0.0
      %v2292 = vadd.f32 %v2290, %v2291
      %v2293 = vsel %vm209, %v2241, 0.0
      %v2294 = vadd.f32 %v2292, %v2293
      %v2295 = vsel %vm209, %v2242, 0.0
      %v2296 = vadd.f32 %v2294, %v2295
      %v2297 = vsel %vm209, %v2243, 0.0
      %v2298 = vadd.f32 %v2296, %v2297
      %v2299 = vsel %vm209, %v2244, 0.0
      %v2300 = vadd.f32 %v2298, %v2299
      %v2301 = vsel %vm209, %v2245, 0.0
      %v2302 = vadd.f32 %v2300, %v2301
      %v2303 = vsel %vm209, %v2246, 0.0
      %v2304 = vadd.f32 %v2302, %v2303
      %v2305 = vsel %vm209, %v2247, 0.0
      %v2306 = vadd.f32 %v2304, %v2305
      %v2307 = vsel %vm209, %v2248, 0.0
      %v2308 = vadd.f32 %v2306, %v2307
      %v2309 = vsel %vm209, %v2249, 0.0
      %v2310 = vadd.f32 %v2308, %v2309
      %v2311 = vsel %vm209, %v2250, 0.0
      %v2312 = vadd.f32 %v2310, %v2311
      %v2313 = vsel %vm209, %v2251, 0.0
      %v2314 = vadd.f32 %v2312, %v2313
      %v2315 = vrot.slane %v2314, 4
      %v2316 = vadd.f32 %v2314, %v2315
      %v2317 = vrot.slane %v2316, 2
      %v2318 = vadd.f32 %v2316, %v2317
      %v2319 = vrot.slane %v2318, 1
      %v2320 = vadd.f32 %v2318, %v2319
      %vm2321 = vcmask 1040384
      %v2322 = vsel %vm2321, %v2219, %v2320
      %2323 = vst.msk [vmem:[%s208] sm:$0x3] %vm212, %v2322
      %p2324 = scmp.lt.s32.totalorder %s16, 1
      %s2325 = scalar_select %p2324, %s16, 1
      %s2326 = smul.addr %s2325, 32
      %s2327 = smul.addr %s2326, 8
      %s2328 = scalar_lea.vmem %s3, %s2327
      %p2329 = scmp.lt.s32.totalorder %s16, 1
      %s2330 = scalar_select %p2329, %s16, 1
      %s2331 = smul.addr %s2330, 2
      %s2332 = scalar_lea.vmem %s4, %s2331
      // Predicated region
      $region33: #{residual_block_forward.3} parent=31 // pred_check
        %p2333 = pneg %p102
      $region34: #{residual_block_forward.3} parent=31 // pred_check_branch
        %2335 = sbr.rel (%p2333) target = $region36
      $region35: #{residual_block_forward.3} parent=31 // pred_region
        _
      $region36: #{residual_block_forward.3} parent=31 // pred_fallthru
        _
      // Predicated region
      $region37: #{residual_block_forward.3} parent=31 // pred_check
        %p2336 = pneg %p128
      $region38: #{residual_block_forward.3} parent=31 // pred_check_branch
        %2338 = sbr.rel (%p2336) target = $region40
      $region39: #{residual_block_forward.3} parent=31 // pred_region
        _
      $region40: #{residual_block_forward.3} parent=31 // pred_fallthru
        _
    $region32: #{residual_block_forward.3} parent=5 // pred_fallthru
      _
    %p2339 = scmp.le.s32.totalorder 2, %s11
    // Predicated region
    $region41: #{residual_block_forward.3} parent=5 // pred_check
      %p2340 = pneg %p2339
    $region42: #{residual_block_forward.3} parent=5 // pred_check_branch
      %2342 = sbr.rel (%p2340) target = $region44
    $region43: #{residual_block_forward.3} parent=5 // pred_region
      %s2343 = ssub.s32 %s11, 2
      // Predicated region
      $region45: #{residual_block_forward.3} parent=43 // pred_check
        %p2344 = pneg %p108
      $region46: #{residual_block_forward.3} parent=43 // pred_check_branch
        %2346 = sbr.rel (%p2344) target = $region48
      $region47: #{residual_block_forward.3} parent=43 // pred_region
        %p2347 = scmp.lt.s32.totalorder %s17, 1
        %s2348 = scalar_select %p2347, %s17, 1
        %s2349 = smul.addr %s2348, 32
        %s2350 = smul.addr %s2349, 8
        %s2351 = scalar_lea.vmem %s3, %s2350
      $region48: #{residual_block_forward.3} parent=43 // pred_fallthru
        _
      // Predicated region
      $region49: #{residual_block_forward.3} parent=43 // pred_check
        %p2352 = pneg %p134
      $region50: #{residual_block_forward.3} parent=43 // pred_check_branch
        %2354 = sbr.rel (%p2352) target = $region52
      $region51: #{residual_block_forward.3} parent=43 // pred_region
        %p2355 = scmp.lt.s32.totalorder %s17, 1
        %s2356 = scalar_select %p2355, %s17, 1
        %s2357 = smul.addr %s2356, 2
        %s2358 = scalar_lea.vmem %s4, %s2357
      $region52: #{residual_block_forward.3} parent=43 // pred_fallthru
        _
    $region44: #{residual_block_forward.3} parent=5 // pred_fallthru
      _
  $region6: #{residual_block_forward.3} parent=0 // loop_footer
    %s15 = sadd.s32 1, %s11
  $region7: #{residual_block_forward.3} parent=0 // loop_footer_branch
    %10 = sbr.rel target = $region3
  $region8: #{residual_block_forward.3} parent=0 // loop_exit
    _

// kernel: residual_block_forward.4
$region0: #{residual_block_forward.4}
  #allocation0 [shape = 'u32[]', space=smem, size = 0x4, offset = 0x4, fixed_abs, tag = 'smem constant byte address 0x4 - core index']
  #allocation1 [shape = 'u32[72,128]{1,0:T(1,128)}', space=vmem, size = 0x9000, scoped, tag = 'internal scratch']
  #allocation2 [shape = 'f32[1,18,18,8]{3,2,1,0:T(8,128)}', space=vmem, size = 0x36000, scoped, tag = 'scratch operand']
  %s0 = inlined_call_operand.vmem [shape: f32[2,16,16,8], index: 0, kind: input, shape index: {}, may-alias: {0,5}]
  %s1 = inlined_call_operand.vmem [shape: f32[1,8], index: 1, kind: input, shape index: {}]
  %s2 = inlined_call_operand.vmem [shape: f32[1,8], index: 2, kind: input, shape index: {}]
  %s3 = inlined_call_operand.vmem [shape: f32[72,8], index: 3, kind: input, shape index: {}]
  %s4 = inlined_call_operand.vmem [shape: f32[1,8], index: 4, kind: input, shape index: {}]
  %s5 = inlined_call_operand.vmem [shape: f32[2,16,16,8], index: 5, kind: output, shape index: {0}, may-alias: {0,5}]
  %s6 = inlined_call_operand.vmem [shape: f32[2,2,8], index: 6, kind: output, shape index: {1}]
  %7 = xla_tuple %s5, %s6
  %s8 = sld [smem:[#allocation0]]
  $region61: #{residual_block_forward.4} parent=0
    _
  %s10 = ssub.s32 1, %s8
  %s11 = scalar_select 0, %s10, %s8
  loop: start=0, step=1, limit=4
  $region2: #{residual_block_forward.4} parent=0 // loop_pre_header
    _
  $region3: #{residual_block_forward.4} parent=0 // loop_header
    %s13 = sphi 0, %s17
    %p14 = scmp.ge.s32.totalorder %s13, 4
    %s23 = sphi 0, %s25
    %s26 = sphi 0, %s23
    %s27 = sphi 0, %s26
    %s43 = sphi 0, %s27
    %s47 = sphi 0, %s47
    %s49 = sphi 0, %s47
    %s50 = sphi 0, %s49
    %s64 = sphi 0, %s50
    %s68 = sphi 0, %s68
    %s70 = sphi 0, %s68
    %s71 = sphi 0, %s70
    %s85 = sphi 0, %s71
    %s89 = sphi 0, %s89
    %s91 = sphi 0, %s89
    %s92 = sphi 0, %s91
    %s106 = sphi 0, %s92
    %s110 = sphi 0, %s110
    %s112 = sphi 0, %s110
    %s113 = sphi 0, %s112
    %s127 = sphi 0, %s113
    %s133 = sphi 0, %s135
    %s136 = sphi 0, %s133
    %s137 = sphi 0, %s136
    %s153 = sphi 0, %s137
    %s159 = sphi 0, %s161
    %s162 = sphi 0, %s159
    %s163 = sphi 0, %s162
    %s179 = sphi 0, %s163
  $region4: #{residual_block_forward.4} parent=0 // loop_header_branch
    %16 = sbr.rel (%p14) target = $region8
  $region5: #{residual_block_forward.4} parent=0 // loop_body
    %s18 = ssub.s32 %s13, 1
    %s19 = ssub.s32 %s13, 2
    %s20 = sadd.s32 %s13, 1
    %s21 = ssub.s32 %s13, %s20
    %p22 = scmp.eq.s32.totalorder %s21, 0
    %s24 = sadd.s32 %s23, 1
    %s25 = scalar_select %p22, %s23, %s24
    %p28 = pneg %p22
    %p29 = scmp.eq.s32.totalorder %s13, 1
    %p30 = por %p28, %p29
    %p31 = scmp.ne.s32.totalorder %s23, %s26
    %p32 = scmp.eq.s32.totalorder %s13, 0
    %p33 = por %p31, %p32
    %p34 = scmp.ne.s32.totalorder %s23, %s26
    %p35 = scmp.eq.s32.totalorder %s18, 1
    %p36 = por %p34, %p35
    %p37 = scmp.ne.s32.totalorder %s26, %s27
    %p38 = scmp.eq.s32.totalorder %s18, 0
    %p39 = por %p37, %p38
    %p40 = scmp.ne.s32.totalorder %s26, %s27
    %p41 = scmp.eq.s32.totalorder %s19, 1
    %p42 = por %p40, %p41
    %p44 = scmp.ne.s32.totalorder %s27, %s43
    %p45 = scmp.eq.s32.totalorder %s19, 0
    %p46 = por %p44, %p45
    %s48 = sadd.s32 %s47, 1
    %p51 = scmp.eq.s32.totalorder %s13, 1
    %p52 = scmp.ne.s32.totalorder %s47, %s49
    %p53 = scmp.eq.s32.totalorder %s13, 0
    %p54 = por %p52, %p53
    %p55 = scmp.ne.s32.totalorder %s47, %s49
    %p56 = scmp.eq.s32.totalorder %s18, 1
    %p57 = por %p55, %p56
    %p58 = scmp.ne.s32.totalorder %s49, %s50
    %p59 = scmp.eq.s32.totalorder %s18, 0
    %p60 = por %p58, %p59
    %p61 = scmp.ne.s32.totalorder %s49, %s50
    %p62 = scmp.eq.s32.totalorder %s19, 1
    %p63 = por %p61, %p62
    %p65 = scmp.ne.s32.totalorder %s50, %s64
    %p66 = scmp.eq.s32.totalorder %s19, 0
    %p67 = por %p65, %p66
    %s69 = sadd.s32 %s68, 1
    %p72 = scmp.eq.s32.totalorder %s13, 1
    %p73 = scmp.ne.s32.totalorder %s68, %s70
    %p74 = scmp.eq.s32.totalorder %s13, 0
    %p75 = por %p73, %p74
    %p76 = scmp.ne.s32.totalorder %s68, %s70
    %p77 = scmp.eq.s32.totalorder %s18, 1
    %p78 = por %p76, %p77
    %p79 = scmp.ne.s32.totalorder %s70, %s71
    %p80 = scmp.eq.s32.totalorder %s18, 0
    %p81 = por %p79, %p80
    %p82 = scmp.ne.s32.totalorder %s70, %s71
    %p83 = scmp.eq.s32.totalorder %s19, 1
    %p84 = por %p82, %p83
    %p86 = scmp.ne.s32.totalorder %s71, %s85
    %p87 = scmp.eq.s32.totalorder %s19, 0
    %p88 = por %p86, %p87
    %s90 = sadd.s32 %s89, 1
    %p93 = scmp.eq.s32.totalorder %s13, 1
    %p94 = scmp.ne.s32.totalorder %s89, %s91
    %p95 = scmp.eq.s32.totalorder %s13, 0
    %p96 = por %p94, %p95
    %p97 = scmp.ne.s32.totalorder %s89, %s91
    %p98 = scmp.eq.s32.totalorder %s18, 1
    %p99 = por %p97, %p98
    %p100 = scmp.ne.s32.totalorder %s91, %s92
    %p101 = scmp.eq.s32.totalorder %s18, 0
    %p102 = por %p100, %p101
    %p103 = scmp.ne.s32.totalorder %s91, %s92
    %p104 = scmp.eq.s32.totalorder %s19, 1
    %p105 = por %p103, %p104
    %p107 = scmp.ne.s32.totalorder %s92, %s106
    %p108 = scmp.eq.s32.totalorder %s19, 0
    %p109 = por %p107, %p108
    %s111 = sadd.s32 %s110, 1
    %p114 = scmp.eq.s32.totalorder %s13, 1
    %p115 = scmp.ne.s32.totalorder %s110, %s112
    %p116 = scmp.eq.s32.totalorder %s13, 0
    %p117 = por %p115, %p116
    %p118 = scmp.ne.s32.totalorder %s110, %s112
    %p119 = scmp.eq.s32.totalorder %s18, 1
    %p120 = por %p118, %p119
    %p121 = scmp.ne.s32.totalorder %s112, %s113
    %p122 = scmp.eq.s32.totalorder %s18, 0
    %p123 = por %p121, %p122
    %p124 = scmp.ne.s32.totalorder %s112, %s113
    %p125 = scmp.eq.s32.totalorder %s19, 1
    %p126 = por %p124, %p125
    %p128 = scmp.ne.s32.totalorder %s113, %s127
    %p129 = scmp.eq.s32.totalorder %s19, 0
    %p130 = por %p128, %p129
    %s131 = ssub.s32 %s13, %s20
    %p132 = scmp.eq.s32.totalorder %s131, 0
    %s134 = sadd.s32 %s133, 1
    %s135 = scalar_select %p132, %s133, %s134
    %p138 = pneg %p132
    %p139 = scmp.eq.s32.totalorder %s13, 1
    %p140 = por %p138, %p139
    %p141 = scmp.ne.s32.totalorder %s133, %s136
    %p142 = scmp.eq.s32.totalorder %s13, 0
    %p143 = por %p141, %p142
    %p144 = scmp.ne.s32.totalorder %s133, %s136
    %p145 = scmp.eq.s32.totalorder %s18, 1
    %p146 = por %p144, %p145
    %p147 = scmp.ne.s32.totalorder %s136, %s137
    %p148 = scmp.eq.s32.totalorder %s18, 0
    %p149 = por %p147, %p148
    %p150 = scmp.ne.s32.totalorder %s136, %s137
    %p151 = scmp.eq.s32.totalorder %s19, 1
    %p152 = por %p150, %p151
    %p154 = scmp.ne.s32.totalorder %s137, %s153
    %p155 = scmp.eq.s32.totalorder %s19, 0
    %p156 = por %p154, %p155
    %s157 = ssub.s32 %s13, %s20
    %p158 = scmp.eq.s32.totalorder %s157, 0
    %s160 = sadd.s32 %s159, 1
    %s161 = scalar_select %p158, %s159, %s160
    %p164 = pneg %p158
    %p165 = scmp.eq.s32.totalorder %s13, 1
    %p166 = por %p164, %p165
    %p167 = scmp.ne.s32.totalorder %s159, %s162
    %p168 = scmp.eq.s32.totalorder %s13, 0
    %p169 = por %p167, %p168
    %p170 = scmp.ne.s32.totalorder %s159, %s162
    %p171 = scmp.eq.s32.totalorder %s18, 1
    %p172 = por %p170, %p171
    %p173 = scmp.ne.s32.totalorder %s162, %s163
    %p174 = scmp.eq.s32.totalorder %s18, 0
    %p175 = por %p173, %p174
    %p176 = scmp.ne.s32.totalorder %s162, %s163
    %p177 = scmp.eq.s32.totalorder %s19, 1
    %p178 = por %p176, %p177
    %p180 = scmp.ne.s32.totalorder %s163, %s179
    %p181 = scmp.eq.s32.totalorder %s19, 0
    %p182 = por %p180, %p181
    %p183 = scmp.le.s32.totalorder 1, %s13
    %p184 = scmp.lt.s32.totalorder %s13, 3
    %p185 = pnand %p183, %p184
    %p186 = pneg %p185
    // Predicated region
    $region9: #{residual_block_forward.4} parent=5 // pred_check
      _
    $region10: #{residual_block_forward.4} parent=5 // pred_check_branch
      %188 = sbr.rel (%p185) target = $region12
    $region11: #{residual_block_forward.4} parent=5 // pred_region
      %s189 = ssub.s32 %s13, 1
      // Predicated region
      $region13: #{residual_block_forward.4} parent=11 // pred_check
        %p190 = pneg %p60
      $region14: #{residual_block_forward.4} parent=11 // pred_check_branch
        %192 = sbr.rel (%p190) target = $region16
      $region15: #{residual_block_forward.4} parent=11 // pred_region
        _
      $region16: #{residual_block_forward.4} parent=11 // pred_fallthru
        _
      // Predicated region
      $region17: #{residual_block_forward.4} parent=11 // pred_check
        %p193 = pneg %p81
      $region18: #{residual_block_forward.4} parent=11 // pred_check_branch
        %195 = sbr.rel (%p193) target = $region20
      $region19: #{residual_block_forward.4} parent=11 // pred_region
        _
      $region20: #{residual_block_forward.4} parent=11 // pred_fallthru
        _
      // Predicated region
      $region21: #{residual_block_forward.4} parent=11 // pred_check
        %p196 = pneg %p102
      $region22: #{residual_block_forward.4} parent=11 // pred_check_branch
        %198 = sbr.rel (%p196) target = $region24
      $region23: #{residual_block_forward.4} parent=11 // pred_region
        _
      $region24: #{residual_block_forward.4} parent=11 // pred_fallthru
        _
      // Predicated region
      $region25: #{residual_block_forward.4} parent=11 // pred_check
        %p199 = pneg %p123
      $region26: #{residual_block_forward.4} parent=11 // pred_check_branch
        %201 = sbr.rel (%p199) target = $region28
      $region27: #{residual_block_forward.4} parent=11 // pred_region
        _
      $region28: #{residual_block_forward.4} parent=11 // pred_fallthru
        _
    $region12: #{residual_block_forward.4} parent=5 // pred_fallthru
      _
    %p202 = scmp.lt.s32.totalorder %s13, 2
    // Predicated region
    $region29: #{residual_block_forward.4} parent=5 // pred_check
      %p203 = pneg %p202
    $region30: #{residual_block_forward.4} parent=5 // pred_check_branch
      %205 = sbr.rel (%p203) target = $region32
    $region31: #{residual_block_forward.4} parent=5 // pred_region
      // Predicated region
      $region33: #{residual_block_forward.4} parent=31 // pred_check
        %p206 = pneg %p33
      $region34: #{residual_block_forward.4} parent=31 // pred_check_branch
        %208 = sbr.rel (%p206) target = $region36
      $region35: #{residual_block_forward.4} parent=31 // pred_region
        %p209 = scmp.lt.s32.totalorder %s13, 1
        %s210 = scalar_select %p209, %s13, 1
        %s211 = smul.addr %s210, 32
        %s212 = smul.addr %s211, 8
        %s213 = scalar_lea.vmem %s0, %s212
      $region36: #{residual_block_forward.4} parent=31 // pred_fallthru
        _
    $region32: #{residual_block_forward.4} parent=5 // pred_fallthru
      _
    %p214 = scmp.le.s32.totalorder 1, %s13
    %p215 = scmp.lt.s32.totalorder %s13, 3
    %p216 = pnand %p214, %p215
    %p217 = pneg %p216
    // Predicated region
    $region37: #{residual_block_forward.4} parent=5 // pred_check
      _
    $region38: #{residual_block_forward.4} parent=5 // pred_check_branch
      %219 = sbr.rel (%p216) target = $region40
    $region39: #{residual_block_forward.4} parent=5 // pred_region
      %s220 = ssub.s32 %s13, 1
      %p221 = scmp.lt.s32.totalorder %s18, 1
      %s222 = scalar_select %p221, %s18, 1
      %s223 = smul.addr %s222, 32
      %s224 = smul.addr %s223, 8
      %s225 = scalar_lea.vmem %s0, %s224
      %p226 = pneg %p39
      %p227 = pneg %p36
      %p228 = pneg %p60
      %p229 = pneg %p57
      %p230 = pneg %p81
      %p231 = pneg %p78
      %p232 = pneg %p102
      %p233 = pneg %p99
      %p234 = pneg %p123
      %p235 = pneg %p120
      %p236 = pneg %p149
      %p237 = pneg %p146
      %p238 = scmp.lt.s32.totalorder %s18, 1
      %s239 = scalar_select %p238, %s18, 1
      %s240 = smul.addr %s239, 32
      %s241 = smul.addr %s240, 8
      %s242 = scalar_lea.vmem %s5, %s241
      %p243 = pneg %p175
      %p244 = pneg %p172
      %p245 = scmp.lt.s32.totalorder %s18, 1
      %s246 = scalar_select %p245, %s18, 1
      %s247 = smul.addr %s246, 2
      %s248 = scalar_lea.vmem %s6, %s247
      %p249 = scmp.lt.s32.totalorder %s18, 1
      %s250 = scalar_select %p249, %s18, 1
      %s251 = smul.addr %s250, 32
      %s252 = smul.addr %s251, 8
      %s253 = scalar_lea.vmem %s0, %s252
      %p254 = scmp.lt.s32.totalorder %s18, 1
      %s255 = scalar_select %p254, %s18, 1
      %s256 = smul.addr %s255, 32
      %s257 = smul.addr %s256, 8
      %s258 = scalar_lea.vmem %s5, %s257
      %p259 = scmp.lt.s32.totalorder %s18, 1
      %s260 = scalar_select %p259, %s18, 1
      %s261 = smul.addr %s260, 2
      %s262 = scalar_lea.vmem %s6, %s261
      %vm263 = vcmask 64512
      %264 = vst.msk [vmem:[#allocation2] sm:$0xff] %vm263, 0.0
      %265 = vst.msk [vmem:[#allocation2 + $0x8] sm:$0xff] %vm263, 0.0
      %vm266 = vcmask 58368
      %267 = vst.msk [vmem:[#allocation2 + $0x10] sm:$0x3] %vm266, 0.0
      %s268 = scalar_lea.vmem [#allocation2], 408
      %269 = vst.msk [vmem:[%s268] sm:$0xff] %vm263, 0.0
      %270 = vst.msk [vmem:[%s268 + $0x8] sm:$0xff] %vm263, 0.0
      %271 = vst.msk [vmem:[%s268 + $0x10] sm:$0x3] %vm266, 0.0
      %vm272 = vcmask 57344
      %273 = vst.msk [vmem:[#allocation2] sm:$0x1] %vm272, 0.0
      %274 = vst.msk [vmem:[#allocation2 + $0x18] sm:$0x1] %vm272, 0.0
      %275 = vst.msk [vmem:[#allocation2 + $0x30] sm:$0x1] %vm272, 0.0
      %276 = vst.msk [vmem:[#allocation2 + $0x48] sm:$0x1] %vm272, 0.0
      %277 = vst.msk [vmem:[#allocation2 + $0x60] sm:$0x1] %vm272, 0.0
      %278 = vst.msk [vmem:[#allocation2 + $0x78] sm:$0x1] %vm272, 0.0
      %279 = vst.msk [vmem:[#allocation2 + $0x90] sm:$0x1] %vm272, 0.0
      %280 = vst.msk [vmem:[#allocation2 + $0xa8] sm:$0x1] %vm272, 0.0
      %281 = vst.msk [vmem:[#allocation2 + $0xc0] sm:$0x1] %vm272, 0.0
      %282 = vst.msk [vmem:[#allocation2 + $0xd8] sm:$0x1] %vm272, 0.0
      %283 = vst.msk [vmem:[#allocation2 + $0xf0] sm:$0x1] %vm272, 0.0
      %284 = vst.msk [vmem:[#allocation2 + $0x108] sm:$0x1] %vm272, 0.0
      %285 = vst.msk [vmem:[#allocation2 + $0x120] sm:$0x1] %vm272, 0.0
      %286 = vst.msk [vmem:[#allocation2 + $0x138] sm:$0x1] %vm272, 0.0
      %287 = vst.msk [vmem:[#allocation2 + $0x150] sm:$0x1] %vm272, 0.0
      %288 = vst.msk [vmem:[#allocation2 + $0x168] sm:$0x1] %vm272, 0.0
      %289 = vst.msk [vmem:[#allocation2 + $0x180] sm:$0x1] %vm272, 0.0
      %290 = vst.msk [vmem:[#allocation2 + $0x198] sm:$0x1] %vm272, 0.0
      %291 = vst.msk [vmem:[#allocation2 + $0x11] sm:$0x1] %vm272, 0.0
      %292 = vst.msk [vmem:[#allocation2 + $0x29] sm:$0x1] %vm272, 0.0
      %293 = vst.msk [vmem:[#allocation2 + $0x41] sm:$0x1] %vm272, 0.0
      %294 = vst.msk [vmem:[#allocation2 + $0x59] sm:$0x1] %vm272, 0.0
      %295 = vst.msk [vmem:[#allocation2 + $0x71] sm:$0x1] %vm272, 0.0
      %296 = vst.msk [vmem:[#allocation2 + $0x89] sm:$0x1] %vm272, 0.0
      %297 = vst.msk [vmem:[#allocation2 + $0xa1] sm:$0x1] %vm272, 0.0
      %298 = vst.msk [vmem:[#allocation2 + $0xb9] sm:$0x1] %vm272, 0.0
      %299 = vst.msk [vmem:[#allocation2 + $0xd1] sm:$0x1] %vm272, 0.0
      %300 = vst.msk [vmem:[#allocation2 + $0xe9] sm:$0x1] %vm272, 0.0
      %301 = vst.msk [vmem:[#allocation2 + $0x101] sm:$0x1] %vm272, 0.0
      %302 = vst.msk [vmem:[#allocation2 + $0x119] sm:$0x1] %vm272, 0.0
      %303 = vst.msk [vmem:[#allocation2 + $0x131] sm:$0x1] %vm272, 0.0
      %304 = vst.msk [vmem:[#allocation2 + $0x149] sm:$0x1] %vm272, 0.0
      %305 = vst.msk [vmem:[#allocation2 + $0x161] sm:$0x1] %vm272, 0.0
      %306 = vst.msk [vmem:[#allocation2 + $0x179] sm:$0x1] %vm272, 0.0
      %307 = vst.msk [vmem:[#allocation2 + $0x191] sm:$0x1] %vm272, 0.0
      %308 = vst.msk [vmem:[#allocation2 + $0x1a9] sm:$0x1] %vm272, 0.0
      %v309 = vld [vmem:[%s1] sm:$0x1]
      %v310 = vld [vmem:[%s2] sm:$0x1]
      %v311 = vld [vmem:[%s253] sm:$0xff]
      %v312 = vld [vmem:[%s253 + $0x8] sm:$0xff]
      %v313 = vld [vmem:[%s253 + $0x10] sm:$0xff]
      %v314 = vld [vmem:[%s253 + $0x18] sm:$0xff]
      %v315 = vld [vmem:[%s253 + $0x20] sm:$0xff]
      %v316 = vld [vmem:[%s253 + $0x28] sm:$0xff]
      %v317 = vld [vmem:[%s253 + $0x30] sm:$0xff]
      %v318 = vld [vmem:[%s253 + $0x38] sm:$0xff]
      %v319 = vld [vmem:[%s253 + $0x40] sm:$0xff]
      %v320 = vld [vmem:[%s253 + $0x48] sm:$0xff]
      %v321 = vld [vmem:[%s253 + $0x50] sm:$0xff]
      %v322 = vld [vmem:[%s253 + $0x58] sm:$0xff]
      %v323 = vld [vmem:[%s253 + $0x60] sm:$0xff]
      %v324 = vld [vmem:[%s253 + $0x68] sm:$0xff]
      %v325 = vld [vmem:[%s253 + $0x70] sm:$0xff]
      %v326 = vld [vmem:[%s253 + $0x78] sm:$0xff]
      %v327 = vld [vmem:[%s253 + $0x80] sm:$0xff]
      %v328 = vld [vmem:[%s253 + $0x88] sm:$0xff]
      %v329 = vld [vmem:[%s253 + $0x90] sm:$0xff]
      %v330 = vld [vmem:[%s253 + $0x98] sm:$0xff]
      %v331 = vld [vmem:[%s253 + $0xa0] sm:$0xff]
      %v332 = vld [vmem:[%s253 + $0xa8] sm:$0xff]
      %v333 = vld [vmem:[%s253 + $0xb0] sm:$0xff]
      %v334 = vld [vmem:[%s253 + $0xb8] sm:$0xff]
      %v335 = vld [vmem:[%s253 + $0xc0] sm:$0xff]
      %v336 = vld [vmem:[%s253 + $0xc8] sm:$0xff]
      %v337 = vld [vmem:[%s253 + $0xd0] sm:$0xff]
      %v338 = vld [vmem:[%s253 + $0xd8] sm:$0xff]
      %v339 = vld [vmem:[%s253 + $0xe0] sm:$0xff]
      %v340 = vld [vmem:[%s253 + $0xe8] sm:$0xff]
      %v341 = vld [vmem:[%s253 + $0xf0] sm:$0xff]
      %v342 = vld [vmem:[%s253 + $0xf8] sm:$0xff]
      %v344 = vperm.slane %v309, 0
      %v346 = vmul.f32 %v311, %v344
      %v347 = vmul.f32 %v312, %v344
      %v348 = vmul.f32 %v313, %v344
      %v349 = vmul.f32 %v314, %v344
      %v350 = vmul.f32 %v315, %v344
      %v351 = vmul.f32 %v316, %v344
      %v352 = vmul.f32 %v317, %v344
      %v353 = vmul.f32 %v318, %v344
      %v354 = vmul.f32 %v319, %v344
      %v355 = vmul.f32 %v320, %v344
      %v356 = vmul.f32 %v321, %v344
      %v357 = vmul.f32 %v322, %v344
      %v358 = vmul.f32 %v323, %v344
      %v359 = vmul.f32 %v324, %v344
      %v360 = vmul.f32 %v325, %v344
      %v361 = vmul.f32 %v326, %v344
      %v362 = vmul.f32 %v327, %v344
      %v363 = vmul.f32 %v328, %v344
      %v364 = vmul.f32 %v329, %v344
      %v365 = vmul.f32 %v330, %v344
      %v366 = vmul.f32 %v331, %v344
      %v367 = vmul.f32 %v332, %v344
      %v368 = vmul.f32 %v333, %v344
      %v369 = vmul.f32 %v334, %v344
      %v370 = vmul.f32 %v335, %v344
      %v371 = vmul.f32 %v336, %v344
      %v372 = vmul.f32 %v337, %v344
      %v373 = vmul.f32 %v338, %v344
      %v374 = vmul.f32 %v339, %v344
      %v375 = vmul.f32 %v340, %v344
      %v376 = vmul.f32 %v341, %v344
      %v377 = vmul.f32 %v342, %v344
      %v379 = vperm.slane %v310, 0
      %v381 = vadd.f32 %v346, %v379
      %v382 = vadd.f32 %v347, %v379
      %v383 = vadd.f32 %v348, %v379
      %v384 = vadd.f32 %v349, %v379
      %v385 = vadd.f32 %v350, %v379
      %v386 = vadd.f32 %v351, %v379
      %v387 = vadd.f32 %v352, %v379
      %v388 = vadd.f32 %v353, %v379
      %v389 = vadd.f32 %v354, %v379
      %v390 = vadd.f32 %v355, %v379
      %v391 = vadd.f32 %v356, %v379
      %v392 = vadd.f32 %v357, %v379
      %v393 = vadd.f32 %v358, %v379
      %v394 = vadd.f32 %v359, %v379
      %v395 = vadd.f32 %v360, %v379
      %v396 = vadd.f32 %v361, %v379
      %v397 = vadd.f32 %v362, %v379
      %v398 = vadd.f32 %v363, %v379
      %v399 = vadd.f32 %v364, %v379
      %v400 = vadd.f32 %v365, %v379
      %v401 = vadd.f32 %v366, %v379
      %v402 = vadd.f32 %v367, %v379
      %v403 = vadd.f32 %v368, %v379
      %v404 = vadd.f32 %v369, %v379
      %v405 = vadd.f32 %v370, %v379
      %v406 = vadd.f32 %v371, %v379
      %v407 = vadd.f32 %v372, %v379
      %v408 = vadd.f32 %v373, %v379
      %v409 = vadd.f32 %v374, %v379
      %v410 = vadd.f32 %v375, %v379
      %v411 = vadd.f32 %v376, %v379
      %v412 = vadd.f32 %v377, %v379
      %v413 = vmax.f32 %v381, 0.0
      %v414 = vmax.f32 %v382, 0.0
      %v415 = vmax.f32 %v383, 0.0
      %v416 = vmax.f32 %v384, 0.0
      %v417 = vmax.f32 %v385, 0.0
      %v418 = vmax.f32 %v386, 0.0
      %v419 = vmax.f32 %v387, 0.0
      %v420 = vmax.f32 %v388, 0.0
      %v421 = vmax.f32 %v389, 0.0
      %v422 = vmax.f32 %v390, 0.0
      %v423 = vmax.f32 %v391, 0.0
      %v424 = vmax.f32 %v392, 0.0
      %v425 = vmax.f32 %v393, 0.0
      %v426 = vmax.f32 %v394, 0.0
      %v427 = vmax.f32 %v395, 0.0
      %v428 = vmax.f32 %v396, 0.0
      %v429 = vmax.f32 %v397, 0.0
      %v430 = vmax.f32 %v398, 0.0
      %v431 = vmax.f32 %v399, 0.0
      %v432 = vmax.f32 %v400, 0.0
      %v433 = vmax.f32 %v401, 0.0
      %v434 = vmax.f32 %v402, 0.0
      %v435 = vmax.f32 %v403, 0.0
      %v436 = vmax.f32 %v404, 0.0
      %v437 = vmax.f32 %v405, 0.0
      %v438 = vmax.f32 %v406, 0.0
      %v439 = vmax.f32 %v407, 0.0
      %v440 = vmax.f32 %v408, 0.0
      %v441 = vmax.f32 %v409, 0.0
      %v442 = vmax.f32 %v410, 0.0
      %v443 = vmax.f32 %v411, 0.0
      %v444 = vmax.f32 %v412, 0.0
      %s445 = scalar_lea.vmem [#allocation2], 24
      %446 = vst.msk [vmem:[%s445 + $0x1] sm:$0xff] %vm263, %v413
      %447 = vst.msk [vmem:[%s445 + $0x9] sm:$0xff] %vm263, %v414
      %448 = vst.msk [vmem:[%s445 + $0x19] sm:$0xff] %vm263, %v415
      %449 = vst.msk [vmem:[%s445 + $0x21] sm:$0xff] %vm263, %v416
      %450 = vst.msk [vmem:[%s445 + $0x31] sm:$0xff] %vm263, %v417
      %451 = vst.msk [vmem:[%s445 + $0x39] sm:$0xff] %vm263, %v418
      %452 = vst.msk [vmem:[%s445 + $0x49] sm:$0xff] %vm263, %v419
      %453 = vst.msk [vmem:[%s445 + $0x51] sm:$0xff] %vm263, %v420
      %454 = vst.msk [vmem:[%s445 + $0x61] sm:$0xff] %vm263, %v421
      %455 = vst.msk [vmem:[%s445 + $0x69] sm:$0xff] %vm263, %v422
      %456 = vst.msk [vmem:[%s445 + $0x79] sm:$0xff] %vm263, %v423
      %457 = vst.msk [vmem:[%s445 + $0x81] sm:$0xff] %vm263, %v424
      %458 = vst.msk [vmem:[%s445 + $0x91] sm:$0xff] %vm263, %v425
      %459 = vst.msk [vmem:[%s445 + $0x99] sm:$0xff] %vm263, %v426
      %460 = vst.msk [vmem:[%s445 + $0xa9] sm:$0xff] %vm263, %v427
      %461 = vst.msk [vmem:[%s445 + $0xb1] sm:$0xff] %vm263, %v428
      %462 = vst.msk [vmem:[%s445 + $0xc1] sm:$0xff] %vm263, %v429
      %463 = vst.msk [vmem:[%s445 + $0xc9] sm:$0xff] %vm263, %v430
      %464 = vst.msk [vmem:[%s445 + $0xd9] sm:$0xff] %vm263, %v431
      %465 = vst.msk [vmem:[%s445 + $0xe1] sm:$0xff] %vm263, %v432
      %466 = vst.msk [vmem:[%s445 + $0xf1] sm:$0xff] %vm263, %v433
      %467 = vst.msk [vmem:[%s445 + $0xf9] sm:$0xff] %vm263, %v434
      %468 = vst.msk [vmem:[%s445 + $0x109] sm:$0xff] %vm263, %v435
      %469 = vst.msk [vmem:[%s445 + $0x111] sm:$0xff] %vm263, %v436
      %470 = vst.msk [vmem:[%s445 + $0x121] sm:$0xff] %vm263, %v437
      %471 = vst.msk [vmem:[%s445 + $0x129] sm:$0xff] %vm263, %v438
      %472 = vst.msk [vmem:[%s445 + $0x139] sm:$0xff] %vm263, %v439
      %473 = vst.msk [vmem:[%s445 + $0x141] sm:$0xff] %vm263, %v440
      %474 = vst.msk [vmem:[%s445 + $0x151] sm:$0xff] %vm263, %v441
      %475 = vst.msk [vmem:[%s445 + $0x159] sm:$0xff] %vm263, %v442
      %476 = vst.msk [vmem:[%s445 + $0x169] sm:$0xff] %vm263, %v443
      %477 = vst.msk [vmem:[%s445 + $0x171] sm:$0xff] %vm263, %v444
      %v478 = vld [vmem:[#allocation2] sm:$0xff]
      %v479 = vld [vmem:[#allocation2 + $0x8] sm:$0xff]
      %v480 = vld [vmem:[#allocation2 + $0x18] sm:$0xff]
      %v481 = vld [vmem:[#allocation2 + $0x20] sm:$0xff]
      %v482 = vld [vmem:[#allocation2 + $0x30] sm:$0xff]
      %v483 = vld [vmem:[#allocation2 + $0x38] sm:$0xff]
      %v484 = vld [vmem:[#allocation2 + $0x48] sm:$0xff]
      %v485 = vld [vmem:[#allocation2 + $0x50] sm:$0xff]
      %v486 = vld [vmem:[#allocation2 + $0x60] sm:$0xff]
      %v487 = vld [vmem:[#allocation2 + $0x68] sm:$0xff]
      %v488 = vld [vmem:[#allocation2 + $0x78] sm:$0xff]
      %v489 = vld [vmem:[#allocation2 + $0x80] sm:$0xff]
      %v490 = vld [vmem:[#allocation2 + $0x90] sm:$0xff]
      %v491 = vld [vmem:[#allocation2 + $0x98] sm:$0xff]
      %v492 = vld [vmem:[#allocation2 + $0xa8] sm:$0xff]
      %v493 = vld [vmem:[#allocation2 + $0xb0] sm:$0xff]
      %v494 = vld [vmem:[#allocation2 + $0xc0] sm:$0xff]
      %v495 = vld [vmem:[#allocation2 + $0xc8] sm:$0xff]
      %v496 = vld [vmem:[#allocation2 + $0xd8] sm:$0xff]
      %v497 = vld [vmem:[#allocation2 + $0xe0] sm:$0xff]
      %v498 = vld [vmem:[#allocation2 + $0xf0] sm:$0xff]
      %v499 = vld [vmem:[#allocation2 + $0xf8] sm:$0xff]
      %v500 = vld [vmem:[#allocation2 + $0x108] sm:$0xff]
      %v501 = vld [vmem:[#allocation2 + $0x110] sm:$0xff]
      %v502 = vld [vmem:[#allocation2 + $0x120] sm:$0xff]
      %v503 = vld [vmem:[#allocation2 + $0x128] sm:$0xff]
      %v504 = vld [vmem:[#allocation2 + $0x138] sm:$0xff]
      %v505 = vld [vmem:[#allocation2 + $0x140] sm:$0xff]
      %v506 = vld [vmem:[#allocation2 + $0x150] sm:$0xff]
      %v507 = vld [vmem:[#allocation2 + $0x158] sm:$0xff]
      %v508 = vld [vmem:[#allocation2 + $0x168] sm:$0xff]
      %v509 = vld [vmem:[#allocation2 + $0x170] sm:$0xff]
      %v510 = vld [vmem:[#allocation2 + $0x1] sm:$0xff]
      %v511 = vld [vmem:[#allocation2 + $0x9] sm:$0xff]
      %v512 = vld [vmem:[#allocation2 + $0x19] sm:$0xff]
      %v513 = vld [vmem:[#allocation2 + $0x21] sm:$0xff]
      %v514 = vld [vmem:[#allocation2 + $0x31] sm:$0xff]
      %v515 = vld [vmem:[#allocation2 + $0x39] sm:$0xff]
      %v516 = vld [vmem:[#allocation2 + $0x49] sm:$0xff]
      %v517 = vld [vmem:[#allocation2 + $0x51] sm:$0xff]
      %v518 = vld [vmem:[#allocation2 + $0x61] sm:$0xff]
      %v519 = vld [vmem:[#allocation2 + $0x69] sm:$0xff]
      %v520 = vld [vmem:[#allocation2 + $0x79] sm:$0xff]
      %v521 = vld [vmem:[#allocation2 + $0x81] sm:$0xff]
      %v522 = vld [vmem:[#allocation2 + $0x91] sm:$0xff]
      %v523 = vld [vmem:[#allocation2 + $0x99] sm:$0xff]
      %v524 = vld [vmem:[#allocation2 + $0xa9] sm:$0xff]
      %v525 = vld [vmem:[#allocation2 + $0xb1] sm:$0xff]
      %v526 = vld [vmem:[#allocation2 + $0xc1] sm:$0xff]
      %v527 = vld [vmem:[#allocation2 + $0xc9] sm:$0xff]
      %v528 = vld [vmem:[#allocation2 + $0xd9] sm:$0xff]
      %v529 = vld [vmem:[#allocation2 + $0xe1] sm:$0xff]
      %v530 = vld [vmem:[#allocation2 + $0xf1] sm:$0xff]
      %v531 = vld [vmem:[#allocation2 + $0xf9] sm:$0xff]
      %v532 = vld [vmem:[#allocation2 + $0x109] sm:$0xff]
      %v533 = vld [vmem:[#allocation2 + $0x111] sm:$0xff]
      %v534 = vld [vmem:[#allocation2 + $0x121] sm:$0xff]
      %v535 = vld [vmem:[#allocation2 + $0x129] sm:$0xff]
      %v536 = vld [vmem:[#allocation2 + $0x139] sm:$0xff]
      %v537 = vld [vmem:[#allocation2 + $0x141] sm:$0xff]
      %v538 = vld [vmem:[#allocation2 + $0x151] sm:$0xff]
      %v539 = vld [vmem:[#allocation2 + $0x159] sm:$0xff]
      %v540 = vld [vmem:[#allocation2 + $0x169] sm:$0xff]
      %v541 = vld [vmem:[#allocation2 + $0x171] sm:$0xff]
      %v542 = vld [vmem:[#allocation2 + $0x2] sm:$0xff]
      %v543 = vld [vmem:[#allocation2 + $0xa] sm:$0xff]
      %v544 = vld [vmem:[#allocation2 + $0x1a] sm:$0xff]
      %v545 = vld [vmem:[#allocation2 + $0x22] sm:$0xff]
      %v546 = vld [vmem:[#allocation2 + $0x32] sm:$0xff]
      %v547 = vld [vmem:[#allocation2 + $0x3a] sm:$0xff]
      %v548 = vld [vmem:[#allocation2 + $0x4a] sm:$0xff]
      %v549 = vld [vmem:[#allocation2 + $0x52] sm:$0xff]
      %v550 = vld [vmem:[#allocation2 + $0x62] sm:$0xff]
      %v551 = vld [vmem:[#allocation2 + $0x6a] sm:$0xff]
      %v552 = vld [vmem:[#allocation2 + $0x7a] sm:$0xff]
      %v553 = vld [vmem:[#allocation2 + $0x82] sm:$0xff]
      %v554 = vld [vmem:[#allocation2 + $0x92] sm:$0xff]
      %v555 = vld [vmem:[#allocation2 + $0x9a] sm:$0xff]
      %v556 = vld [vmem:[#allocation2 + $0xaa] sm:$0xff]
      %v557 = vld [vmem:[#allocation2 + $0xb2] sm:$0xff]
      %v558 = vld [vmem:[#allocation2 + $0xc2] sm:$0xff]
      %v559 = vld [vmem:[#allocation2 + $0xca] sm:$0xff]
      %v560 = vld [vmem:[#allocation2 + $0xda] sm:$0xff]
      %v561 = vld [vmem:[#allocation2 + $0xe2] sm:$0xff]
      %v562 = vld [vmem:[#allocation2 + $0xf2] sm:$0xff]
      %v563 = vld [vmem:[#allocation2 + $0xfa] sm:$0xff]
      %v564 = vld [vmem:[#allocation2 + $0x10a] sm:$0xff]
      %v565 = vld [vmem:[#allocation2 + $0x112] sm:$0xff]
      %v566 = vld [vmem:[#allocation2 + $0x122] sm:$0xff]
      %v567 = vld [vmem:[#allocation2 + $0x12a] sm:$0xff]
      %v568 = vld [vmem:[#allocation2 + $0x13a] sm:$0xff]
      %v569 = vld [vmem:[#allocation2 + $0x142] sm:$0xff]
      %v570 = vld [vmem:[#allocation2 + $0x152] sm:$0xff]
      %v571 = vld [vmem:[#allocation2 + $0x15a] sm:$0xff]
      %v572 = vld [vmem:[#allocation2 + $0x16a] sm:$0xff]
      %v573 = vld [vmem:[#allocation2 + $0x172] sm:$0xff]
      %v574 = vld [vmem:[%s445] sm:$0xff]
      %v575 = vld [vmem:[%s445 + $0x8] sm:$0xff]
      %v576 = vld [vmem:[%s445 + $0x18] sm:$0xff]
      %v577 = vld [vmem:[%s445 + $0x20] sm:$0xff]
      %v578 = vld [vmem:[%s445 + $0x30] sm:$0xff]
      %v579 = vld [vmem:[%s445 + $0x38] sm:$0xff]
      %v580 = vld [vmem:[%s445 + $0x48] sm:$0xff]
      %v581 = vld [vmem:[%s445 + $0x50] sm:$0xff]
      %v582 = vld [vmem:[%s445 + $0x60] sm:$0xff]
      %v583 = vld [vmem:[%s445 + $0x68] sm:$0xff]
      %v584 = vld [vmem:[%s445 + $0x78] sm:$0xff]
      %v585 = vld [vmem:[%s445 + $0x80] sm:$0xff]
      %v586 = vld [vmem:[%s445 + $0x90] sm:$0xff]
      %v587 = vld [vmem:[%s445 + $0x98] sm:$0xff]
      %v588 = vld [vmem:[%s445 + $0xa8] sm:$0xff]
      %v589 = vld [vmem:[%s445 + $0xb0] sm:$0xff]
      %v590 = vld [vmem:[%s445 + $0xc0] sm:$0xff]
      %v591 = vld [vmem:[%s445 + $0xc8] sm:$0xff]
      %v592 = vld [vmem:[%s445 + $0xd8] sm:$0xff]
      %v593 = vld [vmem:[%s445 + $0xe0] sm:$0xff]
      %v594 = vld [vmem:[%s445 + $0xf0] sm:$0xff]
      %v595 = vld [vmem:[%s445 + $0xf8] sm:$0xff]
      %v596 = vld [vmem:[%s445 + $0x108] sm:$0xff]
      %v597 = vld [vmem:[%s445 + $0x110] sm:$0xff]
      %v598 = vld [vmem:[%s445 + $0x120] sm:$0xff]
      %v599 = vld [vmem:[%s445 + $0x128] sm:$0xff]
      %v600 = vld [vmem:[%s445 + $0x138] sm:$0xff]
      %v601 = vld [vmem:[%s445 + $0x140] sm:$0xff]
      %v602 = vld [vmem:[%s445 + $0x150] sm:$0xff]
      %v603 = vld [vmem:[%s445 + $0x158] sm:$0xff]
      %v604 = vld [vmem:[%s445 + $0x168] sm:$0xff]
      %v605 = vld [vmem:[%s445 + $0x170] sm:$0xff]
      %v606 = vld [vmem:[%s445 + $0x1] sm:$0xff]
      %v607 = vld [vmem:[%s445 + $0x9] sm:$0xff]
      %v608 = vld [vmem:[%s445 + $0x19] sm:$0xff]
      %v609 = vld [vmem:[%s445 + $0x21] sm:$0xff]
      %v610 = vld [vmem:[%s445 + $0x31] sm:$0xff]
      %v611 = vld [vmem:[%s445 + $0x39] sm:$0xff]
      %v612 = vld [vmem:[%s445 + $0x49] sm:$0xff]
      %v613 = vld [vmem:[%s445 + $0x51] sm:$0xff]
      %v614 = vld [vmem:[%s445 + $0x61] sm:$0xff]
      %v615 = vld [vmem:[%s445 + $0x69] sm:$0xff]
      %v616 = vld [vmem:[%s445 + $0x79] sm:$0xff]
      %v617 = vld [vmem:[%s445 + $0x81] sm:$0xff]
      %v618 = vld [vmem:[%s445 + $0x91] sm:$0xff]
      %v619 = vld [vmem:[%s445 + $0x99] sm:$0xff]
      %v620 = vld [vmem:[%s445 + $0xa9] sm:$0xff]
      %v621 = vld [vmem:[%s445 + $0xb1] sm:$0xff]
      %v622 = vld [vmem:[%s445 + $0xc1] sm:$0xff]
      %v623 = vld [vmem:[%s445 + $0xc9] sm:$0xff]
      %v624 = vld [vmem:[%s445 + $0xd9] sm:$0xff]
      %v625 = vld [vmem:[%s445 + $0xe1] sm:$0xff]
      %v626 = vld [vmem:[%s445 + $0xf1] sm:$0xff]
      %v627 = vld [vmem:[%s445 + $0xf9] sm:$0xff]
      %v628 = vld [vmem:[%s445 + $0x109] sm:$0xff]
      %v629 = vld [vmem:[%s445 + $0x111] sm:$0xff]
      %v630 = vld [vmem:[%s445 + $0x121] sm:$0xff]
      %v631 = vld [vmem:[%s445 + $0x129] sm:$0xff]
      %v632 = vld [vmem:[%s445 + $0x139] sm:$0xff]
      %v633 = vld [vmem:[%s445 + $0x141] sm:$0xff]
      %v634 = vld [vmem:[%s445 + $0x151] sm:$0xff]
      %v635 = vld [vmem:[%s445 + $0x159] sm:$0xff]
      %v636 = vld [vmem:[%s445 + $0x169] sm:$0xff]
      %v637 = vld [vmem:[%s445 + $0x171] sm:$0xff]
      %v638 = vld [vmem:[%s445 + $0x2] sm:$0xff]
      %v639 = vld [vmem:[%s445 + $0xa] sm:$0xff]
      %v640 = vld [vmem:[%s445 + $0x1a] sm:$0xff]
      %v641 = vld [vmem:[%s445 + $0x22] sm:$0xff]
      %v642 = vld [vmem:[%s445 + $0x32] sm:$0xff]
      %v643 = vld [vmem:[%s445 + $0x3a] sm:$0xff]
      %v644 = vld [vmem:[%s445 + $0x4a] sm:$0xff]
      %v645 = vld [vmem:[%s445 + $0x52] sm:$0xff]
      %v646 = vld [vmem:[%s445 + $0x62] sm:$0xff]
      %v647 = vld [vmem:[%s445 + $0x6a] sm:$0xff]
      %v648 = vld [vmem:[%s445 + $0x7a] sm:$0xff]
      %v649 = vld [vmem:[%s445 + $0x82] sm:$0xff]
      %v650 = vld [vmem:[%s445 + $0x92] sm:$0xff]
      %v651 = vld [vmem:[%s445 + $0x9a] sm:$0xff]
      %v652 = vld [vmem:[%s445 + $0xaa] sm:$0xff]
      %v653 = vld [vmem:[%s445 + $0xb2] sm:$0xff]
      %v654 = vld [vmem:[%s445 + $0xc2] sm:$0xff]
      %v655 = vld [vmem:[%s445 + $0xca] sm:$0xff]
      %v656 = vld [vmem:[%s445 + $0xda] sm:$0xff]
      %v657 = vld [vmem:[%s445 + $0xe2] sm:$0xff]
      %v658 = vld [vmem:[%s445 + $0xf2] sm:$0xff]
      %v659 = vld [vmem:[%s445 + $0xfa] sm:$0xff]
      %v660 = vld [vmem:[%s445 + $0x10a] sm:$0xff]
      %v661 = vld [vmem:[%s445 + $0x112] sm:$0xff]
      %v662 = vld [vmem:[%s445 + $0x122] sm:$0xff]
      %v663 = vld [vmem:[%s445 + $0x12a] sm:$0xff]
      %v664 = vld [vmem:[%s445 + $0x13a] sm:$0xff]
      %v665 = vld [vmem:[%s445 + $0x142] sm:$0xff]
      %v666 = vld [vmem:[%s445 + $0x152] sm:$0xff]
      %v667 = vld [vmem:[%s445 + $0x15a] sm:$0xff]
      %v668 = vld [vmem:[%s445 + $0x16a] sm:$0xff]
      %v669 = vld [vmem:[%s445 + $0x172] sm:$0xff]
      %s670 = scalar_lea.vmem [#allocation2], 48
      %v671 = vld [vmem:[%s670] sm:$0xff]
      %v672 = vld [vmem:[%s670 + $0x8] sm:$0xff]
      %v673 = vld [vmem:[%s670 + $0x18] sm:$0xff]
      %v674 = vld [vmem:[%s670 + $0x20] sm:$0xff]
      %v675 = vld [vmem:[%s670 + $0x30] sm:$0xff]
      %v676 = vld [vmem:[%s670 + $0x38] sm:$0xff]
      %v677 = vld [vmem:[%s670 + $0x48] sm:$0xff]
      %v678 = vld [vmem:[%s670 + $0x50] sm:$0xff]
      %v679 = vld [vmem:[%s670 + $0x60] sm:$0xff]
      %v680 = vld [vmem:[%s670 + $0x68] sm:$0xff]
      %v681 = vld [vmem:[%s670 + $0x78] sm:$0xff]
      %v682 = vld [vmem:[%s670 + $0x80] sm:$0xff]
      %v683 = vld [vmem:[%s670 + $0x90] sm:$0xff]
      %v684 = vld [vmem:[%s670 + $0x98] sm:$0xff]
      %v685 = vld [vmem:[%s670 + $0xa8] sm:$0xff]
      %v686 = vld [vmem:[%s670 + $0xb0] sm:$0xff]
      %v687 = vld [vmem:[%s670 + $0xc0] sm:$0xff]
      %v688 = vld [vmem:[%s670 + $0xc8] sm:$0xff]
      %v689 = vld [vmem:[%s670 + $0xd8] sm:$0xff]
      %v690 = vld [vmem:[%s670 + $0xe0] sm:$0xff]
      %v691 = vld [vmem:[%s670 + $0xf0] sm:$0xff]
      %v692 = vld [vmem:[%s670 + $0xf8] sm:$0xff]
      %v693 = vld [vmem:[%s670 + $0x108] sm:$0xff]
      %v694 = vld [vmem:[%s670 + $0x110] sm:$0xff]
      %v695 = vld [vmem:[%s670 + $0x120] sm:$0xff]
      %v696 = vld [vmem:[%s670 + $0x128] sm:$0xff]
      %v697 = vld [vmem:[%s670 + $0x138] sm:$0xff]
      %v698 = vld [vmem:[%s670 + $0x140] sm:$0xff]
      %v699 = vld [vmem:[%s670 + $0x150] sm:$0xff]
      %v700 = vld [vmem:[%s670 + $0x158] sm:$0xff]
      %v701 = vld [vmem:[%s670 + $0x168] sm:$0xff]
      %v702 = vld [vmem:[%s670 + $0x170] sm:$0xff]
      %v703 = vld [vmem:[%s670 + $0x1] sm:$0xff]
      %v704 = vld [vmem:[%s670 + $0x9] sm:$0xff]
      %v705 = vld [vmem:[%s670 + $0x19] sm:$0xff]
      %v706 = vld [vmem:[%s670 + $0x21] sm:$0xff]
      %v707 = vld [vmem:[%s670 + $0x31] sm:$0xff]
      %v708 = vld [vmem:[%s670 + $0x39] sm:$0xff]
      %v709 = vld [vmem:[%s670 + $0x49] sm:$0xff]
      %v710 = vld [vmem:[%s670 + $0x51] sm:$0xff]
      %v711 = vld [vmem:[%s670 + $0x61] sm:$0xff]
      %v712 = vld [vmem:[%s670 + $0x69] sm:$0xff]
      %v713 = vld [vmem:[%s670 + $0x79] sm:$0xff]
      %v714 = vld [vmem:[%s670 + $0x81] sm:$0xff]
      %v715 = vld [vmem:[%s670 + $0x91] sm:$0xff]
      %v716 = vld [vmem:[%s670 + $0x99] sm:$0xff]
      %v717 = vld [vmem:[%s670 + $0xa9] sm:$0xff]
      %v718 = vld [vmem:[%s670 + $0xb1] sm:$0xff]
      %v719 = vld [vmem:[%s670 + $0xc1] sm:$0xff]
      %v720 = vld [vmem:[%s670 + $0xc9] sm:$0xff]
      %v721 = vld [vmem:[%s670 + $0xd9] sm:$0xff]
      %v722 = vld [vmem:[%s670 + $0xe1] sm:$0xff]
      %v723 = vld [vmem:[%s670 + $0xf1] sm:$0xff]
      %v724 = vld [vmem:[%s670 + $0xf9] sm:$0xff]
      %v725 = vld [vmem:[%s670 + $0x109] sm:$0xff]
      %v726 = vld [vmem:[%s670 + $0x111] sm:$0xff]
      %v727 = vld [vmem:[%s670 + $0x121] sm:$0xff]
      %v728 = vld [vmem:[%s670 + $0x129] sm:$0xff]
      %v729 = vld [vmem:[%s670 + $0x139] sm:$0xff]
      %v730 = vld [vmem:[%s670 + $0x141] sm:$0xff]
      %v731 = vld [vmem:[%s670 + $0x151] sm:$0xff]
      %v732 = vld [vmem:[%s670 + $0x159] sm:$0xff]
      %v733 = vld [vmem:[%s670 + $0x169] sm:$0xff]
      %v734 = vld [vmem:[%s670 + $0x171] sm:$0xff]
      %v735 = vld [vmem:[%s670 + $0x2] sm:$0xff]
      %v736 = vld [vmem:[%s670 + $0xa] sm:$0xff]
      %v737 = vld [vmem:[%s670 + $0x1a] sm:$0xff]
      %v738 = vld [vmem:[%s670 + $0x22] sm:$0xff]
      %v739 = vld [vmem:[%s670 + $0x32] sm:$0xff]
      %v740 = vld [vmem:[%s670 + $0x3a] sm:$0xff]
      %v741 = vld [vmem:[%s670 + $0x4a] sm:$0xff]
      %v742 = vld [vmem:[%s670 + $0x52] sm:$0xff]
      %v743 = vld [vmem:[%s670 + $0x62] sm:$0xff]
      %v744 = vld [vmem:[%s670 + $0x6a] sm:$0xff]
      %v745 = vld [vmem:[%s670 + $0x7a] sm:$0xff]
      %v746 = vld [vmem:[%s670 + $0x82] sm:$0xff]
      %v747 = vld [vmem:[%s670 + $0x92] sm:$0xff]
      %v748 = vld [vmem:[%s670 + $0x9a] sm:$0xff]
      %v749 = vld [vmem:[%s670 + $0xaa] sm:$0xff]
      %v750 = vld [vmem:[%s670 + $0xb2] sm:$0xff]
      %v751 = vld [vmem:[%s670 + $0xc2] sm:$0xff]
      %v752 = vld [vmem:[%s670 + $0xca] sm:$0xff]
      %v753 = vld [vmem:[%s670 + $0xda] sm:$0xff]
      %v754 = vld [vmem:[%s670 + $0xe2] sm:$0xff]
      %v755 = vld [vmem:[%s670 + $0xf2] sm:$0xff]
      %v756 = vld [vmem:[%s670 + $0xfa] sm:$0xff]
      %v757 = vld [vmem:[%s670 + $0x10a] sm:$0xff]
      %v758 = vld [vmem:[%s670 + $0x112] sm:$0xff]
      %v759 = vld [vmem:[%s670 + $0x122] sm:$0xff]
      %v760 = vld [vmem:[%s670 + $0x12a] sm:$0xff]
      %v761 = vld [vmem:[%s670 + $0x13a] sm:$0xff]
      %v762 = vld [vmem:[%s670 + $0x142] sm:$0xff]
      %v763 = vld [vmem:[%s670 + $0x152] sm:$0xff]
      %v764 = vld [vmem:[%s670 + $0x15a] sm:$0xff]
      %v765 = vld [vmem:[%s670 + $0x16a] sm:$0xff]
      %v766 = vld [vmem:[%s670 + $0x172] sm:$0xff]
      %799 = vrot.lane.b32.xlu0 %v510, 8
      %v800 = vpop.permute.xlu0 %799
      %801 = vrot.lane.b32.xlu0 %v511, 8
      %v802 = vpop.permute.xlu0 %801
      %803 = vrot.lane.b32.xlu0 %v512, 8
      %v804 = vpop.permute.xlu0 %803
      %805 = vrot.lane.b32.xlu0 %v513, 8
      %v806 = vpop.permute.xlu0 %805
      %807 = vrot.lane.b32.xlu0 %v514, 8
      %v808 = vpop.permute.xlu0 %807
      %809 = vrot.lane.b32.xlu0 %v515, 8
      %v810 = vpop.permute.xlu0 %809
      %811 = vrot.lane.b32.xlu0 %v516, 8
      %v812 = vpop.permute.xlu0 %811
      %813 = vrot.lane.b32.xlu0 %v517, 8
      %v814 = vpop.permute.xlu0 %813
      %815 = vrot.lane.b32.xlu0 %v518, 8
      %v816 = vpop.permute.xlu0 %815
      %817 = vrot.lane.b32.xlu0 %v519, 8
      %v818 = vpop.permute.xlu0 %817
      %819 = vrot.lane.b32.xlu0 %v520, 8
      %v820 = vpop.permute.xlu0 %819
      %821 = vrot.lane.b32.xlu0 %v521, 8
      %v822 = vpop.permute.xlu0 %821
      %823 = vrot.lane.b32.xlu0 %v522, 8
      %v824 = vpop.permute.xlu0 %823
      %825 = vrot.lane.b32.xlu0 %v523, 8
      %v826 = vpop.permute.xlu0 %825
      %827 = vrot.lane.b32.xlu0 %v524, 8
      %v828 = vpop.permute.xlu0 %827
      %829 = vrot.lane.b32.xlu0 %v525, 8
      %v830 = vpop.permute.xlu0 %829
      %831 = vrot.lane.b32.xlu0 %v526, 8
      %v832 = vpop.permute.xlu0 %831
      %833 = vrot.lane.b32.xlu0 %v527, 8
      %v834 = vpop.permute.xlu0 %833
      %835 = vrot.lane.b32.xlu0 %v528, 8
      %v836 = vpop.permute.xlu0 %835
      %837 = vrot.lane.b32.xlu0 %v529, 8
      %v838 = vpop.permute.xlu0 %837
      %839 = vrot.lane.b32.xlu0 %v530, 8
      %v840 = vpop.permute.xlu0 %839
      %841 = vrot.lane.b32.xlu0 %v531, 8
      %v842 = vpop.permute.xlu0 %841
      %843 = vrot.lane.b32.xlu0 %v532, 8
      %v844 = vpop.permute.xlu0 %843
      %845 = vrot.lane.b32.xlu0 %v533, 8
      %v846 = vpop.permute.xlu0 %845
      %847 = vrot.lane.b32.xlu0 %v534, 8
      %v848 = vpop.permute.xlu0 %847
      %849 = vrot.lane.b32.xlu0 %v535, 8
      %v850 = vpop.permute.xlu0 %849
      %851 = vrot.lane.b32.xlu0 %v536, 8
      %v852 = vpop.permute.xlu0 %851
      %853 = vrot.lane.b32.xlu0 %v537, 8
      %v854 = vpop.permute.xlu0 %853
      %855 = vrot.lane.b32.xlu0 %v538, 8
      %v856 = vpop.permute.xlu0 %855
      %857 = vrot.lane.b32.xlu0 %v539, 8
      %v858 = vpop.permute.xlu0 %857
      %859 = vrot.lane.b32.xlu0 %v540, 8
      %v860 = vpop.permute.xlu0 %859
      %861 = vrot.lane.b32.xlu0 %v541, 8
      %v862 = vpop.permute.xlu0 %861
      %927 = vrot.lane.b32.xlu0 %v542, 16
      %v928 = vpop.permute.xlu0 %927
      %929 = vrot.lane.b32.xlu0 %v543, 16
      %v930 = vpop.permute.xlu0 %929
      %931 = vrot.lane.b32.xlu0 %v544, 16
      %v932 = vpop.permute.xlu0 %931
      %933 = vrot.lane.b32.xlu0 %v545, 16
      %v934 = vpop.permute.xlu0 %933
      %935 = vrot.lane.b32.xlu0 %v546, 16
      %v936 = vpop.permute.xlu0 %935
      %937 = vrot.lane.b32.xlu0 %v547, 16
      %v938 = vpop.permute.xlu0 %937
      %939 = vrot.lane.b32.xlu0 %v548, 16
      %v940 = vpop.permute.xlu0 %939
      %941 = vrot.lane.b32.xlu0 %v549, 16
      %v942 = vpop.permute.xlu0 %941
      %943 = vrot.lane.b32.xlu0 %v550, 16
      %v944 = vpop.permute.xlu0 %943
      %945 = vrot.lane.b32.xlu0 %v551, 16
      %v946 = vpop.permute.xlu0 %945
      %947 = vrot.lane.b32.xlu0 %v552, 16
      %v948 = vpop.permute.xlu0 %947
      %949 = vrot.lane.b32.xlu0 %v553, 16
      %v950 = vpop.permute.xlu0 %949
      %951 = vrot.lane.b32.xlu0 %v554, 16
      %v952 = vpop.permute.xlu0 %951
      %953 = vrot.lane.b32.xlu0 %v555, 16
      %v954 = vpop.permute.xlu0 %953
      %955 = vrot.lane.b32.xlu0 %v556, 16
      %v956 = vpop.permute.xlu0 %955
      %957 = vrot.lane.b32.xlu0 %v557, 16
      %v958 = vpop.permute.xlu0 %957
      %959 = vrot.lane.b32.xlu0 %v558, 16
      %v960 = vpop.permute.xlu0 %959
      %961 = vrot.lane.b32.xlu0 %v559, 16
      %v962 = vpop.permute.xlu0 %961
      %963 = vrot.lane.b32.xlu0 %v560, 16
      %v964 = vpop.permute.xlu0 %963
      %965 = vrot.lane.b32.xlu0 %v561, 16
      %v966 = vpop.permute.xlu0 %965
      %967 = vrot.lane.b32.xlu0 %v562, 16
      %v968 = vpop.permute.xlu0 %967
      %969 = vrot.lane.b32.xlu0 %v563, 16
      %v970 = vpop.permute.xlu0 %969
      %971 = vrot.lane.b32.xlu0 %v564, 16
      %v972 = vpop.permute.xlu0 %971
      %973 = vrot.lane.b32.xlu0 %v565, 16
      %v974 = vpop.permute.xlu0 %973
      %975 = vrot.lane.b32.xlu0 %v566, 16
      %v976 = vpop.permute.xlu0 %975
      %977 = vrot.lane.b32.xlu0 %v567, 16
      %v978 = vpop.permute.xlu0 %977
      %979 = vrot.lane.b32.xlu0 %v568, 16
      %v980 = vpop.permute.xlu0 %979
      %981 = vrot.lane.b32.xlu0 %v569, 16
      %v982 = vpop.permute.xlu0 %981
      %983 = vrot.lane.b32.xlu0 %v570, 16
      %v984 = vpop.permute.xlu0 %983
      %985 = vrot.lane.b32.xlu0 %v571, 16
      %v986 = vpop.permute.xlu0 %985
      %987 = vrot.lane.b32.xlu0 %v572, 16
      %v988 = vpop.permute.xlu0 %987
      %989 = vrot.lane.b32.xlu0 %v573, 16
      %v990 = vpop.permute.xlu0 %989
      %1055 = vrot.lane.b32.xlu0 %v574, 24
      %v1056 = vpop.permute.xlu0 %1055
      %1057 = vrot.lane.b32.xlu0 %v575, 24
      %v1058 = vpop.permute.xlu0 %1057
      %1059 = vrot.lane.b32.xlu0 %v576, 24
      %v1060 = vpop.permute.xlu0 %1059
      %1061 = vrot.lane.b32.xlu0 %v577, 24
      %v1062 = vpop.permute.xlu0 %1061
      %1063 = vrot.lane.b32.xlu0 %v578, 24
      %v1064 = vpop.permute.xlu0 %1063
      %1065 = vrot.lane.b32.xlu0 %v579, 24
      %v1066 = vpop.permute.xlu0 %1065
      %1067 = vrot.lane.b32.xlu0 %v580, 24
      %v1068 = vpop.permute.xlu0 %1067
      %1069 = vrot.lane.b32.xlu0 %v581, 24
      %v1070 = vpop.permute.xlu0 %1069
      %1071 = vrot.lane.b32.xlu0 %v582, 24
      %v1072 = vpop.permute.xlu0 %1071
      %1073 = vrot.lane.b32.xlu0 %v583, 24
      %v1074 = vpop.permute.xlu0 %1073
      %1075 = vrot.lane.b32.xlu0 %v584, 24
      %v1076 = vpop.permute.xlu0 %1075
      %1077 = vrot.lane.b32.xlu0 %v585, 24
      %v1078 = vpop.permute.xlu0 %1077
      %1079 = vrot.lane.b32.xlu0 %v586, 24
      %v1080 = vpop.permute.xlu0 %1079
      %1081 = vrot.lane.b32.xlu0 %v587, 24
      %v1082 = vpop.permute.xlu0 %1081
      %1083 = vrot.lane.b32.xlu0 %v588, 24
      %v1084 = vpop.permute.xlu0 %1083
      %1085 = vrot.lane.b32.xlu0 %v589, 24
      %v1086 = vpop.permute.xlu0 %1085
      %1087 = vrot.lane.b32.xlu0 %v590, 24
      %v1088 = vpop.permute.xlu0 %1087
      %1089 = vrot.lane.b32.xlu0 %v591, 24
      %v1090 = vpop.permute.xlu0 %1089
      %1091 = vrot.lane.b32.xlu0 %v592, 24
      %v1092 = vpop.permute.xlu0 %1091
      %1093 = vrot.lane.b32.xlu0 %v593, 24
      %v1094 = vpop.permute.xlu0 %1093
      %1095 = vrot.lane.b32.xlu0 %v594, 24
      %v1096 = vpop.permute.xlu0 %1095
      %1097 = vrot.lane.b32.xlu0 %v595, 24
      %v1098 = vpop.permute.xlu0 %1097
      %1099 = vrot.lane.b32.xlu0 %v596, 24
      %v1100 = vpop.permute.xlu0 %1099
      %1101 = vrot.lane.b32.xlu0 %v597, 24
      %v1102 = vpop.permute.xlu0 %1101
      %1103 = vrot.lane.b32.xlu0 %v598, 24
      %v1104 = vpop.permute.xlu0 %1103
      %1105 = vrot.lane.b32.xlu0 %v599, 24
      %v1106 = vpop.permute.xlu0 %1105
      %1107 = vrot.lane.b32.xlu0 %v600, 24
      %v1108 = vpop.permute.xlu0 %1107
      %1109 = vrot.lane.b32.xlu0 %v601, 24
      %v1110 = vpop.permute.xlu0 %1109
      %1111 = vrot.lane.b32.xlu0 %v602, 24
      %v1112 = vpop.permute.xlu0 %1111
      %1113 = vrot.lane.b32.xlu0 %v603, 24
      %v1114 = vpop.permute.xlu0 %1113
      %1115 = vrot.lane.b32.xlu0 %v604, 24
      %v1116 = vpop.permute.xlu0 %1115
      %1117 = vrot.lane.b32.xlu0 %v605, 24
      %v1118 = vpop.permute.xlu0 %1117
      %1183 = vrot.lane.b32.xlu0 %v606, 32
      %v1184 = vpop.permute.xlu0 %1183
      %1185 = vrot.lane.b32.xlu0 %v607, 32
      %v1186 = vpop.permute.xlu0 %1185
      %1187 = vrot.lane.b32.xlu0 %v608, 32
      %v1188 = vpop.permute.xlu0 %1187
      %1189 = vrot.lane.b32.xlu0 %v609, 32
      %v1190 = vpop.permute.xlu0 %1189
      %1191 = vrot.lane.b32.xlu0 %v610, 32
      %v1192 = vpop.permute.xlu0 %1191
      %1193 = vrot.lane.b32.xlu0 %v611, 32
      %v1194 = vpop.permute.xlu0 %1193
      %1195 = vrot.lane.b32.xlu0 %v612, 32
      %v1196 = vpop.permute.xlu0 %1195
      %1197 = vrot.lane.b32.xlu0 %v613, 32
      %v1198 = vpop.permute.xlu0 %1197
      %1199 = vrot.lane.b32.xlu0 %v614, 32
      %v1200 = vpop.permute.xlu0 %1199
      %1201 = vrot.lane.b32.xlu0 %v615, 32
      %v1202 = vpop.permute.xlu0 %1201
      %1203 = vrot.lane.b32.xlu0 %v616, 32
      %v1204 = vpop.permute.xlu0 %1203
      %1205 = vrot.lane.b32.xlu0 %v617, 32
      %v1206 = vpop.permute.xlu0 %1205
      %1207 = vrot.lane.b32.xlu0 %v618, 32
      %v1208 = vpop.permute.xlu0 %1207
      %1209 = vrot.lane.b32.xlu0 %v619, 32
      %v1210 = vpop.permute.xlu0 %1209
      %1211 = vrot.lane.b32.xlu0 %v620, 32
      %v1212 = vpop.permute.xlu0 %1211
      %1213 = vrot.lane.b32.xlu0 %v621, 32
      %v1214 = vpop.permute.xlu0 %1213
      %1215 = vrot.lane.b32.xlu0 %v622, 32
      %v1216 = vpop.permute.xlu0 %1215
      %1217 = vrot.lane.b32.xlu0 %v623, 32
      %v1218 = vpop.permute.xlu0 %1217
      %1219 = vrot.lane.b32.xlu0 %v624, 32
      %v1220 = vpop.permute.xlu0 %1219
      %1221 = vrot.lane.b32.xlu0 %v625, 32
      %v1222 = vpop.permute.xlu0 %1221
      %1223 = vrot.lane.b32.xlu0 %v626, 32
      %v1224 = vpop.permute.xlu0 %1223
      %1225 = vrot.lane.b32.xlu0 %v627, 32
      %v1226 = vpop.permute.xlu0 %1225
      %1227 = vrot.lane.b32.xlu0 %v628, 32
      %v1228 = vpop.permute.xlu0 %1227
      %1229 = vrot.lane.b32.xlu0 %v629, 32
      %v1230 = vpop.permute.xlu0 %1229
      %1231 = vrot.lane.b32.xlu0 %v630, 32
      %v1232 = vpop.permute.xlu0 %1231
      %1233 = vrot.lane.b32.xlu0 %v631, 32
      %v1234 = vpop.permute.xlu0 %1233
      %1235 = vrot.lane.b32.xlu0 %v632, 32
      %v1236 = vpop.permute.xlu0 %1235
      %1237 = vrot.lane.b32.xlu0 %v633, 32
      %v1238 = vpop.permute.xlu0 %1237
      %1239 = vrot.lane.b32.xlu0 %v634, 32
      %v1240 = vpop.permute.xlu0 %1239
      %1241 = vrot.lane.b32.xlu0 %v635, 32
      %v1242 = vpop.permute.xlu0 %1241
      %1243 = vrot.lane.b32.xlu0 %v636, 32
      %v1244 = vpop.permute.xlu0 %1243
      %1245 = vrot.lane.b32.xlu0 %v637, 32
      %v1246 = vpop.permute.xlu0 %1245
      %1311 = vrot.lane.b32.xlu0 %v638, 40
      %v1312 = vpop.permute.xlu0 %1311
      %1313 = vrot.lane.b32.xlu0 %v639, 40
      %v1314 = vpop.permute.xlu0 %1313
      %1315 = vrot.lane.b32.xlu0 %v640, 40
      %v1316 = vpop.permute.xlu0 %1315
      %1317 = vrot.lane.b32.xlu0 %v641, 40
      %v1318 = vpop.permute.xlu0 %1317
      %1319 = vrot.lane.b32.xlu0 %v642, 40
      %v1320 = vpop.permute.xlu0 %1319
      %1321 = vrot.lane.b32.xlu0 %v643, 40
      %v1322 = vpop.permute.xlu0 %1321
      %1323 = vrot.lane.b32.xlu0 %v644, 40
      %v1324 = vpop.permute.xlu0 %1323
      %1325 = vrot.lane.b32.xlu0 %v645, 40
      %v1326 = vpop.permute.xlu0 %1325
      %1327 = vrot.lane.b32.xlu0 %v646, 40
      %v1328 = vpop.permute.xlu0 %1327
      %1329 = vrot.lane.b32.xlu0 %v647, 40
      %v1330 = vpop.permute.xlu0 %1329
      %1331 = vrot.lane.b32.xlu0 %v648, 40
      %v1332 = vpop.permute.xlu0 %1331
      %1333 = vrot.lane.b32.xlu0 %v649, 40
      %v1334 = vpop.permute.xlu0 %1333
      %1335 = vrot.lane.b32.xlu0 %v650, 40
      %v1336 = vpop.permute.xlu0 %1335
      %1337 = vrot.lane.b32.xlu0 %v651, 40
      %v1338 = vpop.permute.xlu0 %1337
      %1339 = vrot.lane.b32.xlu0 %v652, 40
      %v1340 = vpop.permute.xlu0 %1339
      %1341 = vrot.lane.b32.xlu0 %v653, 40
      %v1342 = vpop.permute.xlu0 %1341
      %1343 = vrot.lane.b32.xlu0 %v654, 40
      %v1344 = vpop.permute.xlu0 %1343
      %1345 = vrot.lane.b32.xlu0 %v655, 40
      %v1346 = vpop.permute.xlu0 %1345
      %1347 = vrot.lane.b32.xlu0 %v656, 40
      %v1348 = vpop.permute.xlu0 %1347
      %1349 = vrot.lane.b32.xlu0 %v657, 40
      %v1350 = vpop.permute.xlu0 %1349
      %1351 = vrot.lane.b32.xlu0 %v658, 40
      %v1352 = vpop.permute.xlu0 %1351
      %1353 = vrot.lane.b32.xlu0 %v659, 40
      %v1354 = vpop.permute.xlu0 %1353
      %1355 = vrot.lane.b32.xlu0 %v660, 40
      %v1356 = vpop.permute.xlu0 %1355
      %1357 = vrot.lane.b32.xlu0 %v661, 40
      %v1358 = vpop.permute.xlu0 %1357
      %1359 = vrot.lane.b32.xlu0 %v662, 40
      %v1360 = vpop.permute.xlu0 %1359
      %1361 = vrot.lane.b32.xlu0 %v663, 40
      %v1362 = vpop.permute.xlu0 %1361
      %1363 = vrot.lane.b32.xlu0 %v664, 40
      %v1364 = vpop.permute.xlu0 %1363
      %1365 = vrot.lane.b32.xlu0 %v665, 40
      %v1366 = vpop.permute.xlu0 %1365
      %1367 = vrot.lane.b32.xlu0 %v666, 40
      %v1368 = vpop.permute.xlu0 %1367
      %1369 = vrot.lane.b32.xlu0 %v667, 40
      %v1370 = vpop.permute.xlu0 %1369
      %1371 = vrot.lane.b32.xlu0 %v668, 40
      %v1372 = vpop.permute.xlu0 %1371
      %1373 = vrot.lane.b32.xlu0 %v669, 40
      %v1374 = vpop.permute.xlu0 %1373
      %1439 = vrot.lane.b32.xlu0 %v671, 48
      %v1440 = vpop.permute.xlu0 %1439
      %1441 = vrot.lane.b32.xlu0 %v672, 48
      %v1442 = vpop.permute.xlu0 %1441
      %1443 = vrot.lane.b32.xlu0 %v673, 48
      %v1444 = vpop.permute.xlu0 %1443
      %1445 = vrot.lane.b32.xlu0 %v674, 48
      %v1446 = vpop.permute.xlu0 %1445
      %1447 = vrot.lane.b32.xlu0 %v675, 48
      %v1448 = vpop.permute.xlu0 %1447
      %1449 = vrot.lane.b32.xlu0 %v676, 48
      %v1450 = vpop.permute.xlu0 %1449
      %1451 = vrot.lane.b32.xlu0 %v677, 48
      %v1452 = vpop.permute.xlu0 %1451
      %1453 = vrot.lane.b32.xlu0 %v678, 48
      %v1454 = vpop.permute.xlu0 %1453
      %1455 = vrot.lane.b32.xlu0 %v679, 48
      %v1456 = vpop.permute.xlu0 %1455
      %1457 = vrot.lane.b32.xlu0 %v680, 48
      %v1458 = vpop.permute.xlu0 %1457
      %1459 = vrot.lane.b32.xlu0 %v681, 48
      %v1460 = vpop.permute.xlu0 %1459
      %1461 = vrot.lane.b32.xlu0 %v682, 48
      %v1462 = vpop.permute.xlu0 %1461
      %1463 = vrot.lane.b32.xlu0 %v683, 48
      %v1464 = vpop.permute.xlu0 %1463
      %1465 = vrot.lane.b32.xlu0 %v684, 48
      %v1466 = vpop.permute.xlu0 %1465
      %1467 = vrot.lane.b32.xlu0 %v685, 48
      %v1468 = vpop.permute.xlu0 %1467
      %1469 = vrot.lane.b32.xlu0 %v686, 48
      %v1470 = vpop.permute.xlu0 %1469
      %1471 = vrot.lane.b32.xlu0 %v687, 48
      %v1472 = vpop.permute.xlu0 %1471
      %1473 = vrot.lane.b32.xlu0 %v688, 48
      %v1474 = vpop.permute.xlu0 %1473
      %1475 = vrot.lane.b32.xlu0 %v689, 48
      %v1476 = vpop.permute.xlu0 %1475
      %1477 = vrot.lane.b32.xlu0 %v690, 48
      %v1478 = vpop.permute.xlu0 %1477
      %1479 = vrot.lane.b32.xlu0 %v691, 48
      %v1480 = vpop.permute.xlu0 %1479
      %1481 = vrot.lane.b32.xlu0 %v692, 48
      %v1482 = vpop.permute.xlu0 %1481
      %1483 = vrot.lane.b32.xlu0 %v693, 48
      %v1484 = vpop.permute.xlu0 %1483
      %1485 = vrot.lane.b32.xlu0 %v694, 48
      %v1486 = vpop.permute.xlu0 %1485
      %1487 = vrot.lane.b32.xlu0 %v695, 48
      %v1488 = vpop.permute.xlu0 %1487
      %1489 = vrot.lane.b32.xlu0 %v696, 48
      %v1490 = vpop.permute.xlu0 %1489
      %1491 = vrot.lane.b32.xlu0 %v697, 48
      %v1492 = vpop.permute.xlu0 %1491
      %1493 = vrot.lane.b32.xlu0 %v698, 48
      %v1494 = vpop.permute.xlu0 %1493
      %1495 = vrot.lane.b32.xlu0 %v699, 48
      %v1496 = vpop.permute.xlu0 %1495
      %1497 = vrot.lane.b32.xlu0 %v700, 48
      %v1498 = vpop.permute.xlu0 %1497
      %1499 = vrot.lane.b32.xlu0 %v701, 48
      %v1500 = vpop.permute.xlu0 %1499
      %1501 = vrot.lane.b32.xlu0 %v702, 48
      %v1502 = vpop.permute.xlu0 %1501
      %1567 = vrot.lane.b32.xlu0 %v703, 56
      %v1568 = vpop.permute.xlu0 %1567
      %1569 = vrot.lane.b32.xlu0 %v704, 56
      %v1570 = vpop.permute.xlu0 %1569
      %1571 = vrot.lane.b32.xlu0 %v705, 56
      %v1572 = vpop.permute.xlu0 %1571
      %1573 = vrot.lane.b32.xlu0 %v706, 56
      %v1574 = vpop.permute.xlu0 %1573
      %1575 = vrot.lane.b32.xlu0 %v707, 56
      %v1576 = vpop.permute.xlu0 %1575
      %1577 = vrot.lane.b32.xlu0 %v708, 56
      %v1578 = vpop.permute.xlu0 %1577
      %1579 = vrot.lane.b32.xlu0 %v709, 56
      %v1580 = vpop.permute.xlu0 %1579
      %1581 = vrot.lane.b32.xlu0 %v710, 56
      %v1582 = vpop.permute.xlu0 %1581
      %1583 = vrot.lane.b32.xlu0 %v711, 56
      %v1584 = vpop.permute.xlu0 %1583
      %1585 = vrot.lane.b32.xlu0 %v712, 56
      %v1586 = vpop.permute.xlu0 %1585
      %1587 = vrot.lane.b32.xlu0 %v713, 56
      %v1588 = vpop.permute.xlu0 %1587
      %1589 = vrot.lane.b32.xlu0 %v714, 56
      %v1590 = vpop.permute.xlu0 %1589
      %1591 = vrot.lane.b32.xlu0 %v715, 56
      %v1592 = vpop.permute.xlu0 %1591
      %1593 = vrot.lane.b32.xlu0 %v716, 56
      %v1594 = vpop.permute.xlu0 %1593
      %1595 = vrot.lane.b32.xlu0 %v717, 56
      %v1596 = vpop.permute.xlu0 %1595
      %1597 = vrot.lane.b32.xlu0 %v718, 56
      %v1598 = vpop.permute.xlu0 %1597
      %1599 = vrot.lane.b32.xlu0 %v719, 56
      %v1600 = vpop.permute.xlu0 %1599
      %1601 = vrot.lane.b32.xlu0 %v720, 56
      %v1602 = vpop.permute.xlu0 %1601
      %1603 = vrot.lane.b32.xlu0 %v721, 56
      %v1604 = vpop.permute.xlu0 %1603
      %1605 = vrot.lane.b32.xlu0 %v722, 56
      %v1606 = vpop.permute.xlu0 %1605
      %1607 = vrot.lane.b32.xlu0 %v723, 56
      %v1608 = vpop.permute.xlu0 %1607
      %1609 = vrot.lane.b32.xlu0 %v724, 56
      %v1610 = vpop.permute.xlu0 %1609
      %1611 = vrot.lane.b32.xlu0 %v725, 56
      %v1612 = vpop.permute.xlu0 %1611
      %1613 = vrot.lane.b32.xlu0 %v726, 56
      %v1614 = vpop.permute.xlu0 %1613
      %1615 = vrot.lane.b32.xlu0 %v727, 56
      %v1616 = vpop.permute.xlu0 %1615
      %1617 = vrot.lane.b32.xlu0 %v728, 56
      %v1618 = vpop.permute.xlu0 %1617
      %1619 = vrot.lane.b32.xlu0 %v729, 56
      %v1620 = vpop.permute.xlu0 %1619
      %1621 = vrot.lane.b32.xlu0 %v730, 56
      %v1622 = vpop.permute.xlu0 %1621
      %1623 = vrot.lane.b32.xlu0 %v731, 56
      %v1624 = vpop.permute.xlu0 %1623
      %1625 = vrot.lane.b32.xlu0 %v732, 56
      %v1626 = vpop.permute.xlu0 %1625
      %1627 = vrot.lane.b32.xlu0 %v733, 56
      %v1628 = vpop.permute.xlu0 %1627
      %1629 = vrot.lane.b32.xlu0 %v734, 56
      %v1630 = vpop.permute.xlu0 %1629
      %1695 = vrot.lane.b32.xlu0 %v735, 64
      %v1696 = vpop.permute.xlu0 %1695
      %1697 = vrot.lane.b32.xlu0 %v736, 64
      %v1698 = vpop.permute.xlu0 %1697
      %1699 = vrot.lane.b32.xlu0 %v737, 64
      %v1700 = vpop.permute.xlu0 %1699
      %1701 = vrot.lane.b32.xlu0 %v738, 64
      %v1702 = vpop.permute.xlu0 %1701
      %1703 = vrot.lane.b32.xlu0 %v739, 64
      %v1704 = vpop.permute.xlu0 %1703
      %1705 = vrot.lane.b32.xlu0 %v740, 64
      %v1706 = vpop.permute.xlu0 %1705
      %1707 = vrot.lane.b32.xlu0 %v741, 64
      %v1708 = vpop.permute.xlu0 %1707
      %1709 = vrot.lane.b32.xlu0 %v742, 64
      %v1710 = vpop.permute.xlu0 %1709
      %1711 = vrot.lane.b32.xlu0 %v743, 64
      %v1712 = vpop.permute.xlu0 %1711
      %1713 = vrot.lane.b32.xlu0 %v744, 64
      %v1714 = vpop.permute.xlu0 %1713
      %1715 = vrot.lane.b32.xlu0 %v745, 64
      %v1716 = vpop.permute.xlu0 %1715
      %1717 = vrot.lane.b32.xlu0 %v746, 64
      %v1718 = vpop.permute.xlu0 %1717
      %1719 = vrot.lane.b32.xlu0 %v747, 64
      %v1720 = vpop.permute.xlu0 %1719
      %1721 = vrot.lane.b32.xlu0 %v748, 64
      %v1722 = vpop.permute.xlu0 %1721
      %1723 = vrot.lane.b32.xlu0 %v749, 64
      %v1724 = vpop.permute.xlu0 %1723
      %1725 = vrot.lane.b32.xlu0 %v750, 64
      %v1726 = vpop.permute.xlu0 %1725
      %1727 = vrot.lane.b32.xlu0 %v751, 64
      %v1728 = vpop.permute.xlu0 %1727
      %1729 = vrot.lane.b32.xlu0 %v752, 64
      %v1730 = vpop.permute.xlu0 %1729
      %1731 = vrot.lane.b32.xlu0 %v753, 64
      %v1732 = vpop.permute.xlu0 %1731
      %1733 = vrot.lane.b32.xlu0 %v754, 64
      %v1734 = vpop.permute.xlu0 %1733
      %1735 = vrot.lane.b32.xlu0 %v755, 64
      %v1736 = vpop.permute.xlu0 %1735
      %1737 = vrot.lane.b32.xlu0 %v756, 64
      %v1738 = vpop.permute.xlu0 %1737
      %1739 = vrot.lane.b32.xlu0 %v757, 64
      %v1740 = vpop.permute.xlu0 %1739
      %1741 = vrot.lane.b32.xlu0 %v758, 64
      %v1742 = vpop.permute.xlu0 %1741
      %1743 = vrot.lane.b32.xlu0 %v759, 64
      %v1744 = vpop.permute.xlu0 %1743
      %1745 = vrot.lane.b32.xlu0 %v760, 64
      %v1746 = vpop.permute.xlu0 %1745
      %1747 = vrot.lane.b32.xlu0 %v761, 64
      %v1748 = vpop.permute.xlu0 %1747
      %1749 = vrot.lane.b32.xlu0 %v762, 64
      %v1750 = vpop.permute.xlu0 %1749
      %1751 = vrot.lane.b32.xlu0 %v763, 64
      %v1752 = vpop.permute.xlu0 %1751
      %1753 = vrot.lane.b32.xlu0 %v764, 64
      %v1754 = vpop.permute.xlu0 %1753
      %1755 = vrot.lane.b32.xlu0 %v765, 64
      %v1756 = vpop.permute.xlu0 %1755
      %1757 = vrot.lane.b32.xlu0 %v766, 64
      %v1758 = vpop.permute.xlu0 %1757
      %v1791 = vsel %vm263, %v478, %v800
      %v1792 = vsel %vm263, %v479, %v802
      %v1793 = vsel %vm263, %v480, %v804
      %v1794 = vsel %vm263, %v481, %v806
      %v1795 = vsel %vm263, %v482, %v808
      %v1796 = vsel %vm263, %v483, %v810
      %v1797 = vsel %vm263, %v484, %v812
      %v1798 = vsel %vm263, %v485, %v814
      %v1799 = vsel %vm263, %v486, %v816
      %v1800 = vsel %vm263, %v487, %v818
      %v1801 = vsel %vm263, %v488, %v820
      %v1802 = vsel %vm263, %v489, %v822
      %v1803 = vsel %vm263, %v490, %v824
      %v1804 = vsel %vm263, %v491, %v826
      %v1805 = vsel %vm263, %v492, %v828
      %v1806 = vsel %vm263, %v493, %v830
      %v1807 = vsel %vm263, %v494, %v832
      %v1808 = vsel %vm263, %v495, %v834
      %v1809 = vsel %vm263, %v496, %v836
      %v1810 = vsel %vm263, %v497, %v838
      %v1811 = vsel %vm263, %v498, %v840
      %v1812 = vsel %vm263, %v499, %v842
      %v1813 = vsel %vm263, %v500, %v844
      %v1814 = vsel %vm263, %v501, %v846
      %v1815 = vsel %vm263, %v502, %v848
      %v1816 = vsel %vm263, %v503, %v850
      %v1817 = vsel %vm263, %v504, %v852
      %v1818 = vsel %vm263, %v505, %v854
      %v1819 = vsel %vm263, %v506, %v856
      %v1820 = vsel %vm263, %v507, %v858
      %v1821 = vsel %vm263, %v508, %v860
      %v1822 = vsel %vm263, %v509, %v862
      %vm1823 = vcmask 130048
      %v1824 = vsel %vm1823, %v1791, %v928
      %v1825 = vsel %vm1823, %v1792, %v930
      %v1826 = vsel %vm1823, %v1793, %v932
      %v1827 = vsel %vm1823, %v1794, %v934
      %v1828 = vsel %vm1823, %v1795, %v936
      %v1829 = vsel %vm1823, %v1796, %v938
      %v1830 = vsel %vm1823, %v1797, %v940
      %v1831 = vsel %vm1823, %v1798, %v942
      %v1832 = vsel %vm1823, %v1799, %v944
      %v1833 = vsel %vm1823, %v1800, %v946
      %v1834 = vsel %vm1823, %v1801, %v948
      %v1835 = vsel %vm1823, %v1802, %v950
      %v1836 = vsel %vm1823, %v1803, %v952
      %v1837 = vsel %vm1823, %v1804, %v954
      %v1838 = vsel %vm1823, %v1805, %v956
      %v1839 = vsel %vm1823, %v1806, %v958
      %v1840 = vsel %vm1823, %v1807, %v960
      %v1841 = vsel %vm1823, %v1808, %v962
      %v1842 = vsel %vm1823, %v1809, %v964
      %v1843 = vsel %vm1823, %v1810, %v966
      %v1844 = vsel %vm1823, %v1811, %v968
      %v1845 = vsel %vm1823, %v1812, %v970
      %v1846 = vsel %vm1823, %v1813, %v972
      %v1847 = vsel %vm1823, %v1814, %v974
      %v1848 = vsel %vm1823, %v1815, %v976
      %v1849 = vsel %vm1823, %v1816, %v978
      %v1850 = vsel %vm1823, %v1817, %v980
      %v1851 = vsel %vm1823, %v1818, %v982
      %v1852 = vsel %vm1823, %v1819, %v984
      %v1853 = vsel %vm1823, %v1820, %v986
      %v1854 = vsel %vm1823, %v1821, %v988
      %v1855 = vsel %vm1823, %v1822, %v990
      %vm1856 = vcmask 195584
      %v1857 = vsel %vm1856, %v1824, %v1056
      %v1858 = vsel %vm1856, %v1825, %v1058
      %v1859 = vsel %vm1856, %v1826, %v1060
      %v1860 = vsel %vm1856, %v1827, %v1062
      %v1861 = vsel %vm1856, %v1828, %v1064
      %v1862 = vsel %vm1856, %v1829, %v1066
      %v1863 = vsel %vm1856, %v1830, %v1068
      %v1864 = vsel %vm1856, %v1831, %v1070
      %v1865 = vsel %vm1856, %v1832, %v1072
      %v1866 = vsel %vm1856, %v1833, %v1074
      %v1867 = vsel %vm1856, %v1834, %v1076
      %v1868 = vsel %vm1856, %v1835, %v1078
      %v1869 = vsel %vm1856, %v1836, %v1080
      %v1870 = vsel %vm1856, %v1837, %v1082
      %v1871 = vsel %vm1856, %v1838, %v1084
      %v1872 = vsel %vm1856, %v1839, %v1086
      %v1873 = vsel %vm1856, %v1840, %v1088
      %v1874 = vsel %vm1856, %v1841, %v1090
      %v1875 = vsel %vm1856, %v1842, %v1092
      %v1876 = vsel %vm1856, %v1843, %v1094
      %v1877 = vsel %vm1856, %v1844, %v1096
      %v1878 = vsel %vm1856, %v1845, %v1098
      %v1879 = vsel %vm1856, %v1846, %v1100
      %v1880 = vsel %vm1856, %v1847, %v1102
      %v1881 = vsel %vm1856, %v1848, %v1104
      %v1882 = vsel %vm1856, %v1849, %v1106
      %v1883 = vsel %vm1856, %v1850, %v1108
      %v1884 = vsel %vm1856, %v1851, %v1110
      %v1885 = vsel %vm1856, %v1852, %v1112
      %v1886 = vsel %vm1856, %v1853, %v1114
      %v1887 = vsel %vm1856, %v1854, %v1116
      %v1888 = vsel %vm1856, %v1855, %v1118
      %vm1889 = vcmask 261120
      %v1890 = vsel %vm1889, %v1857, %v1184
      %v1891 = vsel %vm1889, %v1858, %v1186
      %v1892 = vsel %vm1889, %v1859, %v1188
      %v1893 = vsel %vm1889, %v1860, %v1190
      %v1894 = vsel %vm1889, %v1861, %v1192
      %v1895 = vsel %vm1889, %v1862, %v1194
      %v1896 = vsel %vm1889, %v1863, %v1196
      %v1897 = vsel %vm1889, %v1864, %v1198
      %v1898 = vsel %vm1889, %v1865, %v1200
      %v1899 = vsel %vm1889, %v1866, %v1202
      %v1900 = vsel %vm1889, %v1867, %v1204
      %v1901 = vsel %vm1889, %v1868, %v1206
      %v1902 = vsel %vm1889, %v1869, %v1208
      %v1903 = vsel %vm1889, %v1870, %v1210
      %v1904 = vsel %vm1889, %v1871, %v1212
      %v1905 = vsel %vm1889, %v1872, %v1214
      %v1906 = vsel %vm1889, %v1873, %v1216
      %v1907 = vsel %vm1889, %v1874, %v1218
      %v1908 = vsel %vm1889, %v1875, %v1220
      %v1909 = vsel %vm1889, %v1876, %v1222
      %v1910 = vsel %vm1889, %v1877, %v1224
      %v1911 = vsel %vm1889, %v1878, %v1226
      %v1912 = vsel %vm1889, %v1879, %v1228
      %v1913 = vsel %vm1889, %v1880, %v1230
      %v1914 = vsel %vm1889, %v1881, %v1232
      %v1915 = vsel %vm1889, %v1882, %v1234
      %v1916 = vsel %vm1889, %v1883, %v1236
      %v1917 = vsel %vm1889, %v1884, %v1238
      %v1918 = vsel %vm1889, %v1885, %v1240
      %v1919 = vsel %vm1889, %v1886, %v1242
      %v1920 = vsel %vm1889, %v1887, %v1244
      %v1921 = vsel %vm1889, %v1888, %v1246
      %vm1922 = vcmask 326656
      %v1923 = vsel %vm1922, %v1890, %v1312
      %v1924 = vsel %vm1922, %v1891, %v1314
      %v1925 = vsel %vm1922, %v1892, %v1316
      %v1926 = vsel %vm1922, %v1893, %v1318
      %v1927 = vsel %vm1922, %v1894, %v1320
      %v1928 = vsel %vm1922, %v1895, %v1322
      %v1929 = vsel %vm1922, %v1896, %v1324
      %v1930 = vsel %vm1922, %v1897, %v1326
      %v1931 = vsel %vm1922, %v1898, %v1328
      %v1932 = vsel %vm1922, %v1899, %v1330
      %v1933 = vsel %vm1922, %v1900, %v1332
      %v1934 = vsel %vm1922, %v1901, %v1334
      %v1935 = vsel %vm1922, %v1902, %v1336
      %v1936 = vsel %vm1922, %v1903, %v1338
      %v1937 = vsel %vm1922, %v1904, %v1340
      %v1938 = vsel %vm1922, %v1905, %v1342
      %v1939 = vsel %vm1922, %v1906, %v1344
      %v1940 = vsel %vm1922, %v1907, %v1346
      %v1941 = vsel %vm1922, %v1908, %v1348
      %v1942 = vsel %vm1922, %v1909, %v1350
      %v1943 = vsel %vm1922, %v1910, %v1352
      %v1944 = vsel %vm1922, %v1911, %v1354
      %v1945 = vsel %vm1922, %v1912, %v1356
      %v1946 = vsel %vm1922, %v1913, %v1358
      %v1947 = vsel %vm1922, %v1914, %v1360
      %v1948 = vsel %vm1922, %v1915, %v1362
      %v1949 = vsel %vm1922, %v1916, %v1364
      %v1950 = vsel %vm1922, %v1917, %v1366
      %v1951 = vsel %vm1922, %v1918, %v1368
      %v1952 = vsel %vm1922, %v1919, %v1370
      %v1953 = vsel %vm1922, %v1920, %v1372
      %v1954 = vsel %vm1922, %v1921, %v1374
      %vm1955 = vcmask 392192
      %v1956 = vsel %vm1955, %v1923, %v1440
      %v1957 = vsel %vm1955, %v1924, %v1442
      %v1958 = vsel %vm1955, %v1925, %v1444
      %v1959 = vsel %vm1955, %v1926, %v1446
      %v1960 = vsel %vm1955, %v1927, %v1448
      %v1961 = vsel %vm1955, %v1928, %v1450
      %v1962 = vsel %vm1955, %v1929, %v1452
      %v1963 = vsel %vm1955, %v1930, %v1454
      %v1964 = vsel %vm1955, %v1931, %v1456
      %v1965 = vsel %vm1955, %v1932, %v1458
      %v1966 = vsel %vm1955, %v1933, %v1460
      %v1967 = vsel %vm1955, %v1934, %v1462
      %v1968 = vsel %vm1955, %v1935, %v1464
      %v1969 = vsel %vm1955, %v1936, %v1466
      %v1970 = vsel %vm1955, %v1937, %v1468
      %v1971 = vsel %vm1955, %v1938, %v1470
      %v1972 = vsel %vm1955, %v1939, %v1472
      %v1973 = vsel %vm1955, %v1940, %v1474
      %v1974 = vsel %vm1955, %v1941, %v1476
      %v1975 = vsel %vm1955, %v1942, %v1478
      %v1976 = vsel %vm1955, %v1943, %v1480
      %v1977 = vsel %vm1955, %v1944, %v1482
      %v1978 = vsel %vm1955, %v1945, %v1484
      %v1979 = vsel %vm1955, %v1946, %v1486
      %v1980 = vsel %vm1955, %v1947, %v1488
      %v1981 = vsel %vm1955, %v1948, %v1490
      %v1982 = vsel %vm1955, %v1949, %v1492
      %v1983 = vsel %vm1955, %v1950, %v1494
      %v1984 = vsel %vm1955, %v1951, %v1496
      %v1985 = vsel %vm1955, %v1952, %v1498
      %v1986 = vsel %vm1955, %v1953, %v1500
      %v1987 = vsel %vm1955, %v1954, %v1502
      %vm1988 = vcmask 457728
      %v1989 = vsel %vm1988, %v1956, %v1568
      %v1990 = vsel %vm1988, %v1957, %v1570
      %v1991 = vsel %vm1988, %v1958, %v1572
      %v1992 = vsel %vm1988, %v1959, %v1574
      %v1993 = vsel %vm1988, %v1960, %v1576
      %v1994 = vsel %vm1988, %v1961, %v1578
      %v1995 = vsel %vm1988, %v1962, %v1580
      %v1996 = vsel %vm1988, %v1963, %v1582
      %v1997 = vsel %vm1988, %v1964, %v1584
      %v1998 = vsel %vm1988, %v1965, %v1586
      %v1999 = vsel %vm1988, %v1966, %v1588
      %v2000 = vsel %vm1988, %v1967, %v1590
      %v2001 = vsel %vm1988, %v1968, %v1592
      %v2002 = vsel %vm1988, %v1969, %v1594
      %v2003 = vsel %vm1988, %v1970, %v1596
      %v2004 = vsel %vm1988, %v1971, %v1598
      %v2005 = vsel %vm1988, %v1972, %v1600
      %v2006 = vsel %vm1988, %v1973, %v1602
      %v2007 = vsel %vm1988, %v1974, %v1604
      %v2008 = vsel %vm1988, %v1975, %v1606
      %v2009 = vsel %vm1988, %v1976, %v1608
      %v2010 = vsel %vm1988, %v1977, %v1610
      %v2011 = vsel %vm1988, %v1978, %v1612
      %v2012 = vsel %vm1988, %v1979, %v1614
      %v2013 = vsel %vm1988, %v1980, %v1616
      %v2014 = vsel %vm1988, %v1981, %v1618
      %v2015 = vsel %vm1988, %v1982, %v1620
      %v2016 = vsel %vm1988, %v1983, %v1622
      %v2017 = vsel %vm1988, %v1984, %v1624
      %v2018 = vsel %vm1988, %v1985, %v1626
      %v2019 = vsel %vm1988, %v1986, %v1628
      %v2020 = vsel %vm1988, %v1987, %v1630
      %vm2021 = vcmask 523264
      %v2022 = vsel %vm2021, %v1989, %v1696
      %v2023 = vsel %vm2021, %v1990, %v1698
      %v2024 = vsel %vm2021, %v1991, %v1700
      %v2025 = vsel %vm2021, %v1992, %v1702
      %v2026 = vsel %vm2021, %v1993, %v1704
      %v2027 = vsel %vm2021, %v1994, %v1706
      %v2028 = vsel %vm2021, %v1995, %v1708
      %v2029 = vsel %vm2021, %v1996, %v1710
      %v2030 = vsel %vm2021, %v1997, %v1712
      %v2031 = vsel %vm2021, %v1998, %v1714
      %v2032 = vsel %vm2021, %v1999, %v1716
      %v2033 = vsel %vm2021, %v2000, %v1718
      %v2034 = vsel %vm2021, %v2001, %v1720
      %v2035 = vsel %vm2021, %v2002, %v1722
      %v2036 = vsel %vm2021, %v2003, %v1724
      %v2037 = vsel %vm2021, %v2004, %v1726
      %v2038 = vsel %vm2021, %v2005, %v1728
      %v2039 = vsel %vm2021, %v2006, %v1730
      %v2040 = vsel %vm2021, %v2007, %v1732
      %v2041 = vsel %vm2021, %v2008, %v1734
      %v2042 = vsel %vm2021, %v2009, %v1736
      %v2043 = vsel %vm2021, %v2010, %v1738
      %v2044 = vsel %vm2021, %v2011, %v1740
      %v2045 = vsel %vm2021, %v2012, %v1742
      %v2046 = vsel %vm2021, %v2013, %v1744
      %v2047 = vsel %vm2021, %v2014, %v1746
      %v2048 = vsel %vm2021, %v2015, %v1748
      %v2049 = vsel %vm2021, %v2016, %v1750
      %v2050 = vsel %vm2021, %v2017, %v1752
      %v2051 = vsel %vm2021, %v2018, %v1754
      %v2052 = vsel %vm2021, %v2019, %v1756
      %v2053 = vsel %vm2021, %v2020, %v1758
      %v2054 = vld [vmem:[%s3] sm:$0xff]
      %v2055 = vld [vmem:[%s3 + $0x8] sm:$0xff]
      %v2056 = vld [vmem:[%s3 + $0x10] sm:$0xff]
      %v2057 = vld [vmem:[%s3 + $0x18] sm:$0xff]
      %v2058 = vld [vmem:[%s3 + $0x20] sm:$0xff]
      %v2059 = vld [vmem:[%s3 + $0x28] sm:$0xff]
      %v2060 = vld [vmem:[%s3 + $0x30] sm:$0xff]
      %v2061 = vld [vmem:[%s3 + $0x38] sm:$0xff]
      %v2062 = vld [vmem:[%s3 + $0x40] sm:$0xff]
      %v2063 = vld [vmem:[%s4] sm:$0x1]
      %v2065 = vperm.slane %v2063, 0
      %vm2067 = vcmask 588800
      %v2069 = vsel %vm2067, %v2022, 0
      %v2072 = vsel %vm2067, %v2023, 0
      %v2075 = vsel %vm2067, %v2024, 0
      %v2078 = vsel %vm2067, %v2025, 0
      %v2081 = vsel %vm2067, %v2026, 0
      %v2084 = vsel %vm2067, %v2027, 0
      %v2087 = vsel %vm2067, %v2028, 0
      %v2090 = vsel %vm2067, %v2029, 0
      %v2093 = vsel %vm2067, %v2030, 0
      %v2096 = vsel %vm2067, %v2031, 0
      %v2099 = vsel %vm2067, %v2032, 0
      %v2102 = vsel %vm2067, %v2033, 0
      %v2105 = vsel %vm2067, %v2034, 0
      %v2108 = vsel %vm2067, %v2035, 0
      %v2111 = vsel %vm2067, %v2036, 0
      %v2114 = vsel %vm2067, %v2037, 0
      %v2117 = vsel %vm2067, %v2038, 0
      %v2120 = vsel %vm2067, %v2039, 0
      %v2123 = vsel %vm2067, %v2040, 0
      %v2126 = vsel %vm2067, %v2041, 0
      %v2129 = vsel %vm2067, %v2042, 0
      %v2132 = vsel %vm2067, %v2043, 0
      %v2135 = vsel %vm2067, %v2044, 0
      %v2138 = vsel %vm2067, %v2045, 0
      %v2141 = vsel %vm2067, %v2046, 0
      %v2144 = vsel %vm2067, %v2047, 0
      %v2147 = vsel %vm2067, %v2048, 0
      %v2150 = vsel %vm2067, %v2049, 0
      %v2153 = vsel %vm2067, %v2050, 0
      %v2156 = vsel %vm2067, %v2051, 0
      %v2159 = vsel %vm2067, %v2052, 0
      %v2162 = vsel %vm2067, %v2053, 0
      %2164 = vmatpush.msra.mxu0 0.0
      %2165 = vmatpush.msra.mxu0 0.0
      %2166 = vmatpush.msra.mxu0 0.0
      %2167 = vmatpush.msra.mxu0 0.0
      %2168 = vmatpush.msra.mxu0 0.0
      %2169 = vmatpush.msra.mxu0 0.0
      %2170 = vmatpush.msra.mxu0 0.0
      %2171 = vmatpush.msra.mxu0 %v2062
      %2172 = vmatpush.msra.mxu0 %v2061
      %2173 = vmatpush.msra.mxu0 %v2060
      %2174 = vmatpush.msra.mxu0 %v2059
      %2175 = vmatpush.msra.mxu0 %v2058
      %2176 = vmatpush.msra.mxu0 %v2057
      %2177 = vmatpush.msra.mxu0 %v2056
      %2178 = vmatpush.msra.mxu0 %v2055
      %2179 = vmatpush.msra.mxu0 %v2054
      %2180 = vmatmul.f32.gmra.mxu0 %v2069
      %v2181 = vpop.f32.mrf.mxu0
      %v2182 = vadd.f32 %v2065, %v2181
      %2183 = vmatmul.f32.gmra.mxu0 %v2072
      %v2184 = vpop.f32.mrf.mxu0
      %v2185 = vadd.f32 %v2065, %v2184
      %2186 = vmatmul.f32.gmra.mxu0 %v2075
      %v2187 = vpop.f32.mrf.mxu0
      %v2188 = vadd.f32 %v2065, %v2187
      %2189 = vmatmul.f32.gmra.mxu0 %v2078
      %v2190 = vpop.f32.mrf.mxu0
      %v2191 = vadd.f32 %v2065, %v2190
      %2192 = vmatmul.f32.gmra.mxu0 %v2081
      %v2193 = vpop.f32.mrf.mxu0
      %v2194 = vadd.f32 %v2065, %v2193
      %2195 = vmatmul.f32.gmra.mxu0 %v2084
      %v2196 = vpop.f32.mrf.mxu0
      %v2197 = vadd.f32 %v2065, %v2196
      %2198 = vmatmul.f32.gmra.mxu0 %v2087
      %v2199 = vpop.f32.mrf.mxu0
      %v2200 = vadd.f32 %v2065, %v2199
      %2201 = vmatmul.f32.gmra.mxu0 %v2090
      %v2202 = vpop.f32.mrf.mxu0
      %v2203 = vadd.f32 %v2065, %v2202
      %2204 = vmatmul.f32.gmra.mxu0 %v2093
      %v2205 = vpop.f32.mrf.mxu0
      %v2206 = vadd.f32 %v2065, %v2205
      %2207 = vmatmul.f32.gmra.mxu0 %v2096
      %v2208 = vpop.f32.mrf.mxu0
      %v2209 = vadd.f32 %v2065, %v2208
      %2210 = vmatmul.f32.gmra.mxu0 %v2099
      %v2211 = vpop.f32.mrf.mxu0
      %v2212 = vadd.f32 %v2065, %v2211
      %2213 = vmatmul.f32.gmra.mxu0 %v2102
      %v2214 = vpop.f32.mrf.mxu0
      %v2215 = vadd.f32 %v2065, %v2214
      %2216 = vmatmul.f32.gmra.mxu0 %v2105
      %v2217 = vpop.f32.mrf.mxu0
      %v2218 = vadd.f32 %v2065, %v2217
      %2219 = vmatmul.f32.gmra.mxu0 %v2108
      %v2220 = vpop.f32.mrf.mxu0
      %v2221 = vadd.f32 %v2065, %v2220
      %2222 = vmatmul.f32.gmra.mxu0 %v2111
      %v2223 = vpop.f32.mrf.mxu0
      %v2224 = vadd.f32 %v2065, %v2223
      %2225 = vmatmul.f32.gmra.mxu0 %v2114
      %v2226 = vpop.f32.mrf.mxu0
      %v2227 = vadd.f32 %v2065, %v2226
      %2228 = vmatmul.f32.gmra.mxu0 %v2117
      %v2229 = vpop.f32.mrf.mxu0
      %v2230 = vadd.f32 %v2065, %v2229
      %2231 = vmatmul.f32.gmra.mxu0 %v2120
      %v2232 = vpop.f32.mrf.mxu0
      %v2233 = vadd.f32 %v2065, %v2232
      %2234 = vmatmul.f32.gmra.mxu0 %v2123
      %v2235 = vpop.f32.mrf.mxu0
      %v2236 = vadd.f32 %v2065, %v2235
      %2237 = vmatmul.f32.gmra.mxu0 %v2126
      %v2238 = vpop.f32.mrf.mxu0
      %v2239 = vadd.f32 %v2065, %v2238
      %2240 = vmatmul.f32.gmra.mxu0 %v2129
      %v2241 = vpop.f32.mrf.mxu0
      %v2242 = vadd.f32 %v2065, %v2241
      %2243 = vmatmul.f32.gmra.mxu0 %v2132
      %v2244 = vpop.f32.mrf.mxu0
      %v2245 = vadd.f32 %v2065, %v2244
      %2246 = vmatmul.f32.gmra.mxu0 %v2135
      %v2247 = vpop.f32.mrf.mxu0
      %v2248 = vadd.f32 %v2065, %v2247
      %2249 = vmatmul.f32.gmra.mxu0 %v2138
      %v2250 = vpop.f32.mrf.mxu0
      %v2251 = vadd.f32 %v2065, %v2250
      %2252 = vmatmul.f32.gmra.mxu0 %v2141
      %v2253 = vpop.f32.mrf.mxu0
      %v2254 = vadd.f32 %v2065, %v2253
      %2255 = vmatmul.f32.gmra.mxu0 %v2144
      %v2256 = vpop.f32.mrf.mxu0
      %v2257 = vadd.f32 %v2065, %v2256
      %2258 = vmatmul.f32.gmra.mxu0 %v2147
      %v2259 = vpop.f32.mrf.mxu0
      %v2260 = vadd.f32 %v2065, %v2259
      %2261 = vmatmul.f32.gmra.mxu0 %v2150
      %v2262 = vpop.f32.mrf.mxu0
      %v2263 = vadd.f32 %v2065, %v2262
      %2264 = vmatmul.f32.gmra.mxu0 %v2153
      %v2265 = vpop.f32.mrf.mxu0
      %v2266 = vadd.f32 %v2065, %v2265
      %2267 = vmatmul.f32.gmra.mxu0 %v2156
      %v2268 = vpop.f32.mrf.mxu0
      %v2269 = vadd.f32 %v2065, %v2268
      %2270 = vmatmul.f32.gmra.mxu0 %v2159
      %v2271 = vpop.f32.mrf.mxu0
      %v2272 = vadd.f32 %v2065, %v2271
      %2273 = vmatmul.f32.gmra.mxu0 %v2162
      %v2274 = vpop.f32.mrf.mxu0
      %v2275 = vadd.f32 %v2065, %v2274
      %2276 = vdwg.mxu0
      %2277 = vst.msk [vmem:[%s258] sm:$0xff] %vm263, %v2182
      %2278 = vst.msk [vmem:[%s258 + $0x8] sm:$0xff] %vm263, %v2185
      %2279 = vst.msk [vmem:[%s258 + $0x10] sm:$0xff] %vm263, %v2188
      %2280 = vst.msk [vmem:[%s258 + $0x18] sm:$0xff] %vm263, %v2191
      %2281 = vst.msk [vmem:[%s258 + $0x20] sm:$0xff] %vm263, %v2194
      %2282 = vst.msk [vmem:[%s258 + $0x28] sm:$0xff] %vm263, %v2197
      %2283 = vst.msk [vmem:[%s258 + $0x30] sm:$0xff] %vm263, %v2200
      %2284 = vst.msk [vmem:[%s258 + $0x38] sm:$0xff] %vm263, %v2203
      %2285 = vst.msk [vmem:[%s258 + $0x40] sm:$0xff] %vm263, %v2206
      %2286 = vst.msk [vmem:[%s258 + $0x48] sm:$0xff] %vm263, %v2209
      %2287 = vst.msk [vmem:[%s258 + $0x50] sm:$0xff] %vm263, %v2212
      %2288 = vst.msk [vmem:[%s258 + $0x58] sm:$0xff] %vm263, %v2215
      %2289 = vst.msk [vmem:[%s258 + $0x60] sm:$0xff] %vm263, %v2218
      %2290 = vst.msk [vmem:[%s258 + $0x68] sm:$0xff] %vm263, %v2221
      %2291 = vst.msk [vmem:[%s258 + $0x70] sm:$0xff] %vm263, %v2224
      %2292 = vst.msk [vmem:[%s258 + $0x78] sm:$0xff] %vm263, %v2227
      %2293 = vst.msk [vmem:[%s258 + $0x80] sm:$0xff] %vm263, %v2230
      %2294 = vst.msk [vmem:[%s258 + $0x88] sm:$0xff] %vm263, %v2233
      %2295 = vst.msk [vmem:[%s258 + $0x90] sm:$0xff] %vm263, %v2236
      %2296 = vst.msk [vmem:[%s258 + $0x98] sm:$0xff] %vm263, %v2239
      %2297 = vst.msk [vmem:[%s258 + $0xa0] sm:$0xff] %vm263, %v2242
      %2298 = vst.msk [vmem:[%s258 + $0xa8] sm:$0xff] %vm263, %v2245
      %2299 = vst.msk [vmem:[%s258 + $0xb0] sm:$0xff] %vm263, %v2248
      %2300 = vst.msk [vmem:[%s258 + $0xb8] sm:$0xff] %vm263, %v2251
      %2301 = vst.msk [vmem:[%s258 + $0xc0] sm:$0xff] %vm263, %v2254
      %2302 = vst.msk [vmem:[%s258 + $0xc8] sm:$0xff] %vm263, %v2257
      %2303 = vst.msk [vmem:[%s258 + $0xd0] sm:$0xff] %vm263, %v2260
      %2304 = vst.msk [vmem:[%s258 + $0xd8] sm:$0xff] %vm263, %v2263
      %2305 = vst.msk [vmem:[%s258 + $0xe0] sm:$0xff] %vm263, %v2266
      %2306 = vst.msk [vmem:[%s258 + $0xe8] sm:$0xff] %vm263, %v2269
      %2307 = vst.msk [vmem:[%s258 + $0xf0] sm:$0xff] %vm263, %v2272
      %2308 = vst.msk [vmem:[%s258 + $0xf8] sm:$0xff] %vm263, %v2275
      %v2309 = vsel %vm263, %v2182, 0.0
      %v2310 = vsel %vm263, %v2185, 0.0
      %v2311 = vadd.f32 %v2309, %v2310
      %v2312 = vsel %vm263, %v2188, 0.0
      %v2313 = vadd.f32 %v2311, %v2312
      %v2314 = vsel %vm263, %v2191, 0.0
      %v2315 = vadd.f32 %v2313, %v2314
      %v2316 = vsel %vm263, %v2194, 0.0
      %v2317 = vadd.f32 %v2315, %v2316
      %v2318 = vsel %vm263, %v2197, 0.0
      %v2319 = vadd.f32 %v2317, %v2318
      %v2320 = vsel %vm263, %v2200, 0.0
      %v2321 = vadd.f32 %v2319, %v2320
      %v2322 = vsel %vm263, %v2203, 0.0
      %v2323 = vadd.f32 %v2321, %v2322
      %v2324 = vsel %vm263, %v2206, 0.0
      %v2325 = vadd.f32 %v2323, %v2324
      %v2326 = vsel %vm263, %v2209, 0.0
      %v2327 = vadd.f32 %v2325, %v2326
      %v2328 = vsel %vm263, %v2212, 0.0
      %v2329 = vadd.f32 %v2327, %v2328
      %v2330 = vsel %vm263, %v2215, 0.0
      %v2331 = vadd.f32 %v2329, %v2330
      %v2332 = vsel %vm263, %v2218, 0.0
      %v2333 = vadd.f32 %v2331, %v2332
      %v2334 = vsel %vm263, %v2221, 0.0
      %v2335 = vadd.f32 %v2333, %v2334
      %v2336 = vsel %vm263, %v2224, 0.0
      %v2337 = vadd.f32 %v2335, %v2336
      %v2338 = vsel %vm263, %v2227, 0.0
      %v2339 = vadd.f32 %v2337, %v2338
      %v2340 = vsel %vm263, %v2230, 0.0
      %v2341 = vadd.f32 %v2339, %v2340
      %v2342 = vsel %vm263, %v2233, 0.0
      %v2343 = vadd.f32 %v2341, %v2342
      %v2344 = vsel %vm263, %v2236, 0.0
      %v2345 = vadd.f32 %v2343, %v2344
      %v2346 = vsel %vm263, %v2239, 0.0
      %v2347 = vadd.f32 %v2345, %v2346
      %v2348 = vsel %vm263, %v2242, 0.0
      %v2349 = vadd.f32 %v2347, %v2348
      %v2350 = vsel %vm263, %v2245, 0.0
      %v2351 = vadd.f32 %v2349, %v2350
      %v2352 = vsel %vm263, %v2248, 0.0
      %v2353 = vadd.f32 %v2351, %v2352
      %v2354 = vsel %vm263, %v2251, 0.0
      %v2355 = vadd.f32 %v2353, %v2354
      %v2356 = vsel %vm263, %v2254, 0.0
      %v2357 = vadd.f32 %v2355, %v2356
      %v2358 = vsel %vm263, %v2257, 0.0
      %v2359 = vadd.f32 %v2357, %v2358
      %v2360 = vsel %vm263, %v2260, 0.0
      %v2361 = vadd.f32 %v2359, %v2360
      %v2362 = vsel %vm263, %v2263, 0.0
      %v2363 = vadd.f32 %v2361, %v2362
      %v2364 = vsel %vm263, %v2266, 0.0
      %v2365 = vadd.f32 %v2363, %v2364
      %v2366 = vsel %vm263, %v2269, 0.0
      %v2367 = vadd.f32 %v2365, %v2366
      %v2368 = vsel %vm263, %v2272, 0.0
      %v2369 = vadd.f32 %v2367, %v2368
      %v2370 = vsel %vm263, %v2275, 0.0
      %v2371 = vadd.f32 %v2369, %v2370
      %v2372 = vrot.slane %v2371, 4
      %v2373 = vadd.f32 %v2371, %v2372
      %v2374 = vrot.slane %v2373, 2
      %v2375 = vadd.f32 %v2373, %v2374
      %v2376 = vrot.slane %v2375, 1
      %v2377 = vadd.f32 %v2375, %v2376
      %v2378 = vmul.f32 %v2182, %v2182
      %v2379 = vmul.f32 %v2185, %v2185
      %v2380 = vmul.f32 %v2188, %v2188
      %v2381 = vmul.f32 %v2191, %v2191
      %v2382 = vmul.f32 %v2194, %v2194
      %v2383 = vmul.f32 %v2197, %v2197
      %v2384 = vmul.f32 %v2200, %v2200
      %v2385 = vmul.f32 %v2203, %v2203
      %v2386 = vmul.f32 %v2206, %v2206
      %v2387 = vmul.f32 %v2209, %v2209
      %v2388 = vmul.f32 %v2212, %v2212
      %v2389 = vmul.f32 %v2215, %v2215
      %v2390 = vmul.f32 %v2218, %v2218
      %v2391 = vmul.f32 %v2221, %v2221
      %v2392 = vmul.f32 %v2224, %v2224
      %v2393 = vmul.f32 %v2227, %v2227
      %v2394 = vmul.f32 %v2230, %v2230
      %v2395 = vmul.f32 %v2233, %v2233
      %v2396 = vmul.f32 %v2236, %v2236
      %v2397 = vmul.f32 %v2239, %v2239
      %v2398 = vmul.f32 %v2242, %v2242
      %v2399 = vmul.f32 %v2245, %v2245
      %v2400 = vmul.f32 %v2248, %v2248
      %v2401 = vmul.f32 %v2251, %v2251
      %v2402 = vmul.f32 %v2254, %v2254
      %v2403 = vmul.f32 %v2257, %v2257
      %v2404 = vmul.f32 %v2260, %v2260
      %v2405 = vmul.f32 %v2263, %v2263
      %v2406 = vmul.f32 %v2266, %v2266
      %v2407 = vmul.f32 %v2269, %v2269
      %v2408 = vmul.f32 %v2272, %v2272
      %v2409 = vmul.f32 %v2275, %v2275
      %v2410 = vsel %vm263, %v2378, 0.0
      %v2411 = vsel %vm263, %v2379, 0.0
      %v2412 = vadd.f32 %v2410, %v2411
      %v2413 = vsel %vm263, %v2380, 0.0
      %v2414 = vadd.f32 %v2412, %v2413
      %v2415 = vsel %vm263, %v2381, 0.0
      %v2416 = vadd.f32 %v2414, %v2415
      %v2417 = vsel %vm263, %v2382, 0.0
      %v2418 = vadd.f32 %v2416, %v2417
      %v2419 = vsel %vm263, %v2383, 0.0
      %v2420 = vadd.f32 %v2418, %v2419
      %v2421 = vsel %vm263, %v2384, 0.0
      %v2422 = vadd.f32 %v2420, %v2421
      %v2423 = vsel %vm263, %v2385, 0.0
      %v2424 = vadd.f32 %v2422, %v2423
      %v2425 = vsel %vm263, %v2386, 0.0
      %v2426 = vadd.f32 %v2424, %v2425
      %v2427 = vsel %vm263, %v2387, 0.0
      %v2428 = vadd.f32 %v2426, %v2427
      %v2429 = vsel %vm263, %v2388, 0.0
      %v2430 = vadd.f32 %v2428, %v2429
      %v2431 = vsel %vm263, %v2389, 0.0
      %v2432 = vadd.f32 %v2430, %v2431
      %v2433 = vsel %vm263, %v2390, 0.0
      %v2434 = vadd.f32 %v2432, %v2433
      %v2435 = vsel %vm263, %v2391, 0.0
      %v2436 = vadd.f32 %v2434, %v2435
      %v2437 = vsel %vm263, %v2392, 0.0
      %v2438 = vadd.f32 %v2436, %v2437
      %v2439 = vsel %vm263, %v2393, 0.0
      %v2440 = vadd.f32 %v2438, %v2439
      %v2441 = vsel %vm263, %v2394, 0.0
      %v2442 = vadd.f32 %v2440, %v2441
      %v2443 = vsel %vm263, %v2395, 0.0
      %v2444 = vadd.f32 %v2442, %v2443
      %v2445 = vsel %vm263, %v2396, 0.0
      %v2446 = vadd.f32 %v2444, %v2445
      %v2447 = vsel %vm263, %v2397, 0.0
      %v2448 = vadd.f32 %v2446, %v2447
      %v2449 = vsel %vm263, %v2398, 0.0
      %v2450 = vadd.f32 %v2448, %v2449
      %v2451 = vsel %vm263, %v2399, 0.0
      %v2452 = vadd.f32 %v2450, %v2451
      %v2453 = vsel %vm263, %v2400, 0.0
      %v2454 = vadd.f32 %v2452, %v2453
      %v2455 = vsel %vm263, %v2401, 0.0
      %v2456 = vadd.f32 %v2454, %v2455
      %v2457 = vsel %vm263, %v2402, 0.0
      %v2458 = vadd.f32 %v2456, %v2457
      %v2459 = vsel %vm263, %v2403, 0.0
      %v2460 = vadd.f32 %v2458, %v2459
      %v2461 = vsel %vm263, %v2404, 0.0
      %v2462 = vadd.f32 %v2460, %v2461
      %v2463 = vsel %vm263, %v2405, 0.0
      %v2464 = vadd.f32 %v2462, %v2463
      %v2465 = vsel %vm263, %v2406, 0.0
      %v2466 = vadd.f32 %v2464, %v2465
      %v2467 = vsel %vm263, %v2407, 0.0
      %v2468 = vadd.f32 %v2466, %v2467
      %v2469 = vsel %vm263, %v2408, 0.0
      %v2470 = vadd.f32 %v2468, %v2469
      %v2471 = vsel %vm263, %v2409, 0.0
      %v2472 = vadd.f32 %v2470, %v2471
      %v2473 = vrot.slane %v2472, 4
      %v2474 = vadd.f32 %v2472, %v2473
      %v2475 = vrot.slane %v2474, 2
      %v2476 = vadd.f32 %v2474, %v2475
      %v2477 = vrot.slane %v2476, 1
      %v2478 = vadd.f32 %v2476, %v2477
      %vm2479 = vcmask 1040384
      %v2480 = vsel %vm2479, %v2377, %v2478
      %2481 = vst.msk [vmem:[%s262] sm:$0x3] %vm266, %v2480
      %p2482 = scmp.lt.s32.totalorder %s18, 1
      %s2483 = scalar_select %p2482, %s18, 1
      %s2484 = smul.addr %s2483, 32
      %s2485 = smul.addr %s2484, 8
      %s2486 = scalar_lea.vmem %s5, %s2485
      %p2487 = scmp.lt.s32.totalorder %s18, 1
      %s2488 = scalar_select %p2487, %s18, 1
      %s2489 = smul.addr %s2488, 2
      %s2490 = scalar_lea.vmem %s6, %s2489
      // Predicated region
      $region41: #{residual_block_forward.4} parent=39 // pred_check
        %p2491 = pneg %p146
      $region42: #{residual_block_forward.4} parent=39 // pred_check_branch
        %2493 = sbr.rel (%p2491) target = $region44
      $region43: #{residual_block_forward.4} parent=39 // pred_region
        _
      $region44: #{residual_block_forward.4} parent=39 // pred_fallthru
        _
      // Predicated region
      $region45: #{residual_block_forward.4} parent=39 // pred_check
        %p2494 = pneg %p172
      $region46: #{residual_block_forward.4} parent=39 // pred_check_branch
        %2496 = sbr.rel (%p2494) target = $region48
      $region47: #{residual_block_forward.4} parent=39 // pred_region
        _
      $region48: #{residual_block_forward.4} parent=39 // pred_fallthru
        _
    $region40: #{residual_block_forward.4} parent=5 // pred_fallthru
      _
    %p2497 = scmp.le.s32.totalorder 2, %s13
    // Predicated region
    $region49: #{residual_block_forward.4} parent=5 // pred_check
      %p2498 = pneg %p2497
    $region50: #{residual_block_forward.4} parent=5 // pred_check_branch
      %2500 = sbr.rel (%p2498) target = $region52
    $region51: #{residual_block_forward.4} parent=5 // pred_region
      %s2501 = ssub.s32 %s13, 2
      // Predicated region
      $region53: #{residual_block_forward.4} parent=51 // pred_check
        %p2502 = pneg %p152
      $region54: #{residual_block_forward.4} parent=51 // pred_check_branch
        %2504 = sbr.rel (%p2502) target = $region56
      $region55: #{residual_block_forward.4} parent=51 // pred_region
        %p2505 = scmp.lt.s32.totalorder %s19, 1
        %s2506 = scalar_select %p2505, %s19, 1
        %s2507 = smul.addr %s2506, 32
        %s2508 = smul.addr %s2507, 8
        %s2509 = scalar_lea.vmem %s5, %s2508
      $region56: #{residual_block_forward.4} parent=51 // pred_fallthru
        _
      // Predicated region
      $region57: #{residual_block_forward.4} parent=51 // pred_check
        %p2510 = pneg %p178
      $region58: #{residual_block_forward.4} parent=51 // pred_check_branch
        %2512 = sbr.rel (%p2510) target = $region60
      $region59: #{residual_block_forward.4} parent=51 // pred_region
        %p2513 = scmp.lt.s32.totalorder %s19, 1
        %s2514 = scalar_select %p2513, %s19, 1
        %s2515 = smul.addr %s2514, 2
        %s2516 = scalar_lea.vmem %s6, %s2515
      $region60: #{residual_block_forward.4} parent=51 // pred_fallthru
        _
    $region52: #{residual_block_forward.4} parent=5 // pred_fallthru
      _
  $region6: #{residual_block_forward.4} parent=0 // loop_footer
    %s17 = sadd.s32 1, %s13
  $region7: #{residual_block_forward.4} parent=0 // loop_footer_branch
    %12 = sbr.rel target = $region3
  $region8: #{residual_block_forward.4} parent=0 // loop_exit
    _

</llo_original>
